<compile_context>
chip_gen: v7x
topology: tpu7x:2x2x1
jax: 0.10.0
libtpu: 0.0.40
codegen_flags: <defaults>
</compile_context>

<pallas_src>
import jax
import jax.numpy as jnp
import numpy as np
from jax import lax
from jax.experimental import pallas as pl
from jax.experimental.pallas import tpu as pltpu

PAD_BATCH = 8   # pad batch rows to a sublane multiple
LANE = 128


# ----------------------------------------------------------------------------
# Kernel: fused fc1(streamed) -> relu -> [fc2..fc5 + relus](resident)
# ----------------------------------------------------------------------------
def _fused_mlp_kernel(x_ref, w1_ref, b1_ref, w2_ref, b2_ref, w3_ref, b3_ref,
                      w4_ref, b4_ref, w5_ref, b5_ref, o_ref, h1_ref):
    j = pl.program_id(0)
    tn = w1_ref.shape[1]

    # fc1 tile: (bp, K) @ (K, tn) -> (bp, tn), + bias, ReLU, into VMEM scratch.
    z = jnp.dot(x_ref[...], w1_ref[...], preferred_element_type=jnp.float32)
    start = pl.multiple_of(j * tn, LANE)
    h1_ref[:, pl.ds(start, tn)] = jnp.maximum(z + b1_ref[...], 0.0)

    # On the last N-tile the full fc1 activation is available: run the tail.
    @pl.when(j == pl.num_programs(0) - 1)
    def _():
        h = h1_ref[...]
        h = jnp.maximum(
            jnp.dot(h, w2_ref[...], preferred_element_type=jnp.float32)
            + b2_ref[...], 0.0)
        h = jnp.maximum(
            jnp.dot(h, w3_ref[...], preferred_element_type=jnp.float32)
            + b3_ref[...], 0.0)
        h = jnp.maximum(
            jnp.dot(h, w4_ref[...], preferred_element_type=jnp.float32)
            + b4_ref[...], 0.0)
        o_ref[...] = (
            jnp.dot(h, w5_ref[...], preferred_element_type=jnp.float32)
            + b5_ref[...])


# ----------------------------------------------------------------------------
# Wrappers
# ----------------------------------------------------------------------------
def _pick_tn(n, k, max_tile_bytes):
    """Largest tn that is a multiple of 128, divides n, and keeps a (k, tn)
    fp32 weight tile <= max_tile_bytes (so 2x-buffered streaming stays small)."""
    if n % LANE != 0:
        return n
    tn = n
    while tn > LANE and tn % 256 == 0 and k * tn * 4 > max_tile_bytes:
        tn //= 2
    return tn


def fused_mlp(x, params, *, max_tile_bytes=4 * 1024 * 1024):
    """Single pallas_call computing fc1..fc5 (+ReLUs) for x of shape (bp, K)."""
    bp, k = x.shape
    w1, b1 = params["fc1"]
    w2, b2 = params["fc2"]
    w3, b3 = params["fc3"]
    w4, b4 = params["fc4"]
    w5, b5 = params["fc5"]
    n1 = w1.shape[1]
    tn = _pick_tn(n1, k, max_tile_bytes)
    n_tiles = n1 // tn

    # Pad the final layer to a lane-dense 128-wide output slab (unmasked vst);
    # extra columns are zero and sliced off by the caller.
    n_out = w5.shape[1]
    n_out_p = max(LANE, ((n_out + LANE - 1) // LANE) * LANE)
    w5p = jnp.zeros((w5.shape[0], n_out_p), jnp.float32).at[:, :n_out].set(w5)
    b5p = jnp.zeros((n_out_p,), jnp.float32).at[:n_out].set(b5)

    args = [x,
            w1, b1.reshape(1, -1),
            w2, b2.reshape(1, -1),
            w3, b3.reshape(1, -1),
            w4, b4.reshape(1, -1),
            w5p, b5p.reshape(1, -1)]

    in_specs = [
        pl.BlockSpec((bp, k), lambda j: (0, 0)),    # activations (resident)
        pl.BlockSpec((k, tn), lambda j: (0, j)),    # fc1 weight tile (streamed)
        pl.BlockSpec((1, tn), lambda j: (0, j)),    # fc1 bias tile
    ]
    for a in args[3:]:                              # fc2..fc5 weights/biases resident
        in_specs.append(pl.BlockSpec(a.shape, lambda j: (0, 0)))

    out = pl.pallas_call(
        _fused_mlp_kernel,
        out_shape=jax.ShapeDtypeStruct((bp, n_out_p), jnp.float32),
        grid=(n_tiles,),
        in_specs=in_specs,
        out_specs=pl.BlockSpec((bp, n_out_p), lambda j: (0, 0)),
        scratch_shapes=[pltpu.VMEM((bp, n1), jnp.float32)],
        compiler_params=pltpu.CompilerParams(
            dimension_semantics=("arbitrary",),     # scratch carry across N-tiles
            vmem_limit_bytes=32 * 1024 * 1024),
    )(*args)
    return out[:, :n_out]


def adaptive_avg_pool_to_32(x):
    """nn.AdaptiveAvgPool2d((32, 32)) for H, W that are multiples of 32
    (exact non-overlapping average pooling -> identical to PyTorch)."""
    # TODO(synk): general non-divisible adaptive pooling (floor/ceil bins)
    # would need a gather-style Pallas kernel; this layout-only reshape+mean
    # stays in the wrapper (it is tiny relative to the fc1 weight stream).
    b, c, h, w = x.shape
    assert h % 32 == 0 and w % 32 == 0, "expect spatial dims divisible by 32"
    kh, kw = h // 32, w // 32
    return x.reshape(b, c, 32, kh, 32, kw).mean(axis=(3, 5))


def noise_extraction_classifier2_forward(x, params):
    b = x.shape[0]
    pooled = adaptive_avg_pool_to_32(x.astype(jnp.float32))   # (B, C, 32, 32)
    h = pooled.reshape(b, -1)                                 # flatten
    pad = (-b) % PAD_BATCH
    if pad:
        h = jnp.pad(h, ((0, pad), (0, 0)))                    # pad batch rows
    # dropout1..dropout4 are identity at inference time
    logits = fused_mlp(h, params)                             # fc1..fc5 fused
    return logits[:b]


# ----------------------------------------------------------------------------
# Parameters (deterministic He-style init; weights stored transposed (K, N))
# ----------------------------------------------------------------------------
def init_params(key, in_channels, num_classes):
    dims = [in_channels * 32 * 32, 1024, 512, 256, 128, num_classes]
    names = ["fc1", "fc2", "fc3", "fc4", "fc5"]
    params = {}
    for name, k_in, k_out in zip(names, dims[:-1], dims[1:]):
        key, kw, kb = jax.random.split(key, 3)
        w = jax.random.normal(kw, (k_in, k_out), jnp.float32) * np.sqrt(2.0 / k_in)
        b = jax.random.normal(kb, (k_out,), jnp.float32) * 0.01
        params[name] = (w, b)
    return params


# pure-JAX reference with identical semantics (eval-mode dropout = identity)
def reference_forward(x, params):
    pooled = adaptive_avg_pool_to_32(x.astype(jnp.float32))
    h = pooled.reshape(x.shape[0], -1)
    hp = lax.Precision.HIGHEST
    for name in ("fc1", "fc2", "fc3", "fc4"):
        w, b = params[name]
        h = jnp.maximum(jnp.dot(h, w, precision=hp) + b, 0.0)
    w, b = params["fc5"]
    return jnp.dot(h, w, precision=hp) + b


if __name__ == "__main__":
    key = jax.random.PRNGKey(0)
    kx, kp = jax.random.split(key)

    B, C, H, W = 2, 4, 64, 64          # small NCHW input (pooled down to 32x32)
    num_classes = 2
    x = jax.random.normal(kx, (B, C, H, W), jnp.float32)
    params = init_params(kp, C, num_classes)

    out = jax.block_until_ready(noise_extraction_classifier2_forward(x, params))
    assert out.shape == (B, num_classes)

    ref = jax.block_until_ready(reference_forward(x, params))
    np.testing.assert_allclose(np.asarray(out), np.asarray(ref),
                               rtol=2e-3, atol=2e-3)
    print("KERNEL_OK")
</pallas_src>

<mosaic_0001>
module attributes {stable_mosaic.version = 11 : i64} {
  func.func @_fused_mlp_kernel(%arg0: i32, %arg1: memref<8x4096xf32, #tpu.memory_space<vmem>>, %arg2: memref<4096x256xf32, #tpu.memory_space<vmem>>, %arg3: memref<1x256xf32, #tpu.memory_space<vmem>>, %arg4: memref<1024x512xf32, #tpu.memory_space<vmem>>, %arg5: memref<1x512xf32, #tpu.memory_space<vmem>>, %arg6: memref<512x256xf32, #tpu.memory_space<vmem>>, %arg7: memref<1x256xf32, #tpu.memory_space<vmem>>, %arg8: memref<256x128xf32, #tpu.memory_space<vmem>>, %arg9: memref<1x128xf32, #tpu.memory_space<vmem>>, %arg10: memref<128x128xf32, #tpu.memory_space<vmem>>, %arg11: memref<1x128xf32, #tpu.memory_space<vmem>>, %arg12: memref<8x128xf32, #tpu.memory_space<vmem>>, %arg13: memref<8x1024xf32, #tpu.memory_space<vmem>>) attributes {dimension_semantics = [#tpu.dimension_semantics<arbitrary>], iteration_bounds = array<i64: 4>, scalar_prefetch = 0 : i64, scratch_operands = 1 : i64, tpu.core_type = #tpu.core_type<tc>, window_params = [{pipeline_mode = #tpu.pipeline_mode<synchronous>, transform_indices = @transform_0, window_bounds = array<i64: 8, 4096>}, {transform_indices = @transform_1, window_bounds = array<i64: 4096, 256>}, {transform_indices = @transform_2, window_bounds = array<i64: 1, 256>}, {pipeline_mode = #tpu.pipeline_mode<synchronous>, transform_indices = @transform_3, window_bounds = array<i64: 1024, 512>}, {pipeline_mode = #tpu.pipeline_mode<synchronous>, transform_indices = @transform_4, window_bounds = array<i64: 1, 512>}, {pipeline_mode = #tpu.pipeline_mode<synchronous>, transform_indices = @transform_5, window_bounds = array<i64: 512, 256>}, {pipeline_mode = #tpu.pipeline_mode<synchronous>, transform_indices = @transform_6, window_bounds = array<i64: 1, 256>}, {pipeline_mode = #tpu.pipeline_mode<synchronous>, transform_indices = @transform_7, window_bounds = array<i64: 256, 128>}, {pipeline_mode = #tpu.pipeline_mode<synchronous>, transform_indices = @transform_8, window_bounds = array<i64: 1, 128>}, {pipeline_mode = #tpu.pipeline_mode<synchronous>, transform_indices = @transform_9, window_bounds = array<i64: 128, 128>}, {pipeline_mode = #tpu.pipeline_mode<synchronous>, transform_indices = @transform_10, window_bounds = array<i64: 1, 128>}, {pipeline_mode = #tpu.pipeline_mode<synchronous>, transform_indices = @transform_11, window_bounds = array<i64: 8, 128>}]} {
    %c0 = arith.constant 0 : index
    %c0_0 = arith.constant 0 : index
    %0 = vector.load %arg1[%c0, %c0_0] : memref<8x4096xf32, #tpu.memory_space<vmem>>, vector<8x4096xf32>
    %c0_1 = arith.constant 0 : index
    %c0_2 = arith.constant 0 : index
    %1 = vector.load %arg2[%c0_1, %c0_2] : memref<4096x256xf32, #tpu.memory_space<vmem>>, vector<4096x256xf32>
    %cst = arith.constant dense<0.000000e+00> : vector<8x256xf32>
    %2 = tpu.matmul %0, %1, %cst {dimension_numbers = #tpu.dot_dimension_numbers<[1], [0], [0], [1], [0, 0, 1, 1], [], []>} : vector<8x4096xf32>, vector<4096x256xf32>, vector<8x256xf32> -> vector<8x256xf32>
    %c256_i32 = arith.constant 256 : i32
    %3 = arith.muli %arg0, %c256_i32 : i32
    %4 = tpu.assume_multiple %3, 128 : i32
    %c0_3 = arith.constant 0 : index
    %c0_4 = arith.constant 0 : index
    %5 = vector.load %arg3[%c0_3, %c0_4] : memref<1x256xf32, #tpu.memory_space<vmem>>, vector<1x256xf32>
    %6 = vector.broadcast %5 : vector<1x256xf32> to vector<8x256xf32>
    %7 = arith.addf %2, %6 : vector<8x256xf32>
    %cst_5 = arith.constant 0.000000e+00 : f32
    %8 = vector.broadcast %cst_5 : f32 to vector<8x256xf32>
    %9 = arith.maximumf %7, %8 : vector<8x256xf32>
    %c0_6 = arith.constant 0 : index
    %10 = arith.index_cast %4 : i32 to index
    %11 = vector.load %arg13[%c0_6, %10] : memref<8x1024xf32, #tpu.memory_space<vmem>>, vector<8x256xf32>
    tpu.vector_store %arg13[%c0_6, %10], %9 {strides = array<i32>} : memref<8x1024xf32, #tpu.memory_space<vmem>>, vector<8x256xf32>,
    %c3_i32 = arith.constant 3 : i32
    %12 = arith.cmpi eq, %arg0, %c3_i32 : i32
    %13 = arith.extui %12 : i1 to i32
    %c0_i32 = arith.constant 0 : i32
    %14 = arith.cmpi ne, %13, %c0_i32 : i32
    scf.if %14 {
      %c0_7 = arith.constant 0 : index
      %c0_8 = arith.constant 0 : index
      %15 = vector.load %arg13[%c0_7, %c0_8] : memref<8x1024xf32, #tpu.memory_space<vmem>>, vector<8x1024xf32>
      %c0_9 = arith.constant 0 : index
      %c0_10 = arith.constant 0 : index
      %16 = vector.load %arg4[%c0_9, %c0_10] : memref<1024x512xf32, #tpu.memory_space<vmem>>, vector<1024x512xf32>
      %cst_11 = arith.constant dense<0.000000e+00> : vector<8x512xf32>
      %17 = tpu.matmul %15, %16, %cst_11 {dimension_numbers = #tpu.dot_dimension_numbers<[1], [0], [0], [1], [0, 0, 1, 1], [], []>} : vector<8x1024xf32>, vector<1024x512xf32>, vector<8x512xf32> -> vector<8x512xf32>
      %c0_12 = arith.constant 0 : index
      %c0_13 = arith.constant 0 : index
      %18 = vector.load %arg5[%c0_12, %c0_13] : memref<1x512xf32, #tpu.memory_space<vmem>>, vector<1x512xf32>
      %19 = vector.broadcast %18 : vector<1x512xf32> to vector<8x512xf32>
      %20 = arith.addf %17, %19 : vector<8x512xf32>
      %cst_14 = arith.constant 0.000000e+00 : f32
      %21 = vector.broadcast %cst_14 : f32 to vector<8x512xf32>
      %22 = arith.maximumf %20, %21 : vector<8x512xf32>
      %c0_15 = arith.constant 0 : index
      %c0_16 = arith.constant 0 : index
      %23 = vector.load %arg6[%c0_15, %c0_16] : memref<512x256xf32, #tpu.memory_space<vmem>>, vector<512x256xf32>
      %cst_17 = arith.constant dense<0.000000e+00> : vector<8x256xf32>
      %24 = tpu.matmul %22, %23, %cst_17 {dimension_numbers = #tpu.dot_dimension_numbers<[1], [0], [0], [1], [0, 0, 1, 1], [], []>} : vector<8x512xf32>, vector<512x256xf32>, vector<8x256xf32> -> vector<8x256xf32>
      %c0_18 = arith.constant 0 : index
      %c0_19 = arith.constant 0 : index
      %25 = vector.load %arg7[%c0_18, %c0_19] : memref<1x256xf32, #tpu.memory_space<vmem>>, vector<1x256xf32>
      %26 = vector.broadcast %25 : vector<1x256xf32> to vector<8x256xf32>
      %27 = arith.addf %24, %26 : vector<8x256xf32>
      %cst_20 = arith.constant 0.000000e+00 : f32
      %28 = vector.broadcast %cst_20 : f32 to vector<8x256xf32>
      %29 = arith.maximumf %27, %28 : vector<8x256xf32>
      %c0_21 = arith.constant 0 : index
      %c0_22 = arith.constant 0 : index
      %30 = vector.load %arg8[%c0_21, %c0_22] : memref<256x128xf32, #tpu.memory_space<vmem>>, vector<256x128xf32>
      %cst_23 = arith.constant dense<0.000000e+00> : vector<8x128xf32>
      %31 = tpu.matmul %29, %30, %cst_23 {dimension_numbers = #tpu.dot_dimension_numbers<[1], [0], [0], [1], [0, 0, 1, 1], [], []>} : vector<8x256xf32>, vector<256x128xf32>, vector<8x128xf32> -> vector<8x128xf32>
      %c0_24 = arith.constant 0 : index
      %c0_25 = arith.constant 0 : index
      %32 = vector.load %arg9[%c0_24, %c0_25] : memref<1x128xf32, #tpu.memory_space<vmem>>, vector<1x128xf32>
      %33 = vector.broadcast %32 : vector<1x128xf32> to vector<8x128xf32>
      %34 = arith.addf %31, %33 : vector<8x128xf32>
      %cst_26 = arith.constant 0.000000e+00 : f32
      %35 = vector.broadcast %cst_26 : f32 to vector<8x128xf32>
      %36 = arith.maximumf %34, %35 : vector<8x128xf32>
      %c0_27 = arith.constant 0 : index
      %c0_28 = arith.constant 0 : index
      %37 = vector.load %arg10[%c0_27, %c0_28] : memref<128x128xf32, #tpu.memory_space<vmem>>, vector<128x128xf32>
      %cst_29 = arith.constant dense<0.000000e+00> : vector<8x128xf32>
      %38 = tpu.matmul %36, %37, %cst_29 {dimension_numbers = #tpu.dot_dimension_numbers<[1], [0], [0], [1], [0, 0, 1, 1], [], []>} : vector<8x128xf32>, vector<128x128xf32>, vector<8x128xf32> -> vector<8x128xf32>
      %c0_30 = arith.constant 0 : index
      %c0_31 = arith.constant 0 : index
      %39 = vector.load %arg11[%c0_30, %c0_31] : memref<1x128xf32, #tpu.memory_space<vmem>>, vector<1x128xf32>
      %40 = vector.broadcast %39 : vector<1x128xf32> to vector<8x128xf32>
      %41 = arith.addf %38, %40 : vector<8x128xf32>
      %c0_32 = arith.constant 0 : index
      %c0_33 = arith.constant 0 : index
      %42 = vector.load %arg12[%c0_32, %c0_33] : memref<8x128xf32, #tpu.memory_space<vmem>>, vector<8x128xf32>
      tpu.vector_store %arg12[%c0_32, %c0_33], %41 {strides = array<i32>} : memref<8x128xf32, #tpu.memory_space<vmem>>, vector<8x128xf32>,
    } else {
    }
    return
  }
  func.func @transform_0(%arg0: i32) -> (i32, i32) {
    %c0_i32 = arith.constant 0 : i32
    %c0_i32_0 = arith.constant 0 : i32
    %c0_i32_1 = arith.constant 0 : i32
    return %c0_i32, %c0_i32_0 : i32, i32
  }
  func.func @transform_1(%arg0: i32) -> (i32, i32) {
    %c0_i32 = arith.constant 0 : i32
    %c0_i32_0 = arith.constant 0 : i32
    return %c0_i32, %arg0 : i32, i32
  }
  func.func @transform_2(%arg0: i32) -> (i32, i32) {
    %c0_i32 = arith.constant 0 : i32
    %c0_i32_0 = arith.constant 0 : i32
    return %c0_i32, %arg0 : i32, i32
  }
  func.func @transform_3(%arg0: i32) -> (i32, i32) {
    %c0_i32 = arith.constant 0 : i32
    %c0_i32_0 = arith.constant 0 : i32
    %c0_i32_1 = arith.constant 0 : i32
    return %c0_i32, %c0_i32_0 : i32, i32
  }
  func.func @transform_4(%arg0: i32) -> (i32, i32) {
    %c0_i32 = arith.constant 0 : i32
    %c0_i32_0 = arith.constant 0 : i32
    %c0_i32_1 = arith.constant 0 : i32
    return %c0_i32, %c0_i32_0 : i32, i32
  }
  func.func @transform_5(%arg0: i32) -> (i32, i32) {
    %c0_i32 = arith.constant 0 : i32
    %c0_i32_0 = arith.constant 0 : i32
    %c0_i32_1 = arith.constant 0 : i32
    return %c0_i32, %c0_i32_0 : i32, i32
  }
  func.func @transform_6(%arg0: i32) -> (i32, i32) {
    %c0_i32 = arith.constant 0 : i32
    %c0_i32_0 = arith.constant 0 : i32
    %c0_i32_1 = arith.constant 0 : i32
    return %c0_i32, %c0_i32_0 : i32, i32
  }
  func.func @transform_7(%arg0: i32) -> (i32, i32) {
    %c0_i32 = arith.constant 0 : i32
    %c0_i32_0 = arith.constant 0 : i32
    %c0_i32_1 = arith.constant 0 : i32
    return %c0_i32, %c0_i32_0 : i32, i32
  }
  func.func @transform_8(%arg0: i32) -> (i32, i32) {
    %c0_i32 = arith.constant 0 : i32
    %c0_i32_0 = arith.constant 0 : i32
    %c0_i32_1 = arith.constant 0 : i32
    return %c0_i32, %c0_i32_0 : i32, i32
  }
  func.func @transform_9(%arg0: i32) -> (i32, i32) {
    %c0_i32 = arith.constant 0 : i32
    %c0_i32_0 = arith.constant 0 : i32
    %c0_i32_1 = arith.constant 0 : i32
    return %c0_i32, %c0_i32_0 : i32, i32
  }
  func.func @transform_10(%arg0: i32) -> (i32, i32) {
    %c0_i32 = arith.constant 0 : i32
    %c0_i32_0 = arith.constant 0 : i32
    %c0_i32_1 = arith.constant 0 : i32
    return %c0_i32, %c0_i32_0 : i32, i32
  }
  func.func @transform_11(%arg0: i32) -> (i32, i32) {
    %c0_i32 = arith.constant 0 : i32
    %c0_i32_0 = arith.constant 0 : i32
    %c0_i32_1 = arith.constant 0 : i32
    return %c0_i32, %c0_i32_0 : i32, i32
  }
}

</mosaic_0001>

<llo_original>
// kernel: tpu_custom_call.1
$region0: #{tpu_custom_call.1}
  #allocation0 [shape = 'u32[]', space=smem, size = 0x4, offset = 0x4, fixed_abs, tag = 'smem constant byte address 0x4 - core index']
  #allocation1 [shape = 'u32[144,128]{1,0:T(1,128)}', space=vmem, size = 0x12000, scoped, tag = 'internal scratch']
  #allocation2 [shape = 'f32[8,1024]{1,0:T(8,128)}', space=vmem, size = 0x8000, scoped, tag = 'scratch operand']
  %s0 = inlined_call_operand.hbm [shape: f32[8,4096], index: 0, kind: input, shape index: {}]
  %s1 = inlined_call_operand.hbm [shape: f32[4096,1024], index: 1, kind: input, shape index: {}]
  %s2 = inlined_call_operand.hbm [shape: f32[1,1024], index: 2, kind: input, shape index: {}]
  %s3 = inlined_call_operand.hbm [shape: f32[1024,512], index: 3, kind: input, shape index: {}]
  %s4 = inlined_call_operand.hbm [shape: f32[1,512], index: 4, kind: input, shape index: {}]
  %s5 = inlined_call_operand.hbm [shape: f32[512,256], index: 5, kind: input, shape index: {}]
  %s6 = inlined_call_operand.hbm [shape: f32[1,256], index: 6, kind: input, shape index: {}]
  %s7 = inlined_call_operand.hbm [shape: f32[256,128], index: 7, kind: input, shape index: {}]
  %s8 = inlined_call_operand.hbm [shape: f32[1,128], index: 8, kind: input, shape index: {}]
  %s9 = inlined_call_operand.hbm [shape: f32[128,128], index: 9, kind: input, shape index: {}]
  %s10 = inlined_call_operand.hbm [shape: f32[1,128], index: 10, kind: input, shape index: {}]
  %s11 = inlined_call_operand.hbm [shape: f32[8,128], index: 11, kind: output, shape index: {}]
  %s12 = sld [smem:[#allocation0]]
  $region125: #{tpu_custom_call.1} parent=0
    _
  %s14 = ssub.s32 1, %s12
  %s15 = scalar_select 0, %s14, %s12
  $region1: #{tpu_custom_call.1} parent=0
    #allocation3 [shape = 'u8[131072]{0}', space=vmem, size = 0x20000, scoped, tag = 'input window, operand 0, single buffered']
    #allocation4 [shape = 's32[2]{0}', space=sflag, size = 0x8, scoped, tag = 'scoped memory for tpu_custom_call.1']
    #allocation5 [shape = 's32[2]{0}', space=sflag, size = 0x8, scoped, tag = 'scoped memory for tpu_custom_call.1']
    #allocation6 [shape = 'u8[8388608]{0}', space=vmem, size = 0x800000, scoped, tag = 'input window, operand 1']
    #allocation7 [shape = 's32[2]{0}', space=sflag, size = 0x8, scoped, tag = 'scoped memory for tpu_custom_call.1']
    #allocation8 [shape = 'u8[2048]{0}', space=vmem, size = 0x800, scoped, tag = 'input window, operand 2']
    #allocation9 [shape = 'u8[2097152]{0}', space=vmem, size = 0x200000, scoped, tag = 'input window, operand 3, single buffered']
    #allocation10 [shape = 's32[1]{0}', space=sflag, size = 0x4, scoped, tag = 'scoped memory for tpu_custom_call.1']
    #allocation11 [shape = 'u8[2048]{0}', space=vmem, size = 0x800, scoped, tag = 'input window, operand 4, single buffered']
    #allocation12 [shape = 'u8[524288]{0}', space=vmem, size = 0x80000, scoped, tag = 'input window, operand 5, single buffered']
    #allocation13 [shape = 's32[1]{0}', space=sflag, size = 0x4, scoped, tag = 'scoped memory for tpu_custom_call.1']
    #allocation14 [shape = 'u8[1024]{0}', space=vmem, size = 0x400, scoped, tag = 'input window, operand 6, single buffered']
    #allocation15 [shape = 'u8[131072]{0}', space=vmem, size = 0x20000, scoped, tag = 'input window, operand 7, single buffered']
    #allocation16 [shape = 's32[1]{0}', space=sflag, size = 0x4, scoped, tag = 'scoped memory for tpu_custom_call.1']
    #allocation17 [shape = 'u8[512]{0}', space=vmem, size = 0x400, scoped, tag = 'input window, operand 8, single buffered']
    #allocation18 [shape = 'u8[65536]{0}', space=vmem, size = 0x10000, scoped, tag = 'input window, operand 9, single buffered']
    #allocation19 [shape = 's32[1]{0}', space=sflag, size = 0x4, scoped, tag = 'scoped memory for tpu_custom_call.1']
    #allocation20 [shape = 'u8[512]{0}', space=vmem, size = 0x400, scoped, tag = 'input window, operand 10, single buffered']
    #allocation21 [shape = 'u8[4096]{0}', space=vmem, size = 0x1000, scoped, tag = 'output window, operand 0, single buffered']
    %16 = vsyncpa [#allocation4], 0
    %17 = vsyncpa [#allocation7], 0
    %s18 = scalar_lea.sflag [#allocation7], 1
    %19 = vsyncpa %s18, 0
    %20 = vsyncpa [#allocation10], 0
    %21 = vsyncpa [#allocation13], 0
    %22 = vsyncpa [#allocation16], 0
    %23 = vsyncpa [#allocation19], 0
    %24 = vsyncpa [#allocation5], 0
    loop: start=0, step=1, limit=6
    $region2: #{tpu_custom_call.1} parent=1 // loop_pre_header
      _
    $region3: #{tpu_custom_call.1} parent=1 // loop_header
      %s26 = sphi 0, %s30
      %p27 = scmp.ge.s32.totalorder %s26, 6
      %s34 = sphi 0, %s34
      %s36 = sphi 0, %s34
      %s37 = sphi 0, %s36
      %s51 = sphi 0, %s37
      %s57 = sphi 0, %s59
      %s60 = sphi 0, %s57
      %s61 = sphi 0, %s60
      %s77 = sphi 0, %s61
      %s83 = sphi 0, %s85
      %s86 = sphi 0, %s83
      %s87 = sphi 0, %s86
      %s103 = sphi 0, %s87
      %s107 = sphi 0, %s107
      %s109 = sphi 0, %s107
      %s110 = sphi 0, %s109
      %s124 = sphi 0, %s110
      %s128 = sphi 0, %s128
      %s130 = sphi 0, %s128
      %s131 = sphi 0, %s130
      %s145 = sphi 0, %s131
      %s149 = sphi 0, %s149
      %s151 = sphi 0, %s149
      %s152 = sphi 0, %s151
      %s166 = sphi 0, %s152
      %s170 = sphi 0, %s170
      %s172 = sphi 0, %s170
      %s173 = sphi 0, %s172
      %s187 = sphi 0, %s173
      %s191 = sphi 0, %s191
      %s193 = sphi 0, %s191
      %s194 = sphi 0, %s193
      %s208 = sphi 0, %s194
      %s212 = sphi 0, %s212
      %s214 = sphi 0, %s212
      %s215 = sphi 0, %s214
      %s229 = sphi 0, %s215
      %s233 = sphi 0, %s233
      %s235 = sphi 0, %s233
      %s236 = sphi 0, %s235
      %s250 = sphi 0, %s236
      %s254 = sphi 0, %s254
      %s256 = sphi 0, %s254
      %s257 = sphi 0, %s256
      %s271 = sphi 0, %s257
      %s275 = sphi 0, %s275
      %s277 = sphi 0, %s275
      %s278 = sphi 0, %s277
      %s292 = sphi 0, %s278
    $region4: #{tpu_custom_call.1} parent=1 // loop_header_branch
      %29 = sbr.rel (%p27) target = $region8
    $region5: #{tpu_custom_call.1} parent=1 // loop_body
      %s31 = ssub.s32 %s26, 1
      %s32 = ssub.s32 %s26, 2
      %s33 = sadd.s32 %s26, 1
      %s35 = sadd.s32 %s34, 1
      %p38 = scmp.eq.s32.totalorder %s26, 3
      %p39 = scmp.ne.s32.totalorder %s34, %s36
      %p40 = scmp.eq.s32.totalorder %s26, 0
      %p41 = por %p39, %p40
      %p42 = scmp.ne.s32.totalorder %s34, %s36
      %p43 = scmp.eq.s32.totalorder %s31, 3
      %p44 = por %p42, %p43
      %p45 = scmp.ne.s32.totalorder %s36, %s37
      %p46 = scmp.eq.s32.totalorder %s31, 0
      %p47 = por %p45, %p46
      %p48 = scmp.ne.s32.totalorder %s36, %s37
      %p49 = scmp.eq.s32.totalorder %s32, 3
      %p50 = por %p48, %p49
      %p52 = scmp.ne.s32.totalorder %s37, %s51
      %p53 = scmp.eq.s32.totalorder %s32, 0
      %p54 = por %p52, %p53
      %s55 = ssub.s32 %s26, %s33
      %p56 = scmp.eq.s32.totalorder %s55, 0
      %s58 = sadd.s32 %s57, 1
      %s59 = scalar_select %p56, %s57, %s58
      %p62 = pneg %p56
      %p63 = scmp.eq.s32.totalorder %s26, 3
      %p64 = por %p62, %p63
      %p65 = scmp.ne.s32.totalorder %s57, %s60
      %p66 = scmp.eq.s32.totalorder %s26, 0
      %p67 = por %p65, %p66
      %p68 = scmp.ne.s32.totalorder %s57, %s60
      %p69 = scmp.eq.s32.totalorder %s31, 3
      %p70 = por %p68, %p69
      %p71 = scmp.ne.s32.totalorder %s60, %s61
      %p72 = scmp.eq.s32.totalorder %s31, 0
      %p73 = por %p71, %p72
      %p74 = scmp.ne.s32.totalorder %s60, %s61
      %p75 = scmp.eq.s32.totalorder %s32, 3
      %p76 = por %p74, %p75
      %p78 = scmp.ne.s32.totalorder %s61, %s77
      %p79 = scmp.eq.s32.totalorder %s32, 0
      %p80 = por %p78, %p79
      %s81 = ssub.s32 %s26, %s33
      %p82 = scmp.eq.s32.totalorder %s81, 0
      %s84 = sadd.s32 %s83, 1
      %s85 = scalar_select %p82, %s83, %s84
      %p88 = pneg %p82
      %p89 = scmp.eq.s32.totalorder %s26, 3
      %p90 = por %p88, %p89
      %p91 = scmp.ne.s32.totalorder %s83, %s86
      %p92 = scmp.eq.s32.totalorder %s26, 0
      %p93 = por %p91, %p92
      %p94 = scmp.ne.s32.totalorder %s83, %s86
      %p95 = scmp.eq.s32.totalorder %s31, 3
      %p96 = por %p94, %p95
      %p97 = scmp.ne.s32.totalorder %s86, %s87
      %p98 = scmp.eq.s32.totalorder %s31, 0
      %p99 = por %p97, %p98
      %p100 = scmp.ne.s32.totalorder %s86, %s87
      %p101 = scmp.eq.s32.totalorder %s32, 3
      %p102 = por %p100, %p101
      %p104 = scmp.ne.s32.totalorder %s87, %s103
      %p105 = scmp.eq.s32.totalorder %s32, 0
      %p106 = por %p104, %p105
      %s108 = sadd.s32 %s107, 1
      %p111 = scmp.eq.s32.totalorder %s26, 3
      %p112 = scmp.ne.s32.totalorder %s107, %s109
      %p113 = scmp.eq.s32.totalorder %s26, 0
      %p114 = por %p112, %p113
      %p115 = scmp.ne.s32.totalorder %s107, %s109
      %p116 = scmp.eq.s32.totalorder %s31, 3
      %p117 = por %p115, %p116
      %p118 = scmp.ne.s32.totalorder %s109, %s110
      %p119 = scmp.eq.s32.totalorder %s31, 0
      %p120 = por %p118, %p119
      %p121 = scmp.ne.s32.totalorder %s109, %s110
      %p122 = scmp.eq.s32.totalorder %s32, 3
      %p123 = por %p121, %p122
      %p125 = scmp.ne.s32.totalorder %s110, %s124
      %p126 = scmp.eq.s32.totalorder %s32, 0
      %p127 = por %p125, %p126
      %s129 = sadd.s32 %s128, 1
      %p132 = scmp.eq.s32.totalorder %s26, 3
      %p133 = scmp.ne.s32.totalorder %s128, %s130
      %p134 = scmp.eq.s32.totalorder %s26, 0
      %p135 = por %p133, %p134
      %p136 = scmp.ne.s32.totalorder %s128, %s130
      %p137 = scmp.eq.s32.totalorder %s31, 3
      %p138 = por %p136, %p137
      %p139 = scmp.ne.s32.totalorder %s130, %s131
      %p140 = scmp.eq.s32.totalorder %s31, 0
      %p141 = por %p139, %p140
      %p142 = scmp.ne.s32.totalorder %s130, %s131
      %p143 = scmp.eq.s32.totalorder %s32, 3
      %p144 = por %p142, %p143
      %p146 = scmp.ne.s32.totalorder %s131, %s145
      %p147 = scmp.eq.s32.totalorder %s32, 0
      %p148 = por %p146, %p147
      %s150 = sadd.s32 %s149, 1
      %p153 = scmp.eq.s32.totalorder %s26, 3
      %p154 = scmp.ne.s32.totalorder %s149, %s151
      %p155 = scmp.eq.s32.totalorder %s26, 0
      %p156 = por %p154, %p155
      %p157 = scmp.ne.s32.totalorder %s149, %s151
      %p158 = scmp.eq.s32.totalorder %s31, 3
      %p159 = por %p157, %p158
      %p160 = scmp.ne.s32.totalorder %s151, %s152
      %p161 = scmp.eq.s32.totalorder %s31, 0
      %p162 = por %p160, %p161
      %p163 = scmp.ne.s32.totalorder %s151, %s152
      %p164 = scmp.eq.s32.totalorder %s32, 3
      %p165 = por %p163, %p164
      %p167 = scmp.ne.s32.totalorder %s152, %s166
      %p168 = scmp.eq.s32.totalorder %s32, 0
      %p169 = por %p167, %p168
      %s171 = sadd.s32 %s170, 1
      %p174 = scmp.eq.s32.totalorder %s26, 3
      %p175 = scmp.ne.s32.totalorder %s170, %s172
      %p176 = scmp.eq.s32.totalorder %s26, 0
      %p177 = por %p175, %p176
      %p178 = scmp.ne.s32.totalorder %s170, %s172
      %p179 = scmp.eq.s32.totalorder %s31, 3
      %p180 = por %p178, %p179
      %p181 = scmp.ne.s32.totalorder %s172, %s173
      %p182 = scmp.eq.s32.totalorder %s31, 0
      %p183 = por %p181, %p182
      %p184 = scmp.ne.s32.totalorder %s172, %s173
      %p185 = scmp.eq.s32.totalorder %s32, 3
      %p186 = por %p184, %p185
      %p188 = scmp.ne.s32.totalorder %s173, %s187
      %p189 = scmp.eq.s32.totalorder %s32, 0
      %p190 = por %p188, %p189
      %s192 = sadd.s32 %s191, 1
      %p195 = scmp.eq.s32.totalorder %s26, 3
      %p196 = scmp.ne.s32.totalorder %s191, %s193
      %p197 = scmp.eq.s32.totalorder %s26, 0
      %p198 = por %p196, %p197
      %p199 = scmp.ne.s32.totalorder %s191, %s193
      %p200 = scmp.eq.s32.totalorder %s31, 3
      %p201 = por %p199, %p200
      %p202 = scmp.ne.s32.totalorder %s193, %s194
      %p203 = scmp.eq.s32.totalorder %s31, 0
      %p204 = por %p202, %p203
      %p205 = scmp.ne.s32.totalorder %s193, %s194
      %p206 = scmp.eq.s32.totalorder %s32, 3
      %p207 = por %p205, %p206
      %p209 = scmp.ne.s32.totalorder %s194, %s208
      %p210 = scmp.eq.s32.totalorder %s32, 0
      %p211 = por %p209, %p210
      %s213 = sadd.s32 %s212, 1
      %p216 = scmp.eq.s32.totalorder %s26, 3
      %p217 = scmp.ne.s32.totalorder %s212, %s214
      %p218 = scmp.eq.s32.totalorder %s26, 0
      %p219 = por %p217, %p218
      %p220 = scmp.ne.s32.totalorder %s212, %s214
      %p221 = scmp.eq.s32.totalorder %s31, 3
      %p222 = por %p220, %p221
      %p223 = scmp.ne.s32.totalorder %s214, %s215
      %p224 = scmp.eq.s32.totalorder %s31, 0
      %p225 = por %p223, %p224
      %p226 = scmp.ne.s32.totalorder %s214, %s215
      %p227 = scmp.eq.s32.totalorder %s32, 3
      %p228 = por %p226, %p227
      %p230 = scmp.ne.s32.totalorder %s215, %s229
      %p231 = scmp.eq.s32.totalorder %s32, 0
      %p232 = por %p230, %p231
      %s234 = sadd.s32 %s233, 1
      %p237 = scmp.eq.s32.totalorder %s26, 3
      %p238 = scmp.ne.s32.totalorder %s233, %s235
      %p239 = scmp.eq.s32.totalorder %s26, 0
      %p240 = por %p238, %p239
      %p241 = scmp.ne.s32.totalorder %s233, %s235
      %p242 = scmp.eq.s32.totalorder %s31, 3
      %p243 = por %p241, %p242
      %p244 = scmp.ne.s32.totalorder %s235, %s236
      %p245 = scmp.eq.s32.totalorder %s31, 0
      %p246 = por %p244, %p245
      %p247 = scmp.ne.s32.totalorder %s235, %s236
      %p248 = scmp.eq.s32.totalorder %s32, 3
      %p249 = por %p247, %p248
      %p251 = scmp.ne.s32.totalorder %s236, %s250
      %p252 = scmp.eq.s32.totalorder %s32, 0
      %p253 = por %p251, %p252
      %s255 = sadd.s32 %s254, 1
      %p258 = scmp.eq.s32.totalorder %s26, 3
      %p259 = scmp.ne.s32.totalorder %s254, %s256
      %p260 = scmp.eq.s32.totalorder %s26, 0
      %p261 = por %p259, %p260
      %p262 = scmp.ne.s32.totalorder %s254, %s256
      %p263 = scmp.eq.s32.totalorder %s31, 3
      %p264 = por %p262, %p263
      %p265 = scmp.ne.s32.totalorder %s256, %s257
      %p266 = scmp.eq.s32.totalorder %s31, 0
      %p267 = por %p265, %p266
      %p268 = scmp.ne.s32.totalorder %s256, %s257
      %p269 = scmp.eq.s32.totalorder %s32, 3
      %p270 = por %p268, %p269
      %p272 = scmp.ne.s32.totalorder %s257, %s271
      %p273 = scmp.eq.s32.totalorder %s32, 0
      %p274 = por %p272, %p273
      %s276 = sadd.s32 %s275, 1
      %p279 = scmp.eq.s32.totalorder %s26, 3
      %p280 = scmp.ne.s32.totalorder %s275, %s277
      %p281 = scmp.eq.s32.totalorder %s26, 0
      %p282 = por %p280, %p281
      %p283 = scmp.ne.s32.totalorder %s275, %s277
      %p284 = scmp.eq.s32.totalorder %s31, 3
      %p285 = por %p283, %p284
      %p286 = scmp.ne.s32.totalorder %s277, %s278
      %p287 = scmp.eq.s32.totalorder %s31, 0
      %p288 = por %p286, %p287
      %p289 = scmp.ne.s32.totalorder %s277, %s278
      %p290 = scmp.eq.s32.totalorder %s32, 3
      %p291 = por %p289, %p290
      %p293 = scmp.ne.s32.totalorder %s278, %s292
      %p294 = scmp.eq.s32.totalorder %s32, 0
      %p295 = por %p293, %p294
      %p296 = scmp.le.s32.totalorder 1, %s26
      %p297 = scmp.lt.s32.totalorder %s26, 5
      %p298 = pnand %p296, %p297
      %p299 = pneg %p298
      // Predicated region
      $region9: #{tpu_custom_call.1} parent=5 // pred_check
        _
      $region10: #{tpu_custom_call.1} parent=5 // pred_check_branch
        %301 = sbr.rel (%p298) target = $region12
      $region11: #{tpu_custom_call.1} parent=5 // pred_region
        %s302 = ssub.s32 %s26, 1
        // Predicated region
        $region13: #{tpu_custom_call.1} parent=11 // pred_check
          %p303 = pneg %p47
        $region14: #{tpu_custom_call.1} parent=11 // pred_check_branch
          %305 = sbr.rel (%p303) target = $region16
        $region15: #{tpu_custom_call.1} parent=11 // pred_region
          %s307 = ssub.s32 4096, 4096
          %308 = vsyncadd [#allocation4], %s307
          %s310 = sshll.u32 [#allocation3], 4
          %s311 = int_to_ptr.vmem [resolvable:$true] %s310
          %313 = dma.hbm_to_vmem [thread:$0]  %s0, 4096, %s311, [#allocation4]
        $region16: #{tpu_custom_call.1} parent=11 // pred_fallthru
          _
        // Predicated region
        $region17: #{tpu_custom_call.1} parent=11 // pred_check
          %p314 = pneg %p120
        $region18: #{tpu_custom_call.1} parent=11 // pred_check_branch
          %316 = sbr.rel (%p314) target = $region20
        $region19: #{tpu_custom_call.1} parent=11 // pred_region
          %s318 = ssub.s32 65536, 65536
          %319 = vsyncadd [#allocation10], %s318
          %s320 = sshll.u32 [#allocation9], 4
          %s321 = int_to_ptr.vmem [resolvable:$true] %s320
          %326 = dma.hbm_to_vmem [thread:$0]  %s3, 65536, %s321, [#allocation10], 512, 512, 32
        $region20: #{tpu_custom_call.1} parent=11 // pred_fallthru
          _
        // Predicated region
        $region21: #{tpu_custom_call.1} parent=11 // pred_check
          %p327 = pneg %p141
        $region22: #{tpu_custom_call.1} parent=11 // pred_check_branch
          %329 = sbr.rel (%p327) target = $region24
        $region23: #{tpu_custom_call.1} parent=11 // pred_region
          %s331 = ssub.s32 64, 64
          %332 = vsyncadd [#allocation10], %s331
          %s334 = sshll.u32 [#allocation11], 4
          %s335 = int_to_ptr.vmem [resolvable:$true] %s334
          %337 = dma.hbm_to_vmem [thread:$0]  %s4, 64, %s335, [#allocation10]
        $region24: #{tpu_custom_call.1} parent=11 // pred_fallthru
          _
        // Predicated region
        $region25: #{tpu_custom_call.1} parent=11 // pred_check
          %p338 = pneg %p162
        $region26: #{tpu_custom_call.1} parent=11 // pred_check_branch
          %340 = sbr.rel (%p338) target = $region28
        $region27: #{tpu_custom_call.1} parent=11 // pred_region
          %s342 = ssub.s32 16384, 16384
          %343 = vsyncadd [#allocation13], %s342
          %s344 = sshll.u32 [#allocation12], 4
          %s345 = int_to_ptr.vmem [resolvable:$true] %s344
          %350 = dma.hbm_to_vmem [thread:$0]  %s5, 16384, %s345, [#allocation13], 256, 256, 16
        $region28: #{tpu_custom_call.1} parent=11 // pred_fallthru
          _
        // Predicated region
        $region29: #{tpu_custom_call.1} parent=11 // pred_check
          %p351 = pneg %p183
        $region30: #{tpu_custom_call.1} parent=11 // pred_check_branch
          %353 = sbr.rel (%p351) target = $region32
        $region31: #{tpu_custom_call.1} parent=11 // pred_region
          %s355 = ssub.s32 32, 32
          %356 = vsyncadd [#allocation13], %s355
          %s358 = sshll.u32 [#allocation14], 4
          %s359 = int_to_ptr.vmem [resolvable:$true] %s358
          %361 = dma.hbm_to_vmem [thread:$0]  %s6, 32, %s359, [#allocation13]
        $region32: #{tpu_custom_call.1} parent=11 // pred_fallthru
          _
        // Predicated region
        $region33: #{tpu_custom_call.1} parent=11 // pred_check
          %p362 = pneg %p204
        $region34: #{tpu_custom_call.1} parent=11 // pred_check_branch
          %364 = sbr.rel (%p362) target = $region36
        $region35: #{tpu_custom_call.1} parent=11 // pred_region
          %s366 = ssub.s32 4096, 4096
          %367 = vsyncadd [#allocation16], %s366
          %s368 = sshll.u32 [#allocation15], 4
          %s369 = int_to_ptr.vmem [resolvable:$true] %s368
          %374 = dma.hbm_to_vmem [thread:$0]  %s7, 4096, %s369, [#allocation16], 128, 128, 8
        $region36: #{tpu_custom_call.1} parent=11 // pred_fallthru
          _
        // Predicated region
        $region37: #{tpu_custom_call.1} parent=11 // pred_check
          %p375 = pneg %p225
        $region38: #{tpu_custom_call.1} parent=11 // pred_check_branch
          %377 = sbr.rel (%p375) target = $region40
        $region39: #{tpu_custom_call.1} parent=11 // pred_region
          %s379 = ssub.s32 16, 16
          %380 = vsyncadd [#allocation16], %s379
          %s382 = sshll.u32 [#allocation17], 4
          %s383 = int_to_ptr.vmem [resolvable:$true] %s382
          %385 = dma.hbm_to_vmem [thread:$0]  %s8, 16, %s383, [#allocation16]
        $region40: #{tpu_custom_call.1} parent=11 // pred_fallthru
          _
        // Predicated region
        $region41: #{tpu_custom_call.1} parent=11 // pred_check
          %p386 = pneg %p246
        $region42: #{tpu_custom_call.1} parent=11 // pred_check_branch
          %388 = sbr.rel (%p386) target = $region44
        $region43: #{tpu_custom_call.1} parent=11 // pred_region
          %s390 = ssub.s32 2048, 2048
          %391 = vsyncadd [#allocation19], %s390
          %s392 = sshll.u32 [#allocation18], 4
          %s393 = int_to_ptr.vmem [resolvable:$true] %s392
          %398 = dma.hbm_to_vmem [thread:$0]  %s9, 2048, %s393, [#allocation19], 128, 128, 8
        $region44: #{tpu_custom_call.1} parent=11 // pred_fallthru
          _
        // Predicated region
        $region45: #{tpu_custom_call.1} parent=11 // pred_check
          %p399 = pneg %p267
        $region46: #{tpu_custom_call.1} parent=11 // pred_check_branch
          %401 = sbr.rel (%p399) target = $region48
        $region47: #{tpu_custom_call.1} parent=11 // pred_region
          %s403 = ssub.s32 16, 16
          %404 = vsyncadd [#allocation19], %s403
          %s406 = sshll.u32 [#allocation20], 4
          %s407 = int_to_ptr.vmem [resolvable:$true] %s406
          %409 = dma.hbm_to_vmem [thread:$0]  %s10, 16, %s407, [#allocation19]
        $region48: #{tpu_custom_call.1} parent=11 // pred_fallthru
          _
      $region12: #{tpu_custom_call.1} parent=5 // pred_fallthru
        _
      %p410 = scmp.lt.s32.totalorder %s26, 4
      // Predicated region
      $region49: #{tpu_custom_call.1} parent=5 // pred_check
        %p411 = pneg %p410
      $region50: #{tpu_custom_call.1} parent=5 // pred_check_branch
        %413 = sbr.rel (%p411) target = $region52
      $region51: #{tpu_custom_call.1} parent=5 // pred_region
        // Predicated region
        $region53: #{tpu_custom_call.1} parent=51 // pred_check
          %p414 = pneg %p67
        $region54: #{tpu_custom_call.1} parent=51 // pred_check_branch
          %416 = sbr.rel (%p414) target = $region56
        $region55: #{tpu_custom_call.1} parent=51 // pred_region
          %s417 = sand.u32 %s26, 1
          %s418 = scalar_lea.sflag [#allocation7], %s417
          %s419 = sand.u32 %s57, 1
          %s420 = smul.addr %s419, 8192
          %s421 = scalar_lea.vmem [#allocation6], %s420
          %s422 = smul.u32 2, %s26
          %s424 = ssub.s32 131072, 131072
          %425 = vsyncadd %s418, %s424
          %s426 = smul.addr %s422, 128
          %s427 = scalar_lea.hbm %s1, %s426
          %s428 = sshll.u32 %s421, 4
          %s429 = int_to_ptr.vmem [resolvable:$true] %s428
          %434 = dma.hbm_to_vmem [thread:$0]  %s427, 131072, %s429, %s418, 1024, 256, 16
        $region56: #{tpu_custom_call.1} parent=51 // pred_fallthru
          _
        // Predicated region
        $region57: #{tpu_custom_call.1} parent=51 // pred_check
          %p435 = pneg %p93
        $region58: #{tpu_custom_call.1} parent=51 // pred_check_branch
          %437 = sbr.rel (%p435) target = $region60
        $region59: #{tpu_custom_call.1} parent=51 // pred_region
          %s438 = sand.u32 %s26, 1
          %s439 = scalar_lea.sflag [#allocation7], %s438
          %s440 = sand.u32 %s83, 1
          %s441 = smul.addr %s440, 2
          %s442 = scalar_lea.vmem [#allocation8], %s441
          %s443 = smul.u32 2, %s26
          %s445 = ssub.s32 32, 32
          %446 = vsyncadd %s439, %s445
          %s447 = smul.addr %s443, 16
          %s448 = scalar_lea.hbm %s2, %s447
          %s450 = sshll.u32 %s442, 4
          %s451 = int_to_ptr.vmem [resolvable:$true] %s450
          %453 = dma.hbm_to_vmem [thread:$0]  %s448, 32, %s451, %s439
        $region60: #{tpu_custom_call.1} parent=51 // pred_fallthru
          _
      $region52: #{tpu_custom_call.1} parent=5 // pred_fallthru
        _
      %p454 = scmp.le.s32.totalorder 1, %s26
      %p455 = scmp.lt.s32.totalorder %s26, 5
      %p456 = pnand %p454, %p455
      %p457 = pneg %p456
      // Predicated region
      $region61: #{tpu_custom_call.1} parent=5 // pred_check
        _
      $region62: #{tpu_custom_call.1} parent=5 // pred_check_branch
        %459 = sbr.rel (%p456) target = $region64
      $region63: #{tpu_custom_call.1} parent=5 // pred_region
        %s460 = ssub.s32 %s26, 1
        // Predicated region
        $region65: #{tpu_custom_call.1} parent=63 // pred_check
          %p461 = pneg %p47
        $region66: #{tpu_custom_call.1} parent=63 // pred_check_branch
          %463 = sbr.rel (%p461) target = $region68
        $region67: #{tpu_custom_call.1} parent=63 // pred_region
          %464 = dma.done [#allocation4], 4096
        $region68: #{tpu_custom_call.1} parent=63 // pred_fallthru
          _
        %s465 = sand.u32 %s31, 1
        %s466 = scalar_lea.sflag [#allocation7], %s465
        %s467 = sand.u32 %s60, 1
        %s468 = smul.addr %s467, 8192
        %s469 = scalar_lea.vmem [#allocation6], %s468
        // Predicated region
        $region69: #{tpu_custom_call.1} parent=63 // pred_check
          %p470 = pneg %p73
        $region70: #{tpu_custom_call.1} parent=63 // pred_check_branch
          %472 = sbr.rel (%p470) target = $region72
        $region71: #{tpu_custom_call.1} parent=63 // pred_region
          %473 = dma.done %s466, 131072
        $region72: #{tpu_custom_call.1} parent=63 // pred_fallthru
          _
        %s474 = sand.u32 %s31, 1
        %s475 = scalar_lea.sflag [#allocation7], %s474
        %s476 = sand.u32 %s86, 1
        %s477 = smul.addr %s476, 2
        %s478 = scalar_lea.vmem [#allocation8], %s477
        // Predicated region
        $region73: #{tpu_custom_call.1} parent=63 // pred_check
          %p479 = pneg %p99
        $region74: #{tpu_custom_call.1} parent=63 // pred_check_branch
          %481 = sbr.rel (%p479) target = $region76
        $region75: #{tpu_custom_call.1} parent=63 // pred_region
          %482 = dma.done %s475, 32
        $region76: #{tpu_custom_call.1} parent=63 // pred_fallthru
          _
        // Predicated region
        $region77: #{tpu_custom_call.1} parent=63 // pred_check
          %p483 = pneg %p120
        $region78: #{tpu_custom_call.1} parent=63 // pred_check_branch
          %485 = sbr.rel (%p483) target = $region80
        $region79: #{tpu_custom_call.1} parent=63 // pred_region
          %486 = dma.done [#allocation10], 65536
        $region80: #{tpu_custom_call.1} parent=63 // pred_fallthru
          _
        // Predicated region
        $region81: #{tpu_custom_call.1} parent=63 // pred_check
          %p487 = pneg %p141
        $region82: #{tpu_custom_call.1} parent=63 // pred_check_branch
          %489 = sbr.rel (%p487) target = $region84
        $region83: #{tpu_custom_call.1} parent=63 // pred_region
          %490 = dma.done [#allocation10], 64
        $region84: #{tpu_custom_call.1} parent=63 // pred_fallthru
          _
        // Predicated region
        $region85: #{tpu_custom_call.1} parent=63 // pred_check
          %p491 = pneg %p162
        $region86: #{tpu_custom_call.1} parent=63 // pred_check_branch
          %493 = sbr.rel (%p491) target = $region88
        $region87: #{tpu_custom_call.1} parent=63 // pred_region
          %494 = dma.done [#allocation13], 16384
        $region88: #{tpu_custom_call.1} parent=63 // pred_fallthru
          _
        // Predicated region
        $region89: #{tpu_custom_call.1} parent=63 // pred_check
          %p495 = pneg %p183
        $region90: #{tpu_custom_call.1} parent=63 // pred_check_branch
          %497 = sbr.rel (%p495) target = $region92
        $region91: #{tpu_custom_call.1} parent=63 // pred_region
          %498 = dma.done [#allocation13], 32
        $region92: #{tpu_custom_call.1} parent=63 // pred_fallthru
          _
        // Predicated region
        $region93: #{tpu_custom_call.1} parent=63 // pred_check
          %p499 = pneg %p204
        $region94: #{tpu_custom_call.1} parent=63 // pred_check_branch
          %501 = sbr.rel (%p499) target = $region96
        $region95: #{tpu_custom_call.1} parent=63 // pred_region
          %502 = dma.done [#allocation16], 4096
        $region96: #{tpu_custom_call.1} parent=63 // pred_fallthru
          _
        // Predicated region
        $region97: #{tpu_custom_call.1} parent=63 // pred_check
          %p503 = pneg %p225
        $region98: #{tpu_custom_call.1} parent=63 // pred_check_branch
          %505 = sbr.rel (%p503) target = $region100
        $region99: #{tpu_custom_call.1} parent=63 // pred_region
          %506 = dma.done [#allocation16], 16
        $region100: #{tpu_custom_call.1} parent=63 // pred_fallthru
          _
        // Predicated region
        $region101: #{tpu_custom_call.1} parent=63 // pred_check
          %p507 = pneg %p246
        $region102: #{tpu_custom_call.1} parent=63 // pred_check_branch
          %509 = sbr.rel (%p507) target = $region104
        $region103: #{tpu_custom_call.1} parent=63 // pred_region
          %510 = dma.done [#allocation19], 2048
        $region104: #{tpu_custom_call.1} parent=63 // pred_fallthru
          _
        // Predicated region
        $region105: #{tpu_custom_call.1} parent=63 // pred_check
          %p511 = pneg %p267
        $region106: #{tpu_custom_call.1} parent=63 // pred_check_branch
          %513 = sbr.rel (%p511) target = $region108
        $region107: #{tpu_custom_call.1} parent=63 // pred_region
          %514 = dma.done [#allocation19], 16
        $region108: #{tpu_custom_call.1} parent=63 // pred_fallthru
          _
        %p515 = pneg %p47
        %p516 = pneg %p44
        %s517 = sand.u32 %s31, 1
        %s518 = scalar_lea.sflag [#allocation7], %s517
        %s519 = sand.u32 %s60, 1
        %s520 = smul.addr %s519, 8192
        %s521 = scalar_lea.vmem [#allocation6], %s520
        %p522 = pneg %p73
        %p523 = pneg %p70
        %s524 = sand.u32 %s31, 1
        %s525 = scalar_lea.sflag [#allocation7], %s524
        %s526 = sand.u32 %s86, 1
        %s527 = smul.addr %s526, 2
        %s528 = scalar_lea.vmem [#allocation8], %s527
        %p529 = pneg %p99
        %p530 = pneg %p96
        %p531 = pneg %p120
        %p532 = pneg %p117
        %p533 = pneg %p141
        %p534 = pneg %p138
        %p535 = pneg %p162
        %p536 = pneg %p159
        %p537 = pneg %p183
        %p538 = pneg %p180
        %p539 = pneg %p204
        %p540 = pneg %p201
        %p541 = pneg %p225
        %p542 = pneg %p222
        %p543 = pneg %p246
        %p544 = pneg %p243
        %p545 = pneg %p267
        %p546 = pneg %p264
        %p547 = pneg %p288
        %p548 = pneg %p285
        %s549 = smul.u32 2, %s31
        %s550 = smul.u32 2, %s31
        %v551 = vld [vmem:[#allocation3] sm:$0xff]
        %v552 = vld [vmem:[#allocation3 + $0x8] sm:$0xff]
        %v553 = vld [vmem:[#allocation3 + $0x10] sm:$0xff]
        %v554 = vld [vmem:[#allocation3 + $0x18] sm:$0xff]
        %v555 = vld [vmem:[#allocation3 + $0x20] sm:$0xff]
        %v556 = vld [vmem:[#allocation3 + $0x28] sm:$0xff]
        %v557 = vld [vmem:[#allocation3 + $0x30] sm:$0xff]
        %v558 = vld [vmem:[#allocation3 + $0x38] sm:$0xff]
        %v559 = vld [vmem:[#allocation3 + $0x40] sm:$0xff]
        %v560 = vld [vmem:[#allocation3 + $0x48] sm:$0xff]
        %v561 = vld [vmem:[#allocation3 + $0x50] sm:$0xff]
        %v562 = vld [vmem:[#allocation3 + $0x58] sm:$0xff]
        %v563 = vld [vmem:[#allocation3 + $0x60] sm:$0xff]
        %v564 = vld [vmem:[#allocation3 + $0x68] sm:$0xff]
        %v565 = vld [vmem:[#allocation3 + $0x70] sm:$0xff]
        %v566 = vld [vmem:[#allocation3 + $0x78] sm:$0xff]
        %v567 = vld [vmem:[#allocation3 + $0x80] sm:$0xff]
        %v568 = vld [vmem:[#allocation3 + $0x88] sm:$0xff]
        %v569 = vld [vmem:[#allocation3 + $0x90] sm:$0xff]
        %v570 = vld [vmem:[#allocation3 + $0x98] sm:$0xff]
        %v571 = vld [vmem:[#allocation3 + $0xa0] sm:$0xff]
        %v572 = vld [vmem:[#allocation3 + $0xa8] sm:$0xff]
        %v573 = vld [vmem:[#allocation3 + $0xb0] sm:$0xff]
        %v574 = vld [vmem:[#allocation3 + $0xb8] sm:$0xff]
        %v575 = vld [vmem:[#allocation3 + $0xc0] sm:$0xff]
        %v576 = vld [vmem:[#allocation3 + $0xc8] sm:$0xff]
        %v577 = vld [vmem:[#allocation3 + $0xd0] sm:$0xff]
        %v578 = vld [vmem:[#allocation3 + $0xd8] sm:$0xff]
        %v579 = vld [vmem:[#allocation3 + $0xe0] sm:$0xff]
        %v580 = vld [vmem:[#allocation3 + $0xe8] sm:$0xff]
        %v581 = vld [vmem:[#allocation3 + $0xf0] sm:$0xff]
        %v582 = vld [vmem:[#allocation3 + $0xf8] sm:$0xff]
        %v583 = vld [vmem:[%s469] sm:$0xff]
        %v584 = vld [vmem:[%s469 + $0x8] sm:$0xff]
        %v585 = vld [vmem:[%s469 + $0x10] sm:$0xff]
        %v586 = vld [vmem:[%s469 + $0x18] sm:$0xff]
        %v587 = vld [vmem:[%s469 + $0x20] sm:$0xff]
        %v588 = vld [vmem:[%s469 + $0x28] sm:$0xff]
        %v589 = vld [vmem:[%s469 + $0x30] sm:$0xff]
        %v590 = vld [vmem:[%s469 + $0x38] sm:$0xff]
        %v591 = vld [vmem:[%s469 + $0x40] sm:$0xff]
        %v592 = vld [vmem:[%s469 + $0x48] sm:$0xff]
        %v593 = vld [vmem:[%s469 + $0x50] sm:$0xff]
        %v594 = vld [vmem:[%s469 + $0x58] sm:$0xff]
        %v595 = vld [vmem:[%s469 + $0x60] sm:$0xff]
        %v596 = vld [vmem:[%s469 + $0x68] sm:$0xff]
        %v597 = vld [vmem:[%s469 + $0x70] sm:$0xff]
        %v598 = vld [vmem:[%s469 + $0x78] sm:$0xff]
        %v599 = vld [vmem:[%s469 + $0x80] sm:$0xff]
        %v600 = vld [vmem:[%s469 + $0x88] sm:$0xff]
        %v601 = vld [vmem:[%s469 + $0x90] sm:$0xff]
        %v602 = vld [vmem:[%s469 + $0x98] sm:$0xff]
        %v603 = vld [vmem:[%s469 + $0xa0] sm:$0xff]
        %v604 = vld [vmem:[%s469 + $0xa8] sm:$0xff]
        %v605 = vld [vmem:[%s469 + $0xb0] sm:$0xff]
        %v606 = vld [vmem:[%s469 + $0xb8] sm:$0xff]
        %v607 = vld [vmem:[%s469 + $0xc0] sm:$0xff]
        %v608 = vld [vmem:[%s469 + $0xc8] sm:$0xff]
        %v609 = vld [vmem:[%s469 + $0xd0] sm:$0xff]
        %v610 = vld [vmem:[%s469 + $0xd8] sm:$0xff]
        %v611 = vld [vmem:[%s469 + $0xe0] sm:$0xff]
        %v612 = vld [vmem:[%s469 + $0xe8] sm:$0xff]
        %v613 = vld [vmem:[%s469 + $0xf0] sm:$0xff]
        %v614 = vld [vmem:[%s469 + $0xf8] sm:$0xff]
        %v615 = vld [vmem:[%s469 + $0x100] sm:$0xff]
        %v616 = vld [vmem:[%s469 + $0x108] sm:$0xff]
        %v617 = vld [vmem:[%s469 + $0x110] sm:$0xff]
        %v618 = vld [vmem:[%s469 + $0x118] sm:$0xff]
        %v619 = vld [vmem:[%s469 + $0x120] sm:$0xff]
        %v620 = vld [vmem:[%s469 + $0x128] sm:$0xff]
        %v621 = vld [vmem:[%s469 + $0x130] sm:$0xff]
        %v622 = vld [vmem:[%s469 + $0x138] sm:$0xff]
        %v623 = vld [vmem:[%s469 + $0x140] sm:$0xff]
        %v624 = vld [vmem:[%s469 + $0x148] sm:$0xff]
        %v625 = vld [vmem:[%s469 + $0x150] sm:$0xff]
        %v626 = vld [vmem:[%s469 + $0x158] sm:$0xff]
        %v627 = vld [vmem:[%s469 + $0x160] sm:$0xff]
        %v628 = vld [vmem:[%s469 + $0x168] sm:$0xff]
        %v629 = vld [vmem:[%s469 + $0x170] sm:$0xff]
        %v630 = vld [vmem:[%s469 + $0x178] sm:$0xff]
        %v631 = vld [vmem:[%s469 + $0x180] sm:$0xff]
        %v632 = vld [vmem:[%s469 + $0x188] sm:$0xff]
        %v633 = vld [vmem:[%s469 + $0x190] sm:$0xff]
        %v634 = vld [vmem:[%s469 + $0x198] sm:$0xff]
        %v635 = vld [vmem:[%s469 + $0x1a0] sm:$0xff]
        %v636 = vld [vmem:[%s469 + $0x1a8] sm:$0xff]
        %v637 = vld [vmem:[%s469 + $0x1b0] sm:$0xff]
        %v638 = vld [vmem:[%s469 + $0x1b8] sm:$0xff]
        %v639 = vld [vmem:[%s469 + $0x1c0] sm:$0xff]
        %v640 = vld [vmem:[%s469 + $0x1c8] sm:$0xff]
        %v641 = vld [vmem:[%s469 + $0x1d0] sm:$0xff]
        %v642 = vld [vmem:[%s469 + $0x1d8] sm:$0xff]
        %v643 = vld [vmem:[%s469 + $0x1e0] sm:$0xff]
        %v644 = vld [vmem:[%s469 + $0x1e8] sm:$0xff]
        %v645 = vld [vmem:[%s469 + $0x1f0] sm:$0xff]
        %v646 = vld [vmem:[%s469 + $0x1f8] sm:$0xff]
        %v647 = vld [vmem:[%s469 + $0x200] sm:$0xff]
        %v648 = vld [vmem:[%s469 + $0x208] sm:$0xff]
        %v649 = vld [vmem:[%s469 + $0x210] sm:$0xff]
        %v650 = vld [vmem:[%s469 + $0x218] sm:$0xff]
        %v651 = vld [vmem:[%s469 + $0x220] sm:$0xff]
        %v652 = vld [vmem:[%s469 + $0x228] sm:$0xff]
        %v653 = vld [vmem:[%s469 + $0x230] sm:$0xff]
        %v654 = vld [vmem:[%s469 + $0x238] sm:$0xff]
        %v655 = vld [vmem:[%s469 + $0x240] sm:$0xff]
        %v656 = vld [vmem:[%s469 + $0x248] sm:$0xff]
        %v657 = vld [vmem:[%s469 + $0x250] sm:$0xff]
        %v658 = vld [vmem:[%s469 + $0x258] sm:$0xff]
        %v659 = vld [vmem:[%s469 + $0x260] sm:$0xff]
        %v660 = vld [vmem:[%s469 + $0x268] sm:$0xff]
        %v661 = vld [vmem:[%s469 + $0x270] sm:$0xff]
        %v662 = vld [vmem:[%s469 + $0x278] sm:$0xff]
        %v663 = vld [vmem:[%s469 + $0x280] sm:$0xff]
        %v664 = vld [vmem:[%s469 + $0x288] sm:$0xff]
        %v665 = vld [vmem:[%s469 + $0x290] sm:$0xff]
        %v666 = vld [vmem:[%s469 + $0x298] sm:$0xff]
        %v667 = vld [vmem:[%s469 + $0x2a0] sm:$0xff]
        %v668 = vld [vmem:[%s469 + $0x2a8] sm:$0xff]
        %v669 = vld [vmem:[%s469 + $0x2b0] sm:$0xff]
        %v670 = vld [vmem:[%s469 + $0x2b8] sm:$0xff]
        %v671 = vld [vmem:[%s469 + $0x2c0] sm:$0xff]
        %v672 = vld [vmem:[%s469 + $0x2c8] sm:$0xff]
        %v673 = vld [vmem:[%s469 + $0x2d0] sm:$0xff]
        %v674 = vld [vmem:[%s469 + $0x2d8] sm:$0xff]
        %v675 = vld [vmem:[%s469 + $0x2e0] sm:$0xff]
        %v676 = vld [vmem:[%s469 + $0x2e8] sm:$0xff]
        %v677 = vld [vmem:[%s469 + $0x2f0] sm:$0xff]
        %v678 = vld [vmem:[%s469 + $0x2f8] sm:$0xff]
        %v679 = vld [vmem:[%s469 + $0x300] sm:$0xff]
        %v680 = vld [vmem:[%s469 + $0x308] sm:$0xff]
        %v681 = vld [vmem:[%s469 + $0x310] sm:$0xff]
        %v682 = vld [vmem:[%s469 + $0x318] sm:$0xff]
        %v683 = vld [vmem:[%s469 + $0x320] sm:$0xff]
        %v684 = vld [vmem:[%s469 + $0x328] sm:$0xff]
        %v685 = vld [vmem:[%s469 + $0x330] sm:$0xff]
        %v686 = vld [vmem:[%s469 + $0x338] sm:$0xff]
        %v687 = vld [vmem:[%s469 + $0x340] sm:$0xff]
        %v688 = vld [vmem:[%s469 + $0x348] sm:$0xff]
        %v689 = vld [vmem:[%s469 + $0x350] sm:$0xff]
        %v690 = vld [vmem:[%s469 + $0x358] sm:$0xff]
        %v691 = vld [vmem:[%s469 + $0x360] sm:$0xff]
        %v692 = vld [vmem:[%s469 + $0x368] sm:$0xff]
        %v693 = vld [vmem:[%s469 + $0x370] sm:$0xff]
        %v694 = vld [vmem:[%s469 + $0x378] sm:$0xff]
        %v695 = vld [vmem:[%s469 + $0x380] sm:$0xff]
        %v696 = vld [vmem:[%s469 + $0x388] sm:$0xff]
        %v697 = vld [vmem:[%s469 + $0x390] sm:$0xff]
        %v698 = vld [vmem:[%s469 + $0x398] sm:$0xff]
        %v699 = vld [vmem:[%s469 + $0x3a0] sm:$0xff]
        %v700 = vld [vmem:[%s469 + $0x3a8] sm:$0xff]
        %v701 = vld [vmem:[%s469 + $0x3b0] sm:$0xff]
        %v702 = vld [vmem:[%s469 + $0x3b8] sm:$0xff]
        %v703 = vld [vmem:[%s469 + $0x3c0] sm:$0xff]
        %v704 = vld [vmem:[%s469 + $0x3c8] sm:$0xff]
        %v705 = vld [vmem:[%s469 + $0x3d0] sm:$0xff]
        %v706 = vld [vmem:[%s469 + $0x3d8] sm:$0xff]
        %v707 = vld [vmem:[%s469 + $0x3e0] sm:$0xff]
        %v708 = vld [vmem:[%s469 + $0x3e8] sm:$0xff]
        %v709 = vld [vmem:[%s469 + $0x3f0] sm:$0xff]
        %v710 = vld [vmem:[%s469 + $0x3f8] sm:$0xff]
        %v711 = vld [vmem:[%s469 + $0x400] sm:$0xff]
        %v712 = vld [vmem:[%s469 + $0x408] sm:$0xff]
        %v713 = vld [vmem:[%s469 + $0x410] sm:$0xff]
        %v714 = vld [vmem:[%s469 + $0x418] sm:$0xff]
        %v715 = vld [vmem:[%s469 + $0x420] sm:$0xff]
        %v716 = vld [vmem:[%s469 + $0x428] sm:$0xff]
        %v717 = vld [vmem:[%s469 + $0x430] sm:$0xff]
        %v718 = vld [vmem:[%s469 + $0x438] sm:$0xff]
        %v719 = vld [vmem:[%s469 + $0x440] sm:$0xff]
        %v720 = vld [vmem:[%s469 + $0x448] sm:$0xff]
        %v721 = vld [vmem:[%s469 + $0x450] sm:$0xff]
        %v722 = vld [vmem:[%s469 + $0x458] sm:$0xff]
        %v723 = vld [vmem:[%s469 + $0x460] sm:$0xff]
        %v724 = vld [vmem:[%s469 + $0x468] sm:$0xff]
        %v725 = vld [vmem:[%s469 + $0x470] sm:$0xff]
        %v726 = vld [vmem:[%s469 + $0x478] sm:$0xff]
        %v727 = vld [vmem:[%s469 + $0x480] sm:$0xff]
        %v728 = vld [vmem:[%s469 + $0x488] sm:$0xff]
        %v729 = vld [vmem:[%s469 + $0x490] sm:$0xff]
        %v730 = vld [vmem:[%s469 + $0x498] sm:$0xff]
        %v731 = vld [vmem:[%s469 + $0x4a0] sm:$0xff]
        %v732 = vld [vmem:[%s469 + $0x4a8] sm:$0xff]
        %v733 = vld [vmem:[%s469 + $0x4b0] sm:$0xff]
        %v734 = vld [vmem:[%s469 + $0x4b8] sm:$0xff]
        %v735 = vld [vmem:[%s469 + $0x4c0] sm:$0xff]
        %v736 = vld [vmem:[%s469 + $0x4c8] sm:$0xff]
        %v737 = vld [vmem:[%s469 + $0x4d0] sm:$0xff]
        %v738 = vld [vmem:[%s469 + $0x4d8] sm:$0xff]
        %v739 = vld [vmem:[%s469 + $0x4e0] sm:$0xff]
        %v740 = vld [vmem:[%s469 + $0x4e8] sm:$0xff]
        %v741 = vld [vmem:[%s469 + $0x4f0] sm:$0xff]
        %v742 = vld [vmem:[%s469 + $0x4f8] sm:$0xff]
        %v743 = vld [vmem:[%s469 + $0x500] sm:$0xff]
        %v744 = vld [vmem:[%s469 + $0x508] sm:$0xff]
        %v745 = vld [vmem:[%s469 + $0x510] sm:$0xff]
        %v746 = vld [vmem:[%s469 + $0x518] sm:$0xff]
        %v747 = vld [vmem:[%s469 + $0x520] sm:$0xff]
        %v748 = vld [vmem:[%s469 + $0x528] sm:$0xff]
        %v749 = vld [vmem:[%s469 + $0x530] sm:$0xff]
        %v750 = vld [vmem:[%s469 + $0x538] sm:$0xff]
        %v751 = vld [vmem:[%s469 + $0x540] sm:$0xff]
        %v752 = vld [vmem:[%s469 + $0x548] sm:$0xff]
        %v753 = vld [vmem:[%s469 + $0x550] sm:$0xff]
        %v754 = vld [vmem:[%s469 + $0x558] sm:$0xff]
        %v755 = vld [vmem:[%s469 + $0x560] sm:$0xff]
        %v756 = vld [vmem:[%s469 + $0x568] sm:$0xff]
        %v757 = vld [vmem:[%s469 + $0x570] sm:$0xff]
        %v758 = vld [vmem:[%s469 + $0x578] sm:$0xff]
        %v759 = vld [vmem:[%s469 + $0x580] sm:$0xff]
        %v760 = vld [vmem:[%s469 + $0x588] sm:$0xff]
        %v761 = vld [vmem:[%s469 + $0x590] sm:$0xff]
        %v762 = vld [vmem:[%s469 + $0x598] sm:$0xff]
        %v763 = vld [vmem:[%s469 + $0x5a0] sm:$0xff]
        %v764 = vld [vmem:[%s469 + $0x5a8] sm:$0xff]
        %v765 = vld [vmem:[%s469 + $0x5b0] sm:$0xff]
        %v766 = vld [vmem:[%s469 + $0x5b8] sm:$0xff]
        %v767 = vld [vmem:[%s469 + $0x5c0] sm:$0xff]
        %v768 = vld [vmem:[%s469 + $0x5c8] sm:$0xff]
        %v769 = vld [vmem:[%s469 + $0x5d0] sm:$0xff]
        %v770 = vld [vmem:[%s469 + $0x5d8] sm:$0xff]
        %v771 = vld [vmem:[%s469 + $0x5e0] sm:$0xff]
        %v772 = vld [vmem:[%s469 + $0x5e8] sm:$0xff]
        %v773 = vld [vmem:[%s469 + $0x5f0] sm:$0xff]
        %v774 = vld [vmem:[%s469 + $0x5f8] sm:$0xff]
        %v775 = vld [vmem:[%s469 + $0x600] sm:$0xff]
        %v776 = vld [vmem:[%s469 + $0x608] sm:$0xff]
        %v777 = vld [vmem:[%s469 + $0x610] sm:$0xff]
        %v778 = vld [vmem:[%s469 + $0x618] sm:$0xff]
        %v779 = vld [vmem:[%s469 + $0x620] sm:$0xff]
        %v780 = vld [vmem:[%s469 + $0x628] sm:$0xff]
        %v781 = vld [vmem:[%s469 + $0x630] sm:$0xff]
        %v782 = vld [vmem:[%s469 + $0x638] sm:$0xff]
        %v783 = vld [vmem:[%s469 + $0x640] sm:$0xff]
        %v784 = vld [vmem:[%s469 + $0x648] sm:$0xff]
        %v785 = vld [vmem:[%s469 + $0x650] sm:$0xff]
        %v786 = vld [vmem:[%s469 + $0x658] sm:$0xff]
        %v787 = vld [vmem:[%s469 + $0x660] sm:$0xff]
        %v788 = vld [vmem:[%s469 + $0x668] sm:$0xff]
        %v789 = vld [vmem:[%s469 + $0x670] sm:$0xff]
        %v790 = vld [vmem:[%s469 + $0x678] sm:$0xff]
        %v791 = vld [vmem:[%s469 + $0x680] sm:$0xff]
        %v792 = vld [vmem:[%s469 + $0x688] sm:$0xff]
        %v793 = vld [vmem:[%s469 + $0x690] sm:$0xff]
        %v794 = vld [vmem:[%s469 + $0x698] sm:$0xff]
        %v795 = vld [vmem:[%s469 + $0x6a0] sm:$0xff]
        %v796 = vld [vmem:[%s469 + $0x6a8] sm:$0xff]
        %v797 = vld [vmem:[%s469 + $0x6b0] sm:$0xff]
        %v798 = vld [vmem:[%s469 + $0x6b8] sm:$0xff]
        %v799 = vld [vmem:[%s469 + $0x6c0] sm:$0xff]
        %v800 = vld [vmem:[%s469 + $0x6c8] sm:$0xff]
        %v801 = vld [vmem:[%s469 + $0x6d0] sm:$0xff]
        %v802 = vld [vmem:[%s469 + $0x6d8] sm:$0xff]
        %v803 = vld [vmem:[%s469 + $0x6e0] sm:$0xff]
        %v804 = vld [vmem:[%s469 + $0x6e8] sm:$0xff]
        %v805 = vld [vmem:[%s469 + $0x6f0] sm:$0xff]
        %v806 = vld [vmem:[%s469 + $0x6f8] sm:$0xff]
        %v807 = vld [vmem:[%s469 + $0x700] sm:$0xff]
        %v808 = vld [vmem:[%s469 + $0x708] sm:$0xff]
        %v809 = vld [vmem:[%s469 + $0x710] sm:$0xff]
        %v810 = vld [vmem:[%s469 + $0x718] sm:$0xff]
        %v811 = vld [vmem:[%s469 + $0x720] sm:$0xff]
        %v812 = vld [vmem:[%s469 + $0x728] sm:$0xff]
        %v813 = vld [vmem:[%s469 + $0x730] sm:$0xff]
        %v814 = vld [vmem:[%s469 + $0x738] sm:$0xff]
        %v815 = vld [vmem:[%s469 + $0x740] sm:$0xff]
        %v816 = vld [vmem:[%s469 + $0x748] sm:$0xff]
        %v817 = vld [vmem:[%s469 + $0x750] sm:$0xff]
        %v818 = vld [vmem:[%s469 + $0x758] sm:$0xff]
        %v819 = vld [vmem:[%s469 + $0x760] sm:$0xff]
        %v820 = vld [vmem:[%s469 + $0x768] sm:$0xff]
        %v821 = vld [vmem:[%s469 + $0x770] sm:$0xff]
        %v822 = vld [vmem:[%s469 + $0x778] sm:$0xff]
        %v823 = vld [vmem:[%s469 + $0x780] sm:$0xff]
        %v824 = vld [vmem:[%s469 + $0x788] sm:$0xff]
        %v825 = vld [vmem:[%s469 + $0x790] sm:$0xff]
        %v826 = vld [vmem:[%s469 + $0x798] sm:$0xff]
        %v827 = vld [vmem:[%s469 + $0x7a0] sm:$0xff]
        %v828 = vld [vmem:[%s469 + $0x7a8] sm:$0xff]
        %v829 = vld [vmem:[%s469 + $0x7b0] sm:$0xff]
        %v830 = vld [vmem:[%s469 + $0x7b8] sm:$0xff]
        %v831 = vld [vmem:[%s469 + $0x7c0] sm:$0xff]
        %v832 = vld [vmem:[%s469 + $0x7c8] sm:$0xff]
        %v833 = vld [vmem:[%s469 + $0x7d0] sm:$0xff]
        %v834 = vld [vmem:[%s469 + $0x7d8] sm:$0xff]
        %v835 = vld [vmem:[%s469 + $0x7e0] sm:$0xff]
        %v836 = vld [vmem:[%s469 + $0x7e8] sm:$0xff]
        %v837 = vld [vmem:[%s469 + $0x7f0] sm:$0xff]
        %v838 = vld [vmem:[%s469 + $0x7f8] sm:$0xff]
        %v839 = vld [vmem:[%s469 + $0x800] sm:$0xff]
        %v840 = vld [vmem:[%s469 + $0x808] sm:$0xff]
        %v841 = vld [vmem:[%s469 + $0x810] sm:$0xff]
        %v842 = vld [vmem:[%s469 + $0x818] sm:$0xff]
        %v843 = vld [vmem:[%s469 + $0x820] sm:$0xff]
        %v844 = vld [vmem:[%s469 + $0x828] sm:$0xff]
        %v845 = vld [vmem:[%s469 + $0x830] sm:$0xff]
        %v846 = vld [vmem:[%s469 + $0x838] sm:$0xff]
        %v847 = vld [vmem:[%s469 + $0x840] sm:$0xff]
        %v848 = vld [vmem:[%s469 + $0x848] sm:$0xff]
        %v849 = vld [vmem:[%s469 + $0x850] sm:$0xff]
        %v850 = vld [vmem:[%s469 + $0x858] sm:$0xff]
        %v851 = vld [vmem:[%s469 + $0x860] sm:$0xff]
        %v852 = vld [vmem:[%s469 + $0x868] sm:$0xff]
        %v853 = vld [vmem:[%s469 + $0x870] sm:$0xff]
        %v854 = vld [vmem:[%s469 + $0x878] sm:$0xff]
        %v855 = vld [vmem:[%s469 + $0x880] sm:$0xff]
        %v856 = vld [vmem:[%s469 + $0x888] sm:$0xff]
        %v857 = vld [vmem:[%s469 + $0x890] sm:$0xff]
        %v858 = vld [vmem:[%s469 + $0x898] sm:$0xff]
        %v859 = vld [vmem:[%s469 + $0x8a0] sm:$0xff]
        %v860 = vld [vmem:[%s469 + $0x8a8] sm:$0xff]
        %v861 = vld [vmem:[%s469 + $0x8b0] sm:$0xff]
        %v862 = vld [vmem:[%s469 + $0x8b8] sm:$0xff]
        %v863 = vld [vmem:[%s469 + $0x8c0] sm:$0xff]
        %v864 = vld [vmem:[%s469 + $0x8c8] sm:$0xff]
        %v865 = vld [vmem:[%s469 + $0x8d0] sm:$0xff]
        %v866 = vld [vmem:[%s469 + $0x8d8] sm:$0xff]
        %v867 = vld [vmem:[%s469 + $0x8e0] sm:$0xff]
        %v868 = vld [vmem:[%s469 + $0x8e8] sm:$0xff]
        %v869 = vld [vmem:[%s469 + $0x8f0] sm:$0xff]
        %v870 = vld [vmem:[%s469 + $0x8f8] sm:$0xff]
        %v871 = vld [vmem:[%s469 + $0x900] sm:$0xff]
        %v872 = vld [vmem:[%s469 + $0x908] sm:$0xff]
        %v873 = vld [vmem:[%s469 + $0x910] sm:$0xff]
        %v874 = vld [vmem:[%s469 + $0x918] sm:$0xff]
        %v875 = vld [vmem:[%s469 + $0x920] sm:$0xff]
        %v876 = vld [vmem:[%s469 + $0x928] sm:$0xff]
        %v877 = vld [vmem:[%s469 + $0x930] sm:$0xff]
        %v878 = vld [vmem:[%s469 + $0x938] sm:$0xff]
        %v879 = vld [vmem:[%s469 + $0x940] sm:$0xff]
        %v880 = vld [vmem:[%s469 + $0x948] sm:$0xff]
        %v881 = vld [vmem:[%s469 + $0x950] sm:$0xff]
        %v882 = vld [vmem:[%s469 + $0x958] sm:$0xff]
        %v883 = vld [vmem:[%s469 + $0x960] sm:$0xff]
        %v884 = vld [vmem:[%s469 + $0x968] sm:$0xff]
        %v885 = vld [vmem:[%s469 + $0x970] sm:$0xff]
        %v886 = vld [vmem:[%s469 + $0x978] sm:$0xff]
        %v887 = vld [vmem:[%s469 + $0x980] sm:$0xff]
        %v888 = vld [vmem:[%s469 + $0x988] sm:$0xff]
        %v889 = vld [vmem:[%s469 + $0x990] sm:$0xff]
        %v890 = vld [vmem:[%s469 + $0x998] sm:$0xff]
        %v891 = vld [vmem:[%s469 + $0x9a0] sm:$0xff]
        %v892 = vld [vmem:[%s469 + $0x9a8] sm:$0xff]
        %v893 = vld [vmem:[%s469 + $0x9b0] sm:$0xff]
        %v894 = vld [vmem:[%s469 + $0x9b8] sm:$0xff]
        %v895 = vld [vmem:[%s469 + $0x9c0] sm:$0xff]
        %v896 = vld [vmem:[%s469 + $0x9c8] sm:$0xff]
        %v897 = vld [vmem:[%s469 + $0x9d0] sm:$0xff]
        %v898 = vld [vmem:[%s469 + $0x9d8] sm:$0xff]
        %v899 = vld [vmem:[%s469 + $0x9e0] sm:$0xff]
        %v900 = vld [vmem:[%s469 + $0x9e8] sm:$0xff]
        %v901 = vld [vmem:[%s469 + $0x9f0] sm:$0xff]
        %v902 = vld [vmem:[%s469 + $0x9f8] sm:$0xff]
        %v903 = vld [vmem:[%s469 + $0xa00] sm:$0xff]
        %v904 = vld [vmem:[%s469 + $0xa08] sm:$0xff]
        %v905 = vld [vmem:[%s469 + $0xa10] sm:$0xff]
        %v906 = vld [vmem:[%s469 + $0xa18] sm:$0xff]
        %v907 = vld [vmem:[%s469 + $0xa20] sm:$0xff]
        %v908 = vld [vmem:[%s469 + $0xa28] sm:$0xff]
        %v909 = vld [vmem:[%s469 + $0xa30] sm:$0xff]
        %v910 = vld [vmem:[%s469 + $0xa38] sm:$0xff]
        %v911 = vld [vmem:[%s469 + $0xa40] sm:$0xff]
        %v912 = vld [vmem:[%s469 + $0xa48] sm:$0xff]
        %v913 = vld [vmem:[%s469 + $0xa50] sm:$0xff]
        %v914 = vld [vmem:[%s469 + $0xa58] sm:$0xff]
        %v915 = vld [vmem:[%s469 + $0xa60] sm:$0xff]
        %v916 = vld [vmem:[%s469 + $0xa68] sm:$0xff]
        %v917 = vld [vmem:[%s469 + $0xa70] sm:$0xff]
        %v918 = vld [vmem:[%s469 + $0xa78] sm:$0xff]
        %v919 = vld [vmem:[%s469 + $0xa80] sm:$0xff]
        %v920 = vld [vmem:[%s469 + $0xa88] sm:$0xff]
        %v921 = vld [vmem:[%s469 + $0xa90] sm:$0xff]
        %v922 = vld [vmem:[%s469 + $0xa98] sm:$0xff]
        %v923 = vld [vmem:[%s469 + $0xaa0] sm:$0xff]
        %v924 = vld [vmem:[%s469 + $0xaa8] sm:$0xff]
        %v925 = vld [vmem:[%s469 + $0xab0] sm:$0xff]
        %v926 = vld [vmem:[%s469 + $0xab8] sm:$0xff]
        %v927 = vld [vmem:[%s469 + $0xac0] sm:$0xff]
        %v928 = vld [vmem:[%s469 + $0xac8] sm:$0xff]
        %v929 = vld [vmem:[%s469 + $0xad0] sm:$0xff]
        %v930 = vld [vmem:[%s469 + $0xad8] sm:$0xff]
        %v931 = vld [vmem:[%s469 + $0xae0] sm:$0xff]
        %v932 = vld [vmem:[%s469 + $0xae8] sm:$0xff]
        %v933 = vld [vmem:[%s469 + $0xaf0] sm:$0xff]
        %v934 = vld [vmem:[%s469 + $0xaf8] sm:$0xff]
        %v935 = vld [vmem:[%s469 + $0xb00] sm:$0xff]
        %v936 = vld [vmem:[%s469 + $0xb08] sm:$0xff]
        %v937 = vld [vmem:[%s469 + $0xb10] sm:$0xff]
        %v938 = vld [vmem:[%s469 + $0xb18] sm:$0xff]
        %v939 = vld [vmem:[%s469 + $0xb20] sm:$0xff]
        %v940 = vld [vmem:[%s469 + $0xb28] sm:$0xff]
        %v941 = vld [vmem:[%s469 + $0xb30] sm:$0xff]
        %v942 = vld [vmem:[%s469 + $0xb38] sm:$0xff]
        %v943 = vld [vmem:[%s469 + $0xb40] sm:$0xff]
        %v944 = vld [vmem:[%s469 + $0xb48] sm:$0xff]
        %v945 = vld [vmem:[%s469 + $0xb50] sm:$0xff]
        %v946 = vld [vmem:[%s469 + $0xb58] sm:$0xff]
        %v947 = vld [vmem:[%s469 + $0xb60] sm:$0xff]
        %v948 = vld [vmem:[%s469 + $0xb68] sm:$0xff]
        %v949 = vld [vmem:[%s469 + $0xb70] sm:$0xff]
        %v950 = vld [vmem:[%s469 + $0xb78] sm:$0xff]
        %v951 = vld [vmem:[%s469 + $0xb80] sm:$0xff]
        %v952 = vld [vmem:[%s469 + $0xb88] sm:$0xff]
        %v953 = vld [vmem:[%s469 + $0xb90] sm:$0xff]
        %v954 = vld [vmem:[%s469 + $0xb98] sm:$0xff]
        %v955 = vld [vmem:[%s469 + $0xba0] sm:$0xff]
        %v956 = vld [vmem:[%s469 + $0xba8] sm:$0xff]
        %v957 = vld [vmem:[%s469 + $0xbb0] sm:$0xff]
        %v958 = vld [vmem:[%s469 + $0xbb8] sm:$0xff]
        %v959 = vld [vmem:[%s469 + $0xbc0] sm:$0xff]
        %v960 = vld [vmem:[%s469 + $0xbc8] sm:$0xff]
        %v961 = vld [vmem:[%s469 + $0xbd0] sm:$0xff]
        %v962 = vld [vmem:[%s469 + $0xbd8] sm:$0xff]
        %v963 = vld [vmem:[%s469 + $0xbe0] sm:$0xff]
        %v964 = vld [vmem:[%s469 + $0xbe8] sm:$0xff]
        %v965 = vld [vmem:[%s469 + $0xbf0] sm:$0xff]
        %v966 = vld [vmem:[%s469 + $0xbf8] sm:$0xff]
        %v967 = vld [vmem:[%s469 + $0xc00] sm:$0xff]
        %v968 = vld [vmem:[%s469 + $0xc08] sm:$0xff]
        %v969 = vld [vmem:[%s469 + $0xc10] sm:$0xff]
        %v970 = vld [vmem:[%s469 + $0xc18] sm:$0xff]
        %v971 = vld [vmem:[%s469 + $0xc20] sm:$0xff]
        %v972 = vld [vmem:[%s469 + $0xc28] sm:$0xff]
        %v973 = vld [vmem:[%s469 + $0xc30] sm:$0xff]
        %v974 = vld [vmem:[%s469 + $0xc38] sm:$0xff]
        %v975 = vld [vmem:[%s469 + $0xc40] sm:$0xff]
        %v976 = vld [vmem:[%s469 + $0xc48] sm:$0xff]
        %v977 = vld [vmem:[%s469 + $0xc50] sm:$0xff]
        %v978 = vld [vmem:[%s469 + $0xc58] sm:$0xff]
        %v979 = vld [vmem:[%s469 + $0xc60] sm:$0xff]
        %v980 = vld [vmem:[%s469 + $0xc68] sm:$0xff]
        %v981 = vld [vmem:[%s469 + $0xc70] sm:$0xff]
        %v982 = vld [vmem:[%s469 + $0xc78] sm:$0xff]
        %v983 = vld [vmem:[%s469 + $0xc80] sm:$0xff]
        %v984 = vld [vmem:[%s469 + $0xc88] sm:$0xff]
        %v985 = vld [vmem:[%s469 + $0xc90] sm:$0xff]
        %v986 = vld [vmem:[%s469 + $0xc98] sm:$0xff]
        %v987 = vld [vmem:[%s469 + $0xca0] sm:$0xff]
        %v988 = vld [vmem:[%s469 + $0xca8] sm:$0xff]
        %v989 = vld [vmem:[%s469 + $0xcb0] sm:$0xff]
        %v990 = vld [vmem:[%s469 + $0xcb8] sm:$0xff]
        %v991 = vld [vmem:[%s469 + $0xcc0] sm:$0xff]
        %v992 = vld [vmem:[%s469 + $0xcc8] sm:$0xff]
        %v993 = vld [vmem:[%s469 + $0xcd0] sm:$0xff]
        %v994 = vld [vmem:[%s469 + $0xcd8] sm:$0xff]
        %v995 = vld [vmem:[%s469 + $0xce0] sm:$0xff]
        %v996 = vld [vmem:[%s469 + $0xce8] sm:$0xff]
        %v997 = vld [vmem:[%s469 + $0xcf0] sm:$0xff]
        %v998 = vld [vmem:[%s469 + $0xcf8] sm:$0xff]
        %v999 = vld [vmem:[%s469 + $0xd00] sm:$0xff]
        %v1000 = vld [vmem:[%s469 + $0xd08] sm:$0xff]
        %v1001 = vld [vmem:[%s469 + $0xd10] sm:$0xff]
        %v1002 = vld [vmem:[%s469 + $0xd18] sm:$0xff]
        %v1003 = vld [vmem:[%s469 + $0xd20] sm:$0xff]
        %v1004 = vld [vmem:[%s469 + $0xd28] sm:$0xff]
        %v1005 = vld [vmem:[%s469 + $0xd30] sm:$0xff]
        %v1006 = vld [vmem:[%s469 + $0xd38] sm:$0xff]
        %v1007 = vld [vmem:[%s469 + $0xd40] sm:$0xff]
        %v1008 = vld [vmem:[%s469 + $0xd48] sm:$0xff]
        %v1009 = vld [vmem:[%s469 + $0xd50] sm:$0xff]
        %v1010 = vld [vmem:[%s469 + $0xd58] sm:$0xff]
        %v1011 = vld [vmem:[%s469 + $0xd60] sm:$0xff]
        %v1012 = vld [vmem:[%s469 + $0xd68] sm:$0xff]
        %v1013 = vld [vmem:[%s469 + $0xd70] sm:$0xff]
        %v1014 = vld [vmem:[%s469 + $0xd78] sm:$0xff]
        %v1015 = vld [vmem:[%s469 + $0xd80] sm:$0xff]
        %v1016 = vld [vmem:[%s469 + $0xd88] sm:$0xff]
        %v1017 = vld [vmem:[%s469 + $0xd90] sm:$0xff]
        %v1018 = vld [vmem:[%s469 + $0xd98] sm:$0xff]
        %v1019 = vld [vmem:[%s469 + $0xda0] sm:$0xff]
        %v1020 = vld [vmem:[%s469 + $0xda8] sm:$0xff]
        %v1021 = vld [vmem:[%s469 + $0xdb0] sm:$0xff]
        %v1022 = vld [vmem:[%s469 + $0xdb8] sm:$0xff]
        %v1023 = vld [vmem:[%s469 + $0xdc0] sm:$0xff]
        %v1024 = vld [vmem:[%s469 + $0xdc8] sm:$0xff]
        %v1025 = vld [vmem:[%s469 + $0xdd0] sm:$0xff]
        %v1026 = vld [vmem:[%s469 + $0xdd8] sm:$0xff]
        %v1027 = vld [vmem:[%s469 + $0xde0] sm:$0xff]
        %v1028 = vld [vmem:[%s469 + $0xde8] sm:$0xff]
        %v1029 = vld [vmem:[%s469 + $0xdf0] sm:$0xff]
        %v1030 = vld [vmem:[%s469 + $0xdf8] sm:$0xff]
        %v1031 = vld [vmem:[%s469 + $0xe00] sm:$0xff]
        %v1032 = vld [vmem:[%s469 + $0xe08] sm:$0xff]
        %v1033 = vld [vmem:[%s469 + $0xe10] sm:$0xff]
        %v1034 = vld [vmem:[%s469 + $0xe18] sm:$0xff]
        %v1035 = vld [vmem:[%s469 + $0xe20] sm:$0xff]
        %v1036 = vld [vmem:[%s469 + $0xe28] sm:$0xff]
        %v1037 = vld [vmem:[%s469 + $0xe30] sm:$0xff]
        %v1038 = vld [vmem:[%s469 + $0xe38] sm:$0xff]
        %v1039 = vld [vmem:[%s469 + $0xe40] sm:$0xff]
        %v1040 = vld [vmem:[%s469 + $0xe48] sm:$0xff]
        %v1041 = vld [vmem:[%s469 + $0xe50] sm:$0xff]
        %v1042 = vld [vmem:[%s469 + $0xe58] sm:$0xff]
        %v1043 = vld [vmem:[%s469 + $0xe60] sm:$0xff]
        %v1044 = vld [vmem:[%s469 + $0xe68] sm:$0xff]
        %v1045 = vld [vmem:[%s469 + $0xe70] sm:$0xff]
        %v1046 = vld [vmem:[%s469 + $0xe78] sm:$0xff]
        %v1047 = vld [vmem:[%s469 + $0xe80] sm:$0xff]
        %v1048 = vld [vmem:[%s469 + $0xe88] sm:$0xff]
        %v1049 = vld [vmem:[%s469 + $0xe90] sm:$0xff]
        %v1050 = vld [vmem:[%s469 + $0xe98] sm:$0xff]
        %v1051 = vld [vmem:[%s469 + $0xea0] sm:$0xff]
        %v1052 = vld [vmem:[%s469 + $0xea8] sm:$0xff]
        %v1053 = vld [vmem:[%s469 + $0xeb0] sm:$0xff]
        %v1054 = vld [vmem:[%s469 + $0xeb8] sm:$0xff]
        %v1055 = vld [vmem:[%s469 + $0xec0] sm:$0xff]
        %v1056 = vld [vmem:[%s469 + $0xec8] sm:$0xff]
        %v1057 = vld [vmem:[%s469 + $0xed0] sm:$0xff]
        %v1058 = vld [vmem:[%s469 + $0xed8] sm:$0xff]
        %v1059 = vld [vmem:[%s469 + $0xee0] sm:$0xff]
        %v1060 = vld [vmem:[%s469 + $0xee8] sm:$0xff]
        %v1061 = vld [vmem:[%s469 + $0xef0] sm:$0xff]
        %v1062 = vld [vmem:[%s469 + $0xef8] sm:$0xff]
        %v1063 = vld [vmem:[%s469 + $0xf00] sm:$0xff]
        %v1064 = vld [vmem:[%s469 + $0xf08] sm:$0xff]
        %v1065 = vld [vmem:[%s469 + $0xf10] sm:$0xff]
        %v1066 = vld [vmem:[%s469 + $0xf18] sm:$0xff]
        %v1067 = vld [vmem:[%s469 + $0xf20] sm:$0xff]
        %v1068 = vld [vmem:[%s469 + $0xf28] sm:$0xff]
        %v1069 = vld [vmem:[%s469 + $0xf30] sm:$0xff]
        %v1070 = vld [vmem:[%s469 + $0xf38] sm:$0xff]
        %v1071 = vld [vmem:[%s469 + $0xf40] sm:$0xff]
        %v1072 = vld [vmem:[%s469 + $0xf48] sm:$0xff]
        %v1073 = vld [vmem:[%s469 + $0xf50] sm:$0xff]
        %v1074 = vld [vmem:[%s469 + $0xf58] sm:$0xff]
        %v1075 = vld [vmem:[%s469 + $0xf60] sm:$0xff]
        %v1076 = vld [vmem:[%s469 + $0xf68] sm:$0xff]
        %v1077 = vld [vmem:[%s469 + $0xf70] sm:$0xff]
        %v1078 = vld [vmem:[%s469 + $0xf78] sm:$0xff]
        %v1079 = vld [vmem:[%s469 + $0xf80] sm:$0xff]
        %v1080 = vld [vmem:[%s469 + $0xf88] sm:$0xff]
        %v1081 = vld [vmem:[%s469 + $0xf90] sm:$0xff]
        %v1082 = vld [vmem:[%s469 + $0xf98] sm:$0xff]
        %v1083 = vld [vmem:[%s469 + $0xfa0] sm:$0xff]
        %v1084 = vld [vmem:[%s469 + $0xfa8] sm:$0xff]
        %v1085 = vld [vmem:[%s469 + $0xfb0] sm:$0xff]
        %v1086 = vld [vmem:[%s469 + $0xfb8] sm:$0xff]
        %v1087 = vld [vmem:[%s469 + $0xfc0] sm:$0xff]
        %v1088 = vld [vmem:[%s469 + $0xfc8] sm:$0xff]
        %v1089 = vld [vmem:[%s469 + $0xfd0] sm:$0xff]
        %v1090 = vld [vmem:[%s469 + $0xfd8] sm:$0xff]
        %v1091 = vld [vmem:[%s469 + $0xfe0] sm:$0xff]
        %v1092 = vld [vmem:[%s469 + $0xfe8] sm:$0xff]
        %v1093 = vld [vmem:[%s469 + $0xff0] sm:$0xff]
        %v1094 = vld [vmem:[%s469 + $0xff8] sm:$0xff]
        %v1095 = vld [vmem:[%s469 + $0x1000] sm:$0xff]
        %v1096 = vld [vmem:[%s469 + $0x1008] sm:$0xff]
        %v1097 = vld [vmem:[%s469 + $0x1010] sm:$0xff]
        %v1098 = vld [vmem:[%s469 + $0x1018] sm:$0xff]
        %v1099 = vld [vmem:[%s469 + $0x1020] sm:$0xff]
        %v1100 = vld [vmem:[%s469 + $0x1028] sm:$0xff]
        %v1101 = vld [vmem:[%s469 + $0x1030] sm:$0xff]
        %v1102 = vld [vmem:[%s469 + $0x1038] sm:$0xff]
        %v1103 = vld [vmem:[%s469 + $0x1040] sm:$0xff]
        %v1104 = vld [vmem:[%s469 + $0x1048] sm:$0xff]
        %v1105 = vld [vmem:[%s469 + $0x1050] sm:$0xff]
        %v1106 = vld [vmem:[%s469 + $0x1058] sm:$0xff]
        %v1107 = vld [vmem:[%s469 + $0x1060] sm:$0xff]
        %v1108 = vld [vmem:[%s469 + $0x1068] sm:$0xff]
        %v1109 = vld [vmem:[%s469 + $0x1070] sm:$0xff]
        %v1110 = vld [vmem:[%s469 + $0x1078] sm:$0xff]
        %v1111 = vld [vmem:[%s469 + $0x1080] sm:$0xff]
        %v1112 = vld [vmem:[%s469 + $0x1088] sm:$0xff]
        %v1113 = vld [vmem:[%s469 + $0x1090] sm:$0xff]
        %v1114 = vld [vmem:[%s469 + $0x1098] sm:$0xff]
        %v1115 = vld [vmem:[%s469 + $0x10a0] sm:$0xff]
        %v1116 = vld [vmem:[%s469 + $0x10a8] sm:$0xff]
        %v1117 = vld [vmem:[%s469 + $0x10b0] sm:$0xff]
        %v1118 = vld [vmem:[%s469 + $0x10b8] sm:$0xff]
        %v1119 = vld [vmem:[%s469 + $0x10c0] sm:$0xff]
        %v1120 = vld [vmem:[%s469 + $0x10c8] sm:$0xff]
        %v1121 = vld [vmem:[%s469 + $0x10d0] sm:$0xff]
        %v1122 = vld [vmem:[%s469 + $0x10d8] sm:$0xff]
        %v1123 = vld [vmem:[%s469 + $0x10e0] sm:$0xff]
        %v1124 = vld [vmem:[%s469 + $0x10e8] sm:$0xff]
        %v1125 = vld [vmem:[%s469 + $0x10f0] sm:$0xff]
        %v1126 = vld [vmem:[%s469 + $0x10f8] sm:$0xff]
        %v1127 = vld [vmem:[%s469 + $0x1100] sm:$0xff]
        %v1128 = vld [vmem:[%s469 + $0x1108] sm:$0xff]
        %v1129 = vld [vmem:[%s469 + $0x1110] sm:$0xff]
        %v1130 = vld [vmem:[%s469 + $0x1118] sm:$0xff]
        %v1131 = vld [vmem:[%s469 + $0x1120] sm:$0xff]
        %v1132 = vld [vmem:[%s469 + $0x1128] sm:$0xff]
        %v1133 = vld [vmem:[%s469 + $0x1130] sm:$0xff]
        %v1134 = vld [vmem:[%s469 + $0x1138] sm:$0xff]
        %v1135 = vld [vmem:[%s469 + $0x1140] sm:$0xff]
        %v1136 = vld [vmem:[%s469 + $0x1148] sm:$0xff]
        %v1137 = vld [vmem:[%s469 + $0x1150] sm:$0xff]
        %v1138 = vld [vmem:[%s469 + $0x1158] sm:$0xff]
        %v1139 = vld [vmem:[%s469 + $0x1160] sm:$0xff]
        %v1140 = vld [vmem:[%s469 + $0x1168] sm:$0xff]
        %v1141 = vld [vmem:[%s469 + $0x1170] sm:$0xff]
        %v1142 = vld [vmem:[%s469 + $0x1178] sm:$0xff]
        %v1143 = vld [vmem:[%s469 + $0x1180] sm:$0xff]
        %v1144 = vld [vmem:[%s469 + $0x1188] sm:$0xff]
        %v1145 = vld [vmem:[%s469 + $0x1190] sm:$0xff]
        %v1146 = vld [vmem:[%s469 + $0x1198] sm:$0xff]
        %v1147 = vld [vmem:[%s469 + $0x11a0] sm:$0xff]
        %v1148 = vld [vmem:[%s469 + $0x11a8] sm:$0xff]
        %v1149 = vld [vmem:[%s469 + $0x11b0] sm:$0xff]
        %v1150 = vld [vmem:[%s469 + $0x11b8] sm:$0xff]
        %v1151 = vld [vmem:[%s469 + $0x11c0] sm:$0xff]
        %v1152 = vld [vmem:[%s469 + $0x11c8] sm:$0xff]
        %v1153 = vld [vmem:[%s469 + $0x11d0] sm:$0xff]
        %v1154 = vld [vmem:[%s469 + $0x11d8] sm:$0xff]
        %v1155 = vld [vmem:[%s469 + $0x11e0] sm:$0xff]
        %v1156 = vld [vmem:[%s469 + $0x11e8] sm:$0xff]
        %v1157 = vld [vmem:[%s469 + $0x11f0] sm:$0xff]
        %v1158 = vld [vmem:[%s469 + $0x11f8] sm:$0xff]
        %v1159 = vld [vmem:[%s469 + $0x1200] sm:$0xff]
        %v1160 = vld [vmem:[%s469 + $0x1208] sm:$0xff]
        %v1161 = vld [vmem:[%s469 + $0x1210] sm:$0xff]
        %v1162 = vld [vmem:[%s469 + $0x1218] sm:$0xff]
        %v1163 = vld [vmem:[%s469 + $0x1220] sm:$0xff]
        %v1164 = vld [vmem:[%s469 + $0x1228] sm:$0xff]
        %v1165 = vld [vmem:[%s469 + $0x1230] sm:$0xff]
        %v1166 = vld [vmem:[%s469 + $0x1238] sm:$0xff]
        %v1167 = vld [vmem:[%s469 + $0x1240] sm:$0xff]
        %v1168 = vld [vmem:[%s469 + $0x1248] sm:$0xff]
        %v1169 = vld [vmem:[%s469 + $0x1250] sm:$0xff]
        %v1170 = vld [vmem:[%s469 + $0x1258] sm:$0xff]
        %v1171 = vld [vmem:[%s469 + $0x1260] sm:$0xff]
        %v1172 = vld [vmem:[%s469 + $0x1268] sm:$0xff]
        %v1173 = vld [vmem:[%s469 + $0x1270] sm:$0xff]
        %v1174 = vld [vmem:[%s469 + $0x1278] sm:$0xff]
        %v1175 = vld [vmem:[%s469 + $0x1280] sm:$0xff]
        %v1176 = vld [vmem:[%s469 + $0x1288] sm:$0xff]
        %v1177 = vld [vmem:[%s469 + $0x1290] sm:$0xff]
        %v1178 = vld [vmem:[%s469 + $0x1298] sm:$0xff]
        %v1179 = vld [vmem:[%s469 + $0x12a0] sm:$0xff]
        %v1180 = vld [vmem:[%s469 + $0x12a8] sm:$0xff]
        %v1181 = vld [vmem:[%s469 + $0x12b0] sm:$0xff]
        %v1182 = vld [vmem:[%s469 + $0x12b8] sm:$0xff]
        %v1183 = vld [vmem:[%s469 + $0x12c0] sm:$0xff]
        %v1184 = vld [vmem:[%s469 + $0x12c8] sm:$0xff]
        %v1185 = vld [vmem:[%s469 + $0x12d0] sm:$0xff]
        %v1186 = vld [vmem:[%s469 + $0x12d8] sm:$0xff]
        %v1187 = vld [vmem:[%s469 + $0x12e0] sm:$0xff]
        %v1188 = vld [vmem:[%s469 + $0x12e8] sm:$0xff]
        %v1189 = vld [vmem:[%s469 + $0x12f0] sm:$0xff]
        %v1190 = vld [vmem:[%s469 + $0x12f8] sm:$0xff]
        %v1191 = vld [vmem:[%s469 + $0x1300] sm:$0xff]
        %v1192 = vld [vmem:[%s469 + $0x1308] sm:$0xff]
        %v1193 = vld [vmem:[%s469 + $0x1310] sm:$0xff]
        %v1194 = vld [vmem:[%s469 + $0x1318] sm:$0xff]
        %v1195 = vld [vmem:[%s469 + $0x1320] sm:$0xff]
        %v1196 = vld [vmem:[%s469 + $0x1328] sm:$0xff]
        %v1197 = vld [vmem:[%s469 + $0x1330] sm:$0xff]
        %v1198 = vld [vmem:[%s469 + $0x1338] sm:$0xff]
        %v1199 = vld [vmem:[%s469 + $0x1340] sm:$0xff]
        %v1200 = vld [vmem:[%s469 + $0x1348] sm:$0xff]
        %v1201 = vld [vmem:[%s469 + $0x1350] sm:$0xff]
        %v1202 = vld [vmem:[%s469 + $0x1358] sm:$0xff]
        %v1203 = vld [vmem:[%s469 + $0x1360] sm:$0xff]
        %v1204 = vld [vmem:[%s469 + $0x1368] sm:$0xff]
        %v1205 = vld [vmem:[%s469 + $0x1370] sm:$0xff]
        %v1206 = vld [vmem:[%s469 + $0x1378] sm:$0xff]
        %v1207 = vld [vmem:[%s469 + $0x1380] sm:$0xff]
        %v1208 = vld [vmem:[%s469 + $0x1388] sm:$0xff]
        %v1209 = vld [vmem:[%s469 + $0x1390] sm:$0xff]
        %v1210 = vld [vmem:[%s469 + $0x1398] sm:$0xff]
        %v1211 = vld [vmem:[%s469 + $0x13a0] sm:$0xff]
        %v1212 = vld [vmem:[%s469 + $0x13a8] sm:$0xff]
        %v1213 = vld [vmem:[%s469 + $0x13b0] sm:$0xff]
        %v1214 = vld [vmem:[%s469 + $0x13b8] sm:$0xff]
        %v1215 = vld [vmem:[%s469 + $0x13c0] sm:$0xff]
        %v1216 = vld [vmem:[%s469 + $0x13c8] sm:$0xff]
        %v1217 = vld [vmem:[%s469 + $0x13d0] sm:$0xff]
        %v1218 = vld [vmem:[%s469 + $0x13d8] sm:$0xff]
        %v1219 = vld [vmem:[%s469 + $0x13e0] sm:$0xff]
        %v1220 = vld [vmem:[%s469 + $0x13e8] sm:$0xff]
        %v1221 = vld [vmem:[%s469 + $0x13f0] sm:$0xff]
        %v1222 = vld [vmem:[%s469 + $0x13f8] sm:$0xff]
        %v1223 = vld [vmem:[%s469 + $0x1400] sm:$0xff]
        %v1224 = vld [vmem:[%s469 + $0x1408] sm:$0xff]
        %v1225 = vld [vmem:[%s469 + $0x1410] sm:$0xff]
        %v1226 = vld [vmem:[%s469 + $0x1418] sm:$0xff]
        %v1227 = vld [vmem:[%s469 + $0x1420] sm:$0xff]
        %v1228 = vld [vmem:[%s469 + $0x1428] sm:$0xff]
        %v1229 = vld [vmem:[%s469 + $0x1430] sm:$0xff]
        %v1230 = vld [vmem:[%s469 + $0x1438] sm:$0xff]
        %v1231 = vld [vmem:[%s469 + $0x1440] sm:$0xff]
        %v1232 = vld [vmem:[%s469 + $0x1448] sm:$0xff]
        %v1233 = vld [vmem:[%s469 + $0x1450] sm:$0xff]
        %v1234 = vld [vmem:[%s469 + $0x1458] sm:$0xff]
        %v1235 = vld [vmem:[%s469 + $0x1460] sm:$0xff]
        %v1236 = vld [vmem:[%s469 + $0x1468] sm:$0xff]
        %v1237 = vld [vmem:[%s469 + $0x1470] sm:$0xff]
        %v1238 = vld [vmem:[%s469 + $0x1478] sm:$0xff]
        %v1239 = vld [vmem:[%s469 + $0x1480] sm:$0xff]
        %v1240 = vld [vmem:[%s469 + $0x1488] sm:$0xff]
        %v1241 = vld [vmem:[%s469 + $0x1490] sm:$0xff]
        %v1242 = vld [vmem:[%s469 + $0x1498] sm:$0xff]
        %v1243 = vld [vmem:[%s469 + $0x14a0] sm:$0xff]
        %v1244 = vld [vmem:[%s469 + $0x14a8] sm:$0xff]
        %v1245 = vld [vmem:[%s469 + $0x14b0] sm:$0xff]
        %v1246 = vld [vmem:[%s469 + $0x14b8] sm:$0xff]
        %v1247 = vld [vmem:[%s469 + $0x14c0] sm:$0xff]
        %v1248 = vld [vmem:[%s469 + $0x14c8] sm:$0xff]
        %v1249 = vld [vmem:[%s469 + $0x14d0] sm:$0xff]
        %v1250 = vld [vmem:[%s469 + $0x14d8] sm:$0xff]
        %v1251 = vld [vmem:[%s469 + $0x14e0] sm:$0xff]
        %v1252 = vld [vmem:[%s469 + $0x14e8] sm:$0xff]
        %v1253 = vld [vmem:[%s469 + $0x14f0] sm:$0xff]
        %v1254 = vld [vmem:[%s469 + $0x14f8] sm:$0xff]
        %v1255 = vld [vmem:[%s469 + $0x1500] sm:$0xff]
        %v1256 = vld [vmem:[%s469 + $0x1508] sm:$0xff]
        %v1257 = vld [vmem:[%s469 + $0x1510] sm:$0xff]
        %v1258 = vld [vmem:[%s469 + $0x1518] sm:$0xff]
        %v1259 = vld [vmem:[%s469 + $0x1520] sm:$0xff]
        %v1260 = vld [vmem:[%s469 + $0x1528] sm:$0xff]
        %v1261 = vld [vmem:[%s469 + $0x1530] sm:$0xff]
        %v1262 = vld [vmem:[%s469 + $0x1538] sm:$0xff]
        %v1263 = vld [vmem:[%s469 + $0x1540] sm:$0xff]
        %v1264 = vld [vmem:[%s469 + $0x1548] sm:$0xff]
        %v1265 = vld [vmem:[%s469 + $0x1550] sm:$0xff]
        %v1266 = vld [vmem:[%s469 + $0x1558] sm:$0xff]
        %v1267 = vld [vmem:[%s469 + $0x1560] sm:$0xff]
        %v1268 = vld [vmem:[%s469 + $0x1568] sm:$0xff]
        %v1269 = vld [vmem:[%s469 + $0x1570] sm:$0xff]
        %v1270 = vld [vmem:[%s469 + $0x1578] sm:$0xff]
        %v1271 = vld [vmem:[%s469 + $0x1580] sm:$0xff]
        %v1272 = vld [vmem:[%s469 + $0x1588] sm:$0xff]
        %v1273 = vld [vmem:[%s469 + $0x1590] sm:$0xff]
        %v1274 = vld [vmem:[%s469 + $0x1598] sm:$0xff]
        %v1275 = vld [vmem:[%s469 + $0x15a0] sm:$0xff]
        %v1276 = vld [vmem:[%s469 + $0x15a8] sm:$0xff]
        %v1277 = vld [vmem:[%s469 + $0x15b0] sm:$0xff]
        %v1278 = vld [vmem:[%s469 + $0x15b8] sm:$0xff]
        %v1279 = vld [vmem:[%s469 + $0x15c0] sm:$0xff]
        %v1280 = vld [vmem:[%s469 + $0x15c8] sm:$0xff]
        %v1281 = vld [vmem:[%s469 + $0x15d0] sm:$0xff]
        %v1282 = vld [vmem:[%s469 + $0x15d8] sm:$0xff]
        %v1283 = vld [vmem:[%s469 + $0x15e0] sm:$0xff]
        %v1284 = vld [vmem:[%s469 + $0x15e8] sm:$0xff]
        %v1285 = vld [vmem:[%s469 + $0x15f0] sm:$0xff]
        %v1286 = vld [vmem:[%s469 + $0x15f8] sm:$0xff]
        %v1287 = vld [vmem:[%s469 + $0x1600] sm:$0xff]
        %v1288 = vld [vmem:[%s469 + $0x1608] sm:$0xff]
        %v1289 = vld [vmem:[%s469 + $0x1610] sm:$0xff]
        %v1290 = vld [vmem:[%s469 + $0x1618] sm:$0xff]
        %v1291 = vld [vmem:[%s469 + $0x1620] sm:$0xff]
        %v1292 = vld [vmem:[%s469 + $0x1628] sm:$0xff]
        %v1293 = vld [vmem:[%s469 + $0x1630] sm:$0xff]
        %v1294 = vld [vmem:[%s469 + $0x1638] sm:$0xff]
        %v1295 = vld [vmem:[%s469 + $0x1640] sm:$0xff]
        %v1296 = vld [vmem:[%s469 + $0x1648] sm:$0xff]
        %v1297 = vld [vmem:[%s469 + $0x1650] sm:$0xff]
        %v1298 = vld [vmem:[%s469 + $0x1658] sm:$0xff]
        %v1299 = vld [vmem:[%s469 + $0x1660] sm:$0xff]
        %v1300 = vld [vmem:[%s469 + $0x1668] sm:$0xff]
        %v1301 = vld [vmem:[%s469 + $0x1670] sm:$0xff]
        %v1302 = vld [vmem:[%s469 + $0x1678] sm:$0xff]
        %v1303 = vld [vmem:[%s469 + $0x1680] sm:$0xff]
        %v1304 = vld [vmem:[%s469 + $0x1688] sm:$0xff]
        %v1305 = vld [vmem:[%s469 + $0x1690] sm:$0xff]
        %v1306 = vld [vmem:[%s469 + $0x1698] sm:$0xff]
        %v1307 = vld [vmem:[%s469 + $0x16a0] sm:$0xff]
        %v1308 = vld [vmem:[%s469 + $0x16a8] sm:$0xff]
        %v1309 = vld [vmem:[%s469 + $0x16b0] sm:$0xff]
        %v1310 = vld [vmem:[%s469 + $0x16b8] sm:$0xff]
        %v1311 = vld [vmem:[%s469 + $0x16c0] sm:$0xff]
        %v1312 = vld [vmem:[%s469 + $0x16c8] sm:$0xff]
        %v1313 = vld [vmem:[%s469 + $0x16d0] sm:$0xff]
        %v1314 = vld [vmem:[%s469 + $0x16d8] sm:$0xff]
        %v1315 = vld [vmem:[%s469 + $0x16e0] sm:$0xff]
        %v1316 = vld [vmem:[%s469 + $0x16e8] sm:$0xff]
        %v1317 = vld [vmem:[%s469 + $0x16f0] sm:$0xff]
        %v1318 = vld [vmem:[%s469 + $0x16f8] sm:$0xff]
        %v1319 = vld [vmem:[%s469 + $0x1700] sm:$0xff]
        %v1320 = vld [vmem:[%s469 + $0x1708] sm:$0xff]
        %v1321 = vld [vmem:[%s469 + $0x1710] sm:$0xff]
        %v1322 = vld [vmem:[%s469 + $0x1718] sm:$0xff]
        %v1323 = vld [vmem:[%s469 + $0x1720] sm:$0xff]
        %v1324 = vld [vmem:[%s469 + $0x1728] sm:$0xff]
        %v1325 = vld [vmem:[%s469 + $0x1730] sm:$0xff]
        %v1326 = vld [vmem:[%s469 + $0x1738] sm:$0xff]
        %v1327 = vld [vmem:[%s469 + $0x1740] sm:$0xff]
        %v1328 = vld [vmem:[%s469 + $0x1748] sm:$0xff]
        %v1329 = vld [vmem:[%s469 + $0x1750] sm:$0xff]
        %v1330 = vld [vmem:[%s469 + $0x1758] sm:$0xff]
        %v1331 = vld [vmem:[%s469 + $0x1760] sm:$0xff]
        %v1332 = vld [vmem:[%s469 + $0x1768] sm:$0xff]
        %v1333 = vld [vmem:[%s469 + $0x1770] sm:$0xff]
        %v1334 = vld [vmem:[%s469 + $0x1778] sm:$0xff]
        %v1335 = vld [vmem:[%s469 + $0x1780] sm:$0xff]
        %v1336 = vld [vmem:[%s469 + $0x1788] sm:$0xff]
        %v1337 = vld [vmem:[%s469 + $0x1790] sm:$0xff]
        %v1338 = vld [vmem:[%s469 + $0x1798] sm:$0xff]
        %v1339 = vld [vmem:[%s469 + $0x17a0] sm:$0xff]
        %v1340 = vld [vmem:[%s469 + $0x17a8] sm:$0xff]
        %v1341 = vld [vmem:[%s469 + $0x17b0] sm:$0xff]
        %v1342 = vld [vmem:[%s469 + $0x17b8] sm:$0xff]
        %v1343 = vld [vmem:[%s469 + $0x17c0] sm:$0xff]
        %v1344 = vld [vmem:[%s469 + $0x17c8] sm:$0xff]
        %v1345 = vld [vmem:[%s469 + $0x17d0] sm:$0xff]
        %v1346 = vld [vmem:[%s469 + $0x17d8] sm:$0xff]
        %v1347 = vld [vmem:[%s469 + $0x17e0] sm:$0xff]
        %v1348 = vld [vmem:[%s469 + $0x17e8] sm:$0xff]
        %v1349 = vld [vmem:[%s469 + $0x17f0] sm:$0xff]
        %v1350 = vld [vmem:[%s469 + $0x17f8] sm:$0xff]
        %v1351 = vld [vmem:[%s469 + $0x1800] sm:$0xff]
        %v1352 = vld [vmem:[%s469 + $0x1808] sm:$0xff]
        %v1353 = vld [vmem:[%s469 + $0x1810] sm:$0xff]
        %v1354 = vld [vmem:[%s469 + $0x1818] sm:$0xff]
        %v1355 = vld [vmem:[%s469 + $0x1820] sm:$0xff]
        %v1356 = vld [vmem:[%s469 + $0x1828] sm:$0xff]
        %v1357 = vld [vmem:[%s469 + $0x1830] sm:$0xff]
        %v1358 = vld [vmem:[%s469 + $0x1838] sm:$0xff]
        %v1359 = vld [vmem:[%s469 + $0x1840] sm:$0xff]
        %v1360 = vld [vmem:[%s469 + $0x1848] sm:$0xff]
        %v1361 = vld [vmem:[%s469 + $0x1850] sm:$0xff]
        %v1362 = vld [vmem:[%s469 + $0x1858] sm:$0xff]
        %v1363 = vld [vmem:[%s469 + $0x1860] sm:$0xff]
        %v1364 = vld [vmem:[%s469 + $0x1868] sm:$0xff]
        %v1365 = vld [vmem:[%s469 + $0x1870] sm:$0xff]
        %v1366 = vld [vmem:[%s469 + $0x1878] sm:$0xff]
        %v1367 = vld [vmem:[%s469 + $0x1880] sm:$0xff]
        %v1368 = vld [vmem:[%s469 + $0x1888] sm:$0xff]
        %v1369 = vld [vmem:[%s469 + $0x1890] sm:$0xff]
        %v1370 = vld [vmem:[%s469 + $0x1898] sm:$0xff]
        %v1371 = vld [vmem:[%s469 + $0x18a0] sm:$0xff]
        %v1372 = vld [vmem:[%s469 + $0x18a8] sm:$0xff]
        %v1373 = vld [vmem:[%s469 + $0x18b0] sm:$0xff]
        %v1374 = vld [vmem:[%s469 + $0x18b8] sm:$0xff]
        %v1375 = vld [vmem:[%s469 + $0x18c0] sm:$0xff]
        %v1376 = vld [vmem:[%s469 + $0x18c8] sm:$0xff]
        %v1377 = vld [vmem:[%s469 + $0x18d0] sm:$0xff]
        %v1378 = vld [vmem:[%s469 + $0x18d8] sm:$0xff]
        %v1379 = vld [vmem:[%s469 + $0x18e0] sm:$0xff]
        %v1380 = vld [vmem:[%s469 + $0x18e8] sm:$0xff]
        %v1381 = vld [vmem:[%s469 + $0x18f0] sm:$0xff]
        %v1382 = vld [vmem:[%s469 + $0x18f8] sm:$0xff]
        %v1383 = vld [vmem:[%s469 + $0x1900] sm:$0xff]
        %v1384 = vld [vmem:[%s469 + $0x1908] sm:$0xff]
        %v1385 = vld [vmem:[%s469 + $0x1910] sm:$0xff]
        %v1386 = vld [vmem:[%s469 + $0x1918] sm:$0xff]
        %v1387 = vld [vmem:[%s469 + $0x1920] sm:$0xff]
        %v1388 = vld [vmem:[%s469 + $0x1928] sm:$0xff]
        %v1389 = vld [vmem:[%s469 + $0x1930] sm:$0xff]
        %v1390 = vld [vmem:[%s469 + $0x1938] sm:$0xff]
        %v1391 = vld [vmem:[%s469 + $0x1940] sm:$0xff]
        %v1392 = vld [vmem:[%s469 + $0x1948] sm:$0xff]
        %v1393 = vld [vmem:[%s469 + $0x1950] sm:$0xff]
        %v1394 = vld [vmem:[%s469 + $0x1958] sm:$0xff]
        %v1395 = vld [vmem:[%s469 + $0x1960] sm:$0xff]
        %v1396 = vld [vmem:[%s469 + $0x1968] sm:$0xff]
        %v1397 = vld [vmem:[%s469 + $0x1970] sm:$0xff]
        %v1398 = vld [vmem:[%s469 + $0x1978] sm:$0xff]
        %v1399 = vld [vmem:[%s469 + $0x1980] sm:$0xff]
        %v1400 = vld [vmem:[%s469 + $0x1988] sm:$0xff]
        %v1401 = vld [vmem:[%s469 + $0x1990] sm:$0xff]
        %v1402 = vld [vmem:[%s469 + $0x1998] sm:$0xff]
        %v1403 = vld [vmem:[%s469 + $0x19a0] sm:$0xff]
        %v1404 = vld [vmem:[%s469 + $0x19a8] sm:$0xff]
        %v1405 = vld [vmem:[%s469 + $0x19b0] sm:$0xff]
        %v1406 = vld [vmem:[%s469 + $0x19b8] sm:$0xff]
        %v1407 = vld [vmem:[%s469 + $0x19c0] sm:$0xff]
        %v1408 = vld [vmem:[%s469 + $0x19c8] sm:$0xff]
        %v1409 = vld [vmem:[%s469 + $0x19d0] sm:$0xff]
        %v1410 = vld [vmem:[%s469 + $0x19d8] sm:$0xff]
        %v1411 = vld [vmem:[%s469 + $0x19e0] sm:$0xff]
        %v1412 = vld [vmem:[%s469 + $0x19e8] sm:$0xff]
        %v1413 = vld [vmem:[%s469 + $0x19f0] sm:$0xff]
        %v1414 = vld [vmem:[%s469 + $0x19f8] sm:$0xff]
        %v1415 = vld [vmem:[%s469 + $0x1a00] sm:$0xff]
        %v1416 = vld [vmem:[%s469 + $0x1a08] sm:$0xff]
        %v1417 = vld [vmem:[%s469 + $0x1a10] sm:$0xff]
        %v1418 = vld [vmem:[%s469 + $0x1a18] sm:$0xff]
        %v1419 = vld [vmem:[%s469 + $0x1a20] sm:$0xff]
        %v1420 = vld [vmem:[%s469 + $0x1a28] sm:$0xff]
        %v1421 = vld [vmem:[%s469 + $0x1a30] sm:$0xff]
        %v1422 = vld [vmem:[%s469 + $0x1a38] sm:$0xff]
        %v1423 = vld [vmem:[%s469 + $0x1a40] sm:$0xff]
        %v1424 = vld [vmem:[%s469 + $0x1a48] sm:$0xff]
        %v1425 = vld [vmem:[%s469 + $0x1a50] sm:$0xff]
        %v1426 = vld [vmem:[%s469 + $0x1a58] sm:$0xff]
        %v1427 = vld [vmem:[%s469 + $0x1a60] sm:$0xff]
        %v1428 = vld [vmem:[%s469 + $0x1a68] sm:$0xff]
        %v1429 = vld [vmem:[%s469 + $0x1a70] sm:$0xff]
        %v1430 = vld [vmem:[%s469 + $0x1a78] sm:$0xff]
        %v1431 = vld [vmem:[%s469 + $0x1a80] sm:$0xff]
        %v1432 = vld [vmem:[%s469 + $0x1a88] sm:$0xff]
        %v1433 = vld [vmem:[%s469 + $0x1a90] sm:$0xff]
        %v1434 = vld [vmem:[%s469 + $0x1a98] sm:$0xff]
        %v1435 = vld [vmem:[%s469 + $0x1aa0] sm:$0xff]
        %v1436 = vld [vmem:[%s469 + $0x1aa8] sm:$0xff]
        %v1437 = vld [vmem:[%s469 + $0x1ab0] sm:$0xff]
        %v1438 = vld [vmem:[%s469 + $0x1ab8] sm:$0xff]
        %v1439 = vld [vmem:[%s469 + $0x1ac0] sm:$0xff]
        %v1440 = vld [vmem:[%s469 + $0x1ac8] sm:$0xff]
        %v1441 = vld [vmem:[%s469 + $0x1ad0] sm:$0xff]
        %v1442 = vld [vmem:[%s469 + $0x1ad8] sm:$0xff]
        %v1443 = vld [vmem:[%s469 + $0x1ae0] sm:$0xff]
        %v1444 = vld [vmem:[%s469 + $0x1ae8] sm:$0xff]
        %v1445 = vld [vmem:[%s469 + $0x1af0] sm:$0xff]
        %v1446 = vld [vmem:[%s469 + $0x1af8] sm:$0xff]
        %v1447 = vld [vmem:[%s469 + $0x1b00] sm:$0xff]
        %v1448 = vld [vmem:[%s469 + $0x1b08] sm:$0xff]
        %v1449 = vld [vmem:[%s469 + $0x1b10] sm:$0xff]
        %v1450 = vld [vmem:[%s469 + $0x1b18] sm:$0xff]
        %v1451 = vld [vmem:[%s469 + $0x1b20] sm:$0xff]
        %v1452 = vld [vmem:[%s469 + $0x1b28] sm:$0xff]
        %v1453 = vld [vmem:[%s469 + $0x1b30] sm:$0xff]
        %v1454 = vld [vmem:[%s469 + $0x1b38] sm:$0xff]
        %v1455 = vld [vmem:[%s469 + $0x1b40] sm:$0xff]
        %v1456 = vld [vmem:[%s469 + $0x1b48] sm:$0xff]
        %v1457 = vld [vmem:[%s469 + $0x1b50] sm:$0xff]
        %v1458 = vld [vmem:[%s469 + $0x1b58] sm:$0xff]
        %v1459 = vld [vmem:[%s469 + $0x1b60] sm:$0xff]
        %v1460 = vld [vmem:[%s469 + $0x1b68] sm:$0xff]
        %v1461 = vld [vmem:[%s469 + $0x1b70] sm:$0xff]
        %v1462 = vld [vmem:[%s469 + $0x1b78] sm:$0xff]
        %v1463 = vld [vmem:[%s469 + $0x1b80] sm:$0xff]
        %v1464 = vld [vmem:[%s469 + $0x1b88] sm:$0xff]
        %v1465 = vld [vmem:[%s469 + $0x1b90] sm:$0xff]
        %v1466 = vld [vmem:[%s469 + $0x1b98] sm:$0xff]
        %v1467 = vld [vmem:[%s469 + $0x1ba0] sm:$0xff]
        %v1468 = vld [vmem:[%s469 + $0x1ba8] sm:$0xff]
        %v1469 = vld [vmem:[%s469 + $0x1bb0] sm:$0xff]
        %v1470 = vld [vmem:[%s469 + $0x1bb8] sm:$0xff]
        %v1471 = vld [vmem:[%s469 + $0x1bc0] sm:$0xff]
        %v1472 = vld [vmem:[%s469 + $0x1bc8] sm:$0xff]
        %v1473 = vld [vmem:[%s469 + $0x1bd0] sm:$0xff]
        %v1474 = vld [vmem:[%s469 + $0x1bd8] sm:$0xff]
        %v1475 = vld [vmem:[%s469 + $0x1be0] sm:$0xff]
        %v1476 = vld [vmem:[%s469 + $0x1be8] sm:$0xff]
        %v1477 = vld [vmem:[%s469 + $0x1bf0] sm:$0xff]
        %v1478 = vld [vmem:[%s469 + $0x1bf8] sm:$0xff]
        %v1479 = vld [vmem:[%s469 + $0x1c00] sm:$0xff]
        %v1480 = vld [vmem:[%s469 + $0x1c08] sm:$0xff]
        %v1481 = vld [vmem:[%s469 + $0x1c10] sm:$0xff]
        %v1482 = vld [vmem:[%s469 + $0x1c18] sm:$0xff]
        %v1483 = vld [vmem:[%s469 + $0x1c20] sm:$0xff]
        %v1484 = vld [vmem:[%s469 + $0x1c28] sm:$0xff]
        %v1485 = vld [vmem:[%s469 + $0x1c30] sm:$0xff]
        %v1486 = vld [vmem:[%s469 + $0x1c38] sm:$0xff]
        %v1487 = vld [vmem:[%s469 + $0x1c40] sm:$0xff]
        %v1488 = vld [vmem:[%s469 + $0x1c48] sm:$0xff]
        %v1489 = vld [vmem:[%s469 + $0x1c50] sm:$0xff]
        %v1490 = vld [vmem:[%s469 + $0x1c58] sm:$0xff]
        %v1491 = vld [vmem:[%s469 + $0x1c60] sm:$0xff]
        %v1492 = vld [vmem:[%s469 + $0x1c68] sm:$0xff]
        %v1493 = vld [vmem:[%s469 + $0x1c70] sm:$0xff]
        %v1494 = vld [vmem:[%s469 + $0x1c78] sm:$0xff]
        %v1495 = vld [vmem:[%s469 + $0x1c80] sm:$0xff]
        %v1496 = vld [vmem:[%s469 + $0x1c88] sm:$0xff]
        %v1497 = vld [vmem:[%s469 + $0x1c90] sm:$0xff]
        %v1498 = vld [vmem:[%s469 + $0x1c98] sm:$0xff]
        %v1499 = vld [vmem:[%s469 + $0x1ca0] sm:$0xff]
        %v1500 = vld [vmem:[%s469 + $0x1ca8] sm:$0xff]
        %v1501 = vld [vmem:[%s469 + $0x1cb0] sm:$0xff]
        %v1502 = vld [vmem:[%s469 + $0x1cb8] sm:$0xff]
        %v1503 = vld [vmem:[%s469 + $0x1cc0] sm:$0xff]
        %v1504 = vld [vmem:[%s469 + $0x1cc8] sm:$0xff]
        %v1505 = vld [vmem:[%s469 + $0x1cd0] sm:$0xff]
        %v1506 = vld [vmem:[%s469 + $0x1cd8] sm:$0xff]
        %v1507 = vld [vmem:[%s469 + $0x1ce0] sm:$0xff]
        %v1508 = vld [vmem:[%s469 + $0x1ce8] sm:$0xff]
        %v1509 = vld [vmem:[%s469 + $0x1cf0] sm:$0xff]
        %v1510 = vld [vmem:[%s469 + $0x1cf8] sm:$0xff]
        %v1511 = vld [vmem:[%s469 + $0x1d00] sm:$0xff]
        %v1512 = vld [vmem:[%s469 + $0x1d08] sm:$0xff]
        %v1513 = vld [vmem:[%s469 + $0x1d10] sm:$0xff]
        %v1514 = vld [vmem:[%s469 + $0x1d18] sm:$0xff]
        %v1515 = vld [vmem:[%s469 + $0x1d20] sm:$0xff]
        %v1516 = vld [vmem:[%s469 + $0x1d28] sm:$0xff]
        %v1517 = vld [vmem:[%s469 + $0x1d30] sm:$0xff]
        %v1518 = vld [vmem:[%s469 + $0x1d38] sm:$0xff]
        %v1519 = vld [vmem:[%s469 + $0x1d40] sm:$0xff]
        %v1520 = vld [vmem:[%s469 + $0x1d48] sm:$0xff]
        %v1521 = vld [vmem:[%s469 + $0x1d50] sm:$0xff]
        %v1522 = vld [vmem:[%s469 + $0x1d58] sm:$0xff]
        %v1523 = vld [vmem:[%s469 + $0x1d60] sm:$0xff]
        %v1524 = vld [vmem:[%s469 + $0x1d68] sm:$0xff]
        %v1525 = vld [vmem:[%s469 + $0x1d70] sm:$0xff]
        %v1526 = vld [vmem:[%s469 + $0x1d78] sm:$0xff]
        %v1527 = vld [vmem:[%s469 + $0x1d80] sm:$0xff]
        %v1528 = vld [vmem:[%s469 + $0x1d88] sm:$0xff]
        %v1529 = vld [vmem:[%s469 + $0x1d90] sm:$0xff]
        %v1530 = vld [vmem:[%s469 + $0x1d98] sm:$0xff]
        %v1531 = vld [vmem:[%s469 + $0x1da0] sm:$0xff]
        %v1532 = vld [vmem:[%s469 + $0x1da8] sm:$0xff]
        %v1533 = vld [vmem:[%s469 + $0x1db0] sm:$0xff]
        %v1534 = vld [vmem:[%s469 + $0x1db8] sm:$0xff]
        %v1535 = vld [vmem:[%s469 + $0x1dc0] sm:$0xff]
        %v1536 = vld [vmem:[%s469 + $0x1dc8] sm:$0xff]
        %v1537 = vld [vmem:[%s469 + $0x1dd0] sm:$0xff]
        %v1538 = vld [vmem:[%s469 + $0x1dd8] sm:$0xff]
        %v1539 = vld [vmem:[%s469 + $0x1de0] sm:$0xff]
        %v1540 = vld [vmem:[%s469 + $0x1de8] sm:$0xff]
        %v1541 = vld [vmem:[%s469 + $0x1df0] sm:$0xff]
        %v1542 = vld [vmem:[%s469 + $0x1df8] sm:$0xff]
        %v1543 = vld [vmem:[%s469 + $0x1e00] sm:$0xff]
        %v1544 = vld [vmem:[%s469 + $0x1e08] sm:$0xff]
        %v1545 = vld [vmem:[%s469 + $0x1e10] sm:$0xff]
        %v1546 = vld [vmem:[%s469 + $0x1e18] sm:$0xff]
        %v1547 = vld [vmem:[%s469 + $0x1e20] sm:$0xff]
        %v1548 = vld [vmem:[%s469 + $0x1e28] sm:$0xff]
        %v1549 = vld [vmem:[%s469 + $0x1e30] sm:$0xff]
        %v1550 = vld [vmem:[%s469 + $0x1e38] sm:$0xff]
        %v1551 = vld [vmem:[%s469 + $0x1e40] sm:$0xff]
        %v1552 = vld [vmem:[%s469 + $0x1e48] sm:$0xff]
        %v1553 = vld [vmem:[%s469 + $0x1e50] sm:$0xff]
        %v1554 = vld [vmem:[%s469 + $0x1e58] sm:$0xff]
        %v1555 = vld [vmem:[%s469 + $0x1e60] sm:$0xff]
        %v1556 = vld [vmem:[%s469 + $0x1e68] sm:$0xff]
        %v1557 = vld [vmem:[%s469 + $0x1e70] sm:$0xff]
        %v1558 = vld [vmem:[%s469 + $0x1e78] sm:$0xff]
        %v1559 = vld [vmem:[%s469 + $0x1e80] sm:$0xff]
        %v1560 = vld [vmem:[%s469 + $0x1e88] sm:$0xff]
        %v1561 = vld [vmem:[%s469 + $0x1e90] sm:$0xff]
        %v1562 = vld [vmem:[%s469 + $0x1e98] sm:$0xff]
        %v1563 = vld [vmem:[%s469 + $0x1ea0] sm:$0xff]
        %v1564 = vld [vmem:[%s469 + $0x1ea8] sm:$0xff]
        %v1565 = vld [vmem:[%s469 + $0x1eb0] sm:$0xff]
        %v1566 = vld [vmem:[%s469 + $0x1eb8] sm:$0xff]
        %v1567 = vld [vmem:[%s469 + $0x1ec0] sm:$0xff]
        %v1568 = vld [vmem:[%s469 + $0x1ec8] sm:$0xff]
        %v1569 = vld [vmem:[%s469 + $0x1ed0] sm:$0xff]
        %v1570 = vld [vmem:[%s469 + $0x1ed8] sm:$0xff]
        %v1571 = vld [vmem:[%s469 + $0x1ee0] sm:$0xff]
        %v1572 = vld [vmem:[%s469 + $0x1ee8] sm:$0xff]
        %v1573 = vld [vmem:[%s469 + $0x1ef0] sm:$0xff]
        %v1574 = vld [vmem:[%s469 + $0x1ef8] sm:$0xff]
        %v1575 = vld [vmem:[%s469 + $0x1f00] sm:$0xff]
        %v1576 = vld [vmem:[%s469 + $0x1f08] sm:$0xff]
        %v1577 = vld [vmem:[%s469 + $0x1f10] sm:$0xff]
        %v1578 = vld [vmem:[%s469 + $0x1f18] sm:$0xff]
        %v1579 = vld [vmem:[%s469 + $0x1f20] sm:$0xff]
        %v1580 = vld [vmem:[%s469 + $0x1f28] sm:$0xff]
        %v1581 = vld [vmem:[%s469 + $0x1f30] sm:$0xff]
        %v1582 = vld [vmem:[%s469 + $0x1f38] sm:$0xff]
        %v1583 = vld [vmem:[%s469 + $0x1f40] sm:$0xff]
        %v1584 = vld [vmem:[%s469 + $0x1f48] sm:$0xff]
        %v1585 = vld [vmem:[%s469 + $0x1f50] sm:$0xff]
        %v1586 = vld [vmem:[%s469 + $0x1f58] sm:$0xff]
        %v1587 = vld [vmem:[%s469 + $0x1f60] sm:$0xff]
        %v1588 = vld [vmem:[%s469 + $0x1f68] sm:$0xff]
        %v1589 = vld [vmem:[%s469 + $0x1f70] sm:$0xff]
        %v1590 = vld [vmem:[%s469 + $0x1f78] sm:$0xff]
        %v1591 = vld [vmem:[%s469 + $0x1f80] sm:$0xff]
        %v1592 = vld [vmem:[%s469 + $0x1f88] sm:$0xff]
        %v1593 = vld [vmem:[%s469 + $0x1f90] sm:$0xff]
        %v1594 = vld [vmem:[%s469 + $0x1f98] sm:$0xff]
        %v1595 = vld [vmem:[%s469 + $0x1fa0] sm:$0xff]
        %v1596 = vld [vmem:[%s469 + $0x1fa8] sm:$0xff]
        %v1597 = vld [vmem:[%s469 + $0x1fb0] sm:$0xff]
        %v1598 = vld [vmem:[%s469 + $0x1fb8] sm:$0xff]
        %v1599 = vld [vmem:[%s469 + $0x1fc0] sm:$0xff]
        %v1600 = vld [vmem:[%s469 + $0x1fc8] sm:$0xff]
        %v1601 = vld [vmem:[%s469 + $0x1fd0] sm:$0xff]
        %v1602 = vld [vmem:[%s469 + $0x1fd8] sm:$0xff]
        %v1603 = vld [vmem:[%s469 + $0x1fe0] sm:$0xff]
        %v1604 = vld [vmem:[%s469 + $0x1fe8] sm:$0xff]
        %v1605 = vld [vmem:[%s469 + $0x1ff0] sm:$0xff]
        %v1606 = vld [vmem:[%s469 + $0x1ff8] sm:$0xff]
        %s1607 = smul.u32 %s31, 256
        %v1608 = vld [vmem:[%s478] sm:$0x3]
        %v1610 = vlaneseq
        %v1611 = vshrl.u32 %v1610, 7
        %v1612 = vsub.s32 0, %v1611
        %v1613 = vrot.slane %v1608, %v1612
        %v1614 = vlaneseq
        %v1615 = vshrl.u32 %v1614, 7
        %v1616 = vsub.s32 1, %v1615
        %v1617 = vrot.slane %v1608, %v1616
        %1620 = vmatprep.subr.mxu0 %v584
        %1621 = vmatpush1.msra.mxu0 %v583
        %1622 = vmatprep.subr.mxu0 %v586
        %1623 = vmatpush1.msra.mxu0 %v585
        %1624 = vmatprep.subr.mxu0 %v588
        %1625 = vmatpush1.msra.mxu0 %v587
        %1626 = vmatprep.subr.mxu0 %v590
        %1627 = vmatpush1.msra.mxu0 %v589
        %1628 = vmatprep.subr.mxu0 %v592
        %1629 = vmatpush1.msra.mxu0 %v591
        %1630 = vmatprep.subr.mxu0 %v594
        %1631 = vmatpush1.msra.mxu0 %v593
        %1632 = vmatprep.subr.mxu0 %v596
        %1633 = vmatpush1.msra.mxu0 %v595
        %1634 = vmatprep.subr.mxu0 %v598
        %1635 = vmatpush1.msra.mxu0 %v597
        %1636 = vmatprep.subr.mxu0 %v600
        %1637 = vmatpush1.msra.mxu0 %v599
        %1638 = vmatprep.subr.mxu0 %v602
        %1639 = vmatpush1.msra.mxu0 %v601
        %1640 = vmatprep.subr.mxu0 %v604
        %1641 = vmatpush1.msra.mxu0 %v603
        %1642 = vmatprep.subr.mxu0 %v606
        %1643 = vmatpush1.msra.mxu0 %v605
        %1644 = vmatprep.subr.mxu0 %v608
        %1645 = vmatpush1.msra.mxu0 %v607
        %1646 = vmatprep.subr.mxu0 %v610
        %1647 = vmatpush1.msra.mxu0 %v609
        %1648 = vmatprep.subr.mxu0 %v612
        %1649 = vmatpush1.msra.mxu0 %v611
        %1650 = vmatprep.subr.mxu0 %v614
        %1651 = vmatpush1.msra.mxu0 %v613
        %1652 = vmatprep.subr.mxu0 %v616
        %1653 = vmatpush1.msra.mxu0 %v615
        %1654 = vmatprep.subr.mxu0 %v618
        %1655 = vmatpush1.msra.mxu0 %v617
        %1656 = vmatprep.subr.mxu0 %v620
        %1657 = vmatpush1.msra.mxu0 %v619
        %1658 = vmatprep.subr.mxu0 %v622
        %1659 = vmatpush1.msra.mxu0 %v621
        %1660 = vmatprep.subr.mxu0 %v624
        %1661 = vmatpush1.msra.mxu0 %v623
        %1662 = vmatprep.subr.mxu0 %v626
        %1663 = vmatpush1.msra.mxu0 %v625
        %1664 = vmatprep.subr.mxu0 %v628
        %1665 = vmatpush1.msra.mxu0 %v627
        %1666 = vmatprep.subr.mxu0 %v630
        %1667 = vmatpush1.msra.mxu0 %v629
        %1668 = vmatprep.subr.mxu0 %v632
        %1669 = vmatpush1.msra.mxu0 %v631
        %1670 = vmatprep.subr.mxu0 %v634
        %1671 = vmatpush1.msra.mxu0 %v633
        %1672 = vmatprep.subr.mxu0 %v636
        %1673 = vmatpush1.msra.mxu0 %v635
        %1674 = vmatprep.subr.mxu0 %v638
        %1675 = vmatpush1.msra.mxu0 %v637
        %1676 = vmatprep.subr.mxu0 %v640
        %1677 = vmatpush1.msra.mxu0 %v639
        %1678 = vmatprep.subr.mxu0 %v642
        %1679 = vmatpush1.msra.mxu0 %v641
        %1680 = vmatprep.subr.mxu0 %v644
        %1681 = vmatpush1.msra.mxu0 %v643
        %1682 = vmatprep.subr.mxu0 %v646
        %1683 = vmatpush1.msra.mxu0 %v645
        %1684 = vmatprep.mubr.f32.mxu0 %v552
        %1685 = vmatmul.mubr.f32.gmra.mrb[0].mxu0 %v551
        %v1686 = vpop.f32.mrb[0].mxu0
        %v1687 = vadd.f32 %v1613, %v1686
        %v1688 = vpop.f32.mrb[0].mxu0
        %v1689 = vadd.f32 %v1617, %v1688
        %1690 = vdwg.mxu0
        %1691 = vmatprep.subr.mxu0 %v648
        %1692 = vmatpush1.msra.mxu0 %v647
        %1693 = vmatprep.subr.mxu0 %v650
        %1694 = vmatpush1.msra.mxu0 %v649
        %1695 = vmatprep.subr.mxu0 %v652
        %1696 = vmatpush1.msra.mxu0 %v651
        %1697 = vmatprep.subr.mxu0 %v654
        %1698 = vmatpush1.msra.mxu0 %v653
        %1699 = vmatprep.subr.mxu0 %v656
        %1700 = vmatpush1.msra.mxu0 %v655
        %1701 = vmatprep.subr.mxu0 %v658
        %1702 = vmatpush1.msra.mxu0 %v657
        %1703 = vmatprep.subr.mxu0 %v660
        %1704 = vmatpush1.msra.mxu0 %v659
        %1705 = vmatprep.subr.mxu0 %v662
        %1706 = vmatpush1.msra.mxu0 %v661
        %1707 = vmatprep.subr.mxu0 %v664
        %1708 = vmatpush1.msra.mxu0 %v663
        %1709 = vmatprep.subr.mxu0 %v666
        %1710 = vmatpush1.msra.mxu0 %v665
        %1711 = vmatprep.subr.mxu0 %v668
        %1712 = vmatpush1.msra.mxu0 %v667
        %1713 = vmatprep.subr.mxu0 %v670
        %1714 = vmatpush1.msra.mxu0 %v669
        %1715 = vmatprep.subr.mxu0 %v672
        %1716 = vmatpush1.msra.mxu0 %v671
        %1717 = vmatprep.subr.mxu0 %v674
        %1718 = vmatpush1.msra.mxu0 %v673
        %1719 = vmatprep.subr.mxu0 %v676
        %1720 = vmatpush1.msra.mxu0 %v675
        %1721 = vmatprep.subr.mxu0 %v678
        %1722 = vmatpush1.msra.mxu0 %v677
        %1723 = vmatprep.subr.mxu0 %v680
        %1724 = vmatpush1.msra.mxu0 %v679
        %1725 = vmatprep.subr.mxu0 %v682
        %1726 = vmatpush1.msra.mxu0 %v681
        %1727 = vmatprep.subr.mxu0 %v684
        %1728 = vmatpush1.msra.mxu0 %v683
        %1729 = vmatprep.subr.mxu0 %v686
        %1730 = vmatpush1.msra.mxu0 %v685
        %1731 = vmatprep.subr.mxu0 %v688
        %1732 = vmatpush1.msra.mxu0 %v687
        %1733 = vmatprep.subr.mxu0 %v690
        %1734 = vmatpush1.msra.mxu0 %v689
        %1735 = vmatprep.subr.mxu0 %v692
        %1736 = vmatpush1.msra.mxu0 %v691
        %1737 = vmatprep.subr.mxu0 %v694
        %1738 = vmatpush1.msra.mxu0 %v693
        %1739 = vmatprep.subr.mxu0 %v696
        %1740 = vmatpush1.msra.mxu0 %v695
        %1741 = vmatprep.subr.mxu0 %v698
        %1742 = vmatpush1.msra.mxu0 %v697
        %1743 = vmatprep.subr.mxu0 %v700
        %1744 = vmatpush1.msra.mxu0 %v699
        %1745 = vmatprep.subr.mxu0 %v702
        %1746 = vmatpush1.msra.mxu0 %v701
        %1747 = vmatprep.subr.mxu0 %v704
        %1748 = vmatpush1.msra.mxu0 %v703
        %1749 = vmatprep.subr.mxu0 %v706
        %1750 = vmatpush1.msra.mxu0 %v705
        %1751 = vmatprep.subr.mxu0 %v708
        %1752 = vmatpush1.msra.mxu0 %v707
        %1753 = vmatprep.subr.mxu0 %v710
        %1754 = vmatpush1.msra.mxu0 %v709
        %1755 = vmatprep.mubr.f32.mxu0 %v554
        %1756 = vmatmul.mubr.f32.gmra.mrb[0].mxu0 %v553
        %v1757 = vpop.f32.mrb[0].mxu0
        %v1758 = vadd.f32 %v1687, %v1757
        %v1759 = vpop.f32.mrb[0].mxu0
        %v1760 = vadd.f32 %v1689, %v1759
        %1761 = vdwg.mxu0
        %1762 = vmatprep.subr.mxu0 %v712
        %1763 = vmatpush1.msra.mxu0 %v711
        %1764 = vmatprep.subr.mxu0 %v714
        %1765 = vmatpush1.msra.mxu0 %v713
        %1766 = vmatprep.subr.mxu0 %v716
        %1767 = vmatpush1.msra.mxu0 %v715
        %1768 = vmatprep.subr.mxu0 %v718
        %1769 = vmatpush1.msra.mxu0 %v717
        %1770 = vmatprep.subr.mxu0 %v720
        %1771 = vmatpush1.msra.mxu0 %v719
        %1772 = vmatprep.subr.mxu0 %v722
        %1773 = vmatpush1.msra.mxu0 %v721
        %1774 = vmatprep.subr.mxu0 %v724
        %1775 = vmatpush1.msra.mxu0 %v723
        %1776 = vmatprep.subr.mxu0 %v726
        %1777 = vmatpush1.msra.mxu0 %v725
        %1778 = vmatprep.subr.mxu0 %v728
        %1779 = vmatpush1.msra.mxu0 %v727
        %1780 = vmatprep.subr.mxu0 %v730
        %1781 = vmatpush1.msra.mxu0 %v729
        %1782 = vmatprep.subr.mxu0 %v732
        %1783 = vmatpush1.msra.mxu0 %v731
        %1784 = vmatprep.subr.mxu0 %v734
        %1785 = vmatpush1.msra.mxu0 %v733
        %1786 = vmatprep.subr.mxu0 %v736
        %1787 = vmatpush1.msra.mxu0 %v735
        %1788 = vmatprep.subr.mxu0 %v738
        %1789 = vmatpush1.msra.mxu0 %v737
        %1790 = vmatprep.subr.mxu0 %v740
        %1791 = vmatpush1.msra.mxu0 %v739
        %1792 = vmatprep.subr.mxu0 %v742
        %1793 = vmatpush1.msra.mxu0 %v741
        %1794 = vmatprep.subr.mxu0 %v744
        %1795 = vmatpush1.msra.mxu0 %v743
        %1796 = vmatprep.subr.mxu0 %v746
        %1797 = vmatpush1.msra.mxu0 %v745
        %1798 = vmatprep.subr.mxu0 %v748
        %1799 = vmatpush1.msra.mxu0 %v747
        %1800 = vmatprep.subr.mxu0 %v750
        %1801 = vmatpush1.msra.mxu0 %v749
        %1802 = vmatprep.subr.mxu0 %v752
        %1803 = vmatpush1.msra.mxu0 %v751
        %1804 = vmatprep.subr.mxu0 %v754
        %1805 = vmatpush1.msra.mxu0 %v753
        %1806 = vmatprep.subr.mxu0 %v756
        %1807 = vmatpush1.msra.mxu0 %v755
        %1808 = vmatprep.subr.mxu0 %v758
        %1809 = vmatpush1.msra.mxu0 %v757
        %1810 = vmatprep.subr.mxu0 %v760
        %1811 = vmatpush1.msra.mxu0 %v759
        %1812 = vmatprep.subr.mxu0 %v762
        %1813 = vmatpush1.msra.mxu0 %v761
        %1814 = vmatprep.subr.mxu0 %v764
        %1815 = vmatpush1.msra.mxu0 %v763
        %1816 = vmatprep.subr.mxu0 %v766
        %1817 = vmatpush1.msra.mxu0 %v765
        %1818 = vmatprep.subr.mxu0 %v768
        %1819 = vmatpush1.msra.mxu0 %v767
        %1820 = vmatprep.subr.mxu0 %v770
        %1821 = vmatpush1.msra.mxu0 %v769
        %1822 = vmatprep.subr.mxu0 %v772
        %1823 = vmatpush1.msra.mxu0 %v771
        %1824 = vmatprep.subr.mxu0 %v774
        %1825 = vmatpush1.msra.mxu0 %v773
        %1826 = vmatprep.mubr.f32.mxu0 %v556
        %1827 = vmatmul.mubr.f32.gmra.mrb[0].mxu0 %v555
        %v1828 = vpop.f32.mrb[0].mxu0
        %v1829 = vadd.f32 %v1758, %v1828
        %v1830 = vpop.f32.mrb[0].mxu0
        %v1831 = vadd.f32 %v1760, %v1830
        %1832 = vdwg.mxu0
        %1833 = vmatprep.subr.mxu0 %v776
        %1834 = vmatpush1.msra.mxu0 %v775
        %1835 = vmatprep.subr.mxu0 %v778
        %1836 = vmatpush1.msra.mxu0 %v777
        %1837 = vmatprep.subr.mxu0 %v780
        %1838 = vmatpush1.msra.mxu0 %v779
        %1839 = vmatprep.subr.mxu0 %v782
        %1840 = vmatpush1.msra.mxu0 %v781
        %1841 = vmatprep.subr.mxu0 %v784
        %1842 = vmatpush1.msra.mxu0 %v783
        %1843 = vmatprep.subr.mxu0 %v786
        %1844 = vmatpush1.msra.mxu0 %v785
        %1845 = vmatprep.subr.mxu0 %v788
        %1846 = vmatpush1.msra.mxu0 %v787
        %1847 = vmatprep.subr.mxu0 %v790
        %1848 = vmatpush1.msra.mxu0 %v789
        %1849 = vmatprep.subr.mxu0 %v792
        %1850 = vmatpush1.msra.mxu0 %v791
        %1851 = vmatprep.subr.mxu0 %v794
        %1852 = vmatpush1.msra.mxu0 %v793
        %1853 = vmatprep.subr.mxu0 %v796
        %1854 = vmatpush1.msra.mxu0 %v795
        %1855 = vmatprep.subr.mxu0 %v798
        %1856 = vmatpush1.msra.mxu0 %v797
        %1857 = vmatprep.subr.mxu0 %v800
        %1858 = vmatpush1.msra.mxu0 %v799
        %1859 = vmatprep.subr.mxu0 %v802
        %1860 = vmatpush1.msra.mxu0 %v801
        %1861 = vmatprep.subr.mxu0 %v804
        %1862 = vmatpush1.msra.mxu0 %v803
        %1863 = vmatprep.subr.mxu0 %v806
        %1864 = vmatpush1.msra.mxu0 %v805
        %1865 = vmatprep.subr.mxu0 %v808
        %1866 = vmatpush1.msra.mxu0 %v807
        %1867 = vmatprep.subr.mxu0 %v810
        %1868 = vmatpush1.msra.mxu0 %v809
        %1869 = vmatprep.subr.mxu0 %v812
        %1870 = vmatpush1.msra.mxu0 %v811
        %1871 = vmatprep.subr.mxu0 %v814
        %1872 = vmatpush1.msra.mxu0 %v813
        %1873 = vmatprep.subr.mxu0 %v816
        %1874 = vmatpush1.msra.mxu0 %v815
        %1875 = vmatprep.subr.mxu0 %v818
        %1876 = vmatpush1.msra.mxu0 %v817
        %1877 = vmatprep.subr.mxu0 %v820
        %1878 = vmatpush1.msra.mxu0 %v819
        %1879 = vmatprep.subr.mxu0 %v822
        %1880 = vmatpush1.msra.mxu0 %v821
        %1881 = vmatprep.subr.mxu0 %v824
        %1882 = vmatpush1.msra.mxu0 %v823
        %1883 = vmatprep.subr.mxu0 %v826
        %1884 = vmatpush1.msra.mxu0 %v825
        %1885 = vmatprep.subr.mxu0 %v828
        %1886 = vmatpush1.msra.mxu0 %v827
        %1887 = vmatprep.subr.mxu0 %v830
        %1888 = vmatpush1.msra.mxu0 %v829
        %1889 = vmatprep.subr.mxu0 %v832
        %1890 = vmatpush1.msra.mxu0 %v831
        %1891 = vmatprep.subr.mxu0 %v834
        %1892 = vmatpush1.msra.mxu0 %v833
        %1893 = vmatprep.subr.mxu0 %v836
        %1894 = vmatpush1.msra.mxu0 %v835
        %1895 = vmatprep.subr.mxu0 %v838
        %1896 = vmatpush1.msra.mxu0 %v837
        %1897 = vmatprep.mubr.f32.mxu0 %v558
        %1898 = vmatmul.mubr.f32.gmra.mrb[0].mxu0 %v557
        %v1899 = vpop.f32.mrb[0].mxu0
        %v1900 = vadd.f32 %v1829, %v1899
        %v1901 = vpop.f32.mrb[0].mxu0
        %v1902 = vadd.f32 %v1831, %v1901
        %1903 = vdwg.mxu0
        %1904 = vmatprep.subr.mxu0 %v840
        %1905 = vmatpush1.msra.mxu0 %v839
        %1906 = vmatprep.subr.mxu0 %v842
        %1907 = vmatpush1.msra.mxu0 %v841
        %1908 = vmatprep.subr.mxu0 %v844
        %1909 = vmatpush1.msra.mxu0 %v843
        %1910 = vmatprep.subr.mxu0 %v846
        %1911 = vmatpush1.msra.mxu0 %v845
        %1912 = vmatprep.subr.mxu0 %v848
        %1913 = vmatpush1.msra.mxu0 %v847
        %1914 = vmatprep.subr.mxu0 %v850
        %1915 = vmatpush1.msra.mxu0 %v849
        %1916 = vmatprep.subr.mxu0 %v852
        %1917 = vmatpush1.msra.mxu0 %v851
        %1918 = vmatprep.subr.mxu0 %v854
        %1919 = vmatpush1.msra.mxu0 %v853
        %1920 = vmatprep.subr.mxu0 %v856
        %1921 = vmatpush1.msra.mxu0 %v855
        %1922 = vmatprep.subr.mxu0 %v858
        %1923 = vmatpush1.msra.mxu0 %v857
        %1924 = vmatprep.subr.mxu0 %v860
        %1925 = vmatpush1.msra.mxu0 %v859
        %1926 = vmatprep.subr.mxu0 %v862
        %1927 = vmatpush1.msra.mxu0 %v861
        %1928 = vmatprep.subr.mxu0 %v864
        %1929 = vmatpush1.msra.mxu0 %v863
        %1930 = vmatprep.subr.mxu0 %v866
        %1931 = vmatpush1.msra.mxu0 %v865
        %1932 = vmatprep.subr.mxu0 %v868
        %1933 = vmatpush1.msra.mxu0 %v867
        %1934 = vmatprep.subr.mxu0 %v870
        %1935 = vmatpush1.msra.mxu0 %v869
        %1936 = vmatprep.subr.mxu0 %v872
        %1937 = vmatpush1.msra.mxu0 %v871
        %1938 = vmatprep.subr.mxu0 %v874
        %1939 = vmatpush1.msra.mxu0 %v873
        %1940 = vmatprep.subr.mxu0 %v876
        %1941 = vmatpush1.msra.mxu0 %v875
        %1942 = vmatprep.subr.mxu0 %v878
        %1943 = vmatpush1.msra.mxu0 %v877
        %1944 = vmatprep.subr.mxu0 %v880
        %1945 = vmatpush1.msra.mxu0 %v879
        %1946 = vmatprep.subr.mxu0 %v882
        %1947 = vmatpush1.msra.mxu0 %v881
        %1948 = vmatprep.subr.mxu0 %v884
        %1949 = vmatpush1.msra.mxu0 %v883
        %1950 = vmatprep.subr.mxu0 %v886
        %1951 = vmatpush1.msra.mxu0 %v885
        %1952 = vmatprep.subr.mxu0 %v888
        %1953 = vmatpush1.msra.mxu0 %v887
        %1954 = vmatprep.subr.mxu0 %v890
        %1955 = vmatpush1.msra.mxu0 %v889
        %1956 = vmatprep.subr.mxu0 %v892
        %1957 = vmatpush1.msra.mxu0 %v891
        %1958 = vmatprep.subr.mxu0 %v894
        %1959 = vmatpush1.msra.mxu0 %v893
        %1960 = vmatprep.subr.mxu0 %v896
        %1961 = vmatpush1.msra.mxu0 %v895
        %1962 = vmatprep.subr.mxu0 %v898
        %1963 = vmatpush1.msra.mxu0 %v897
        %1964 = vmatprep.subr.mxu0 %v900
        %1965 = vmatpush1.msra.mxu0 %v899
        %1966 = vmatprep.subr.mxu0 %v902
        %1967 = vmatpush1.msra.mxu0 %v901
        %1968 = vmatprep.mubr.f32.mxu0 %v560
        %1969 = vmatmul.mubr.f32.gmra.mrb[0].mxu0 %v559
        %v1970 = vpop.f32.mrb[0].mxu0
        %v1971 = vadd.f32 %v1900, %v1970
        %v1972 = vpop.f32.mrb[0].mxu0
        %v1973 = vadd.f32 %v1902, %v1972
        %1974 = vdwg.mxu0
        %1975 = vmatprep.subr.mxu0 %v904
        %1976 = vmatpush1.msra.mxu0 %v903
        %1977 = vmatprep.subr.mxu0 %v906
        %1978 = vmatpush1.msra.mxu0 %v905
        %1979 = vmatprep.subr.mxu0 %v908
        %1980 = vmatpush1.msra.mxu0 %v907
        %1981 = vmatprep.subr.mxu0 %v910
        %1982 = vmatpush1.msra.mxu0 %v909
        %1983 = vmatprep.subr.mxu0 %v912
        %1984 = vmatpush1.msra.mxu0 %v911
        %1985 = vmatprep.subr.mxu0 %v914
        %1986 = vmatpush1.msra.mxu0 %v913
        %1987 = vmatprep.subr.mxu0 %v916
        %1988 = vmatpush1.msra.mxu0 %v915
        %1989 = vmatprep.subr.mxu0 %v918
        %1990 = vmatpush1.msra.mxu0 %v917
        %1991 = vmatprep.subr.mxu0 %v920
        %1992 = vmatpush1.msra.mxu0 %v919
        %1993 = vmatprep.subr.mxu0 %v922
        %1994 = vmatpush1.msra.mxu0 %v921
        %1995 = vmatprep.subr.mxu0 %v924
        %1996 = vmatpush1.msra.mxu0 %v923
        %1997 = vmatprep.subr.mxu0 %v926
        %1998 = vmatpush1.msra.mxu0 %v925
        %1999 = vmatprep.subr.mxu0 %v928
        %2000 = vmatpush1.msra.mxu0 %v927
        %2001 = vmatprep.subr.mxu0 %v930
        %2002 = vmatpush1.msra.mxu0 %v929
        %2003 = vmatprep.subr.mxu0 %v932
        %2004 = vmatpush1.msra.mxu0 %v931
        %2005 = vmatprep.subr.mxu0 %v934
        %2006 = vmatpush1.msra.mxu0 %v933
        %2007 = vmatprep.subr.mxu0 %v936
        %2008 = vmatpush1.msra.mxu0 %v935
        %2009 = vmatprep.subr.mxu0 %v938
        %2010 = vmatpush1.msra.mxu0 %v937
        %2011 = vmatprep.subr.mxu0 %v940
        %2012 = vmatpush1.msra.mxu0 %v939
        %2013 = vmatprep.subr.mxu0 %v942
        %2014 = vmatpush1.msra.mxu0 %v941
        %2015 = vmatprep.subr.mxu0 %v944
        %2016 = vmatpush1.msra.mxu0 %v943
        %2017 = vmatprep.subr.mxu0 %v946
        %2018 = vmatpush1.msra.mxu0 %v945
        %2019 = vmatprep.subr.mxu0 %v948
        %2020 = vmatpush1.msra.mxu0 %v947
        %2021 = vmatprep.subr.mxu0 %v950
        %2022 = vmatpush1.msra.mxu0 %v949
        %2023 = vmatprep.subr.mxu0 %v952
        %2024 = vmatpush1.msra.mxu0 %v951
        %2025 = vmatprep.subr.mxu0 %v954
        %2026 = vmatpush1.msra.mxu0 %v953
        %2027 = vmatprep.subr.mxu0 %v956
        %2028 = vmatpush1.msra.mxu0 %v955
        %2029 = vmatprep.subr.mxu0 %v958
        %2030 = vmatpush1.msra.mxu0 %v957
        %2031 = vmatprep.subr.mxu0 %v960
        %2032 = vmatpush1.msra.mxu0 %v959
        %2033 = vmatprep.subr.mxu0 %v962
        %2034 = vmatpush1.msra.mxu0 %v961
        %2035 = vmatprep.subr.mxu0 %v964
        %2036 = vmatpush1.msra.mxu0 %v963
        %2037 = vmatprep.subr.mxu0 %v966
        %2038 = vmatpush1.msra.mxu0 %v965
        %2039 = vmatprep.mubr.f32.mxu0 %v562
        %2040 = vmatmul.mubr.f32.gmra.mrb[0].mxu0 %v561
        %v2041 = vpop.f32.mrb[0].mxu0
        %v2042 = vadd.f32 %v1971, %v2041
        %v2043 = vpop.f32.mrb[0].mxu0
        %v2044 = vadd.f32 %v1973, %v2043
        %2045 = vdwg.mxu0
        %2046 = vmatprep.subr.mxu0 %v968
        %2047 = vmatpush1.msra.mxu0 %v967
        %2048 = vmatprep.subr.mxu0 %v970
        %2049 = vmatpush1.msra.mxu0 %v969
        %2050 = vmatprep.subr.mxu0 %v972
        %2051 = vmatpush1.msra.mxu0 %v971
        %2052 = vmatprep.subr.mxu0 %v974
        %2053 = vmatpush1.msra.mxu0 %v973
        %2054 = vmatprep.subr.mxu0 %v976
        %2055 = vmatpush1.msra.mxu0 %v975
        %2056 = vmatprep.subr.mxu0 %v978
        %2057 = vmatpush1.msra.mxu0 %v977
        %2058 = vmatprep.subr.mxu0 %v980
        %2059 = vmatpush1.msra.mxu0 %v979
        %2060 = vmatprep.subr.mxu0 %v982
        %2061 = vmatpush1.msra.mxu0 %v981
        %2062 = vmatprep.subr.mxu0 %v984
        %2063 = vmatpush1.msra.mxu0 %v983
        %2064 = vmatprep.subr.mxu0 %v986
        %2065 = vmatpush1.msra.mxu0 %v985
        %2066 = vmatprep.subr.mxu0 %v988
        %2067 = vmatpush1.msra.mxu0 %v987
        %2068 = vmatprep.subr.mxu0 %v990
        %2069 = vmatpush1.msra.mxu0 %v989
        %2070 = vmatprep.subr.mxu0 %v992
        %2071 = vmatpush1.msra.mxu0 %v991
        %2072 = vmatprep.subr.mxu0 %v994
        %2073 = vmatpush1.msra.mxu0 %v993
        %2074 = vmatprep.subr.mxu0 %v996
        %2075 = vmatpush1.msra.mxu0 %v995
        %2076 = vmatprep.subr.mxu0 %v998
        %2077 = vmatpush1.msra.mxu0 %v997
        %2078 = vmatprep.subr.mxu0 %v1000
        %2079 = vmatpush1.msra.mxu0 %v999
        %2080 = vmatprep.subr.mxu0 %v1002
        %2081 = vmatpush1.msra.mxu0 %v1001
        %2082 = vmatprep.subr.mxu0 %v1004
        %2083 = vmatpush1.msra.mxu0 %v1003
        %2084 = vmatprep.subr.mxu0 %v1006
        %2085 = vmatpush1.msra.mxu0 %v1005
        %2086 = vmatprep.subr.mxu0 %v1008
        %2087 = vmatpush1.msra.mxu0 %v1007
        %2088 = vmatprep.subr.mxu0 %v1010
        %2089 = vmatpush1.msra.mxu0 %v1009
        %2090 = vmatprep.subr.mxu0 %v1012
        %2091 = vmatpush1.msra.mxu0 %v1011
        %2092 = vmatprep.subr.mxu0 %v1014
        %2093 = vmatpush1.msra.mxu0 %v1013
        %2094 = vmatprep.subr.mxu0 %v1016
        %2095 = vmatpush1.msra.mxu0 %v1015
        %2096 = vmatprep.subr.mxu0 %v1018
        %2097 = vmatpush1.msra.mxu0 %v1017
        %2098 = vmatprep.subr.mxu0 %v1020
        %2099 = vmatpush1.msra.mxu0 %v1019
        %2100 = vmatprep.subr.mxu0 %v1022
        %2101 = vmatpush1.msra.mxu0 %v1021
        %2102 = vmatprep.subr.mxu0 %v1024
        %2103 = vmatpush1.msra.mxu0 %v1023
        %2104 = vmatprep.subr.mxu0 %v1026
        %2105 = vmatpush1.msra.mxu0 %v1025
        %2106 = vmatprep.subr.mxu0 %v1028
        %2107 = vmatpush1.msra.mxu0 %v1027
        %2108 = vmatprep.subr.mxu0 %v1030
        %2109 = vmatpush1.msra.mxu0 %v1029
        %2110 = vmatprep.mubr.f32.mxu0 %v564
        %2111 = vmatmul.mubr.f32.gmra.mrb[0].mxu0 %v563
        %v2112 = vpop.f32.mrb[0].mxu0
        %v2113 = vadd.f32 %v2042, %v2112
        %v2114 = vpop.f32.mrb[0].mxu0
        %v2115 = vadd.f32 %v2044, %v2114
        %2116 = vdwg.mxu0
        %2117 = vmatprep.subr.mxu0 %v1032
        %2118 = vmatpush1.msra.mxu0 %v1031
        %2119 = vmatprep.subr.mxu0 %v1034
        %2120 = vmatpush1.msra.mxu0 %v1033
        %2121 = vmatprep.subr.mxu0 %v1036
        %2122 = vmatpush1.msra.mxu0 %v1035
        %2123 = vmatprep.subr.mxu0 %v1038
        %2124 = vmatpush1.msra.mxu0 %v1037
        %2125 = vmatprep.subr.mxu0 %v1040
        %2126 = vmatpush1.msra.mxu0 %v1039
        %2127 = vmatprep.subr.mxu0 %v1042
        %2128 = vmatpush1.msra.mxu0 %v1041
        %2129 = vmatprep.subr.mxu0 %v1044
        %2130 = vmatpush1.msra.mxu0 %v1043
        %2131 = vmatprep.subr.mxu0 %v1046
        %2132 = vmatpush1.msra.mxu0 %v1045
        %2133 = vmatprep.subr.mxu0 %v1048
        %2134 = vmatpush1.msra.mxu0 %v1047
        %2135 = vmatprep.subr.mxu0 %v1050
        %2136 = vmatpush1.msra.mxu0 %v1049
        %2137 = vmatprep.subr.mxu0 %v1052
        %2138 = vmatpush1.msra.mxu0 %v1051
        %2139 = vmatprep.subr.mxu0 %v1054
        %2140 = vmatpush1.msra.mxu0 %v1053
        %2141 = vmatprep.subr.mxu0 %v1056
        %2142 = vmatpush1.msra.mxu0 %v1055
        %2143 = vmatprep.subr.mxu0 %v1058
        %2144 = vmatpush1.msra.mxu0 %v1057
        %2145 = vmatprep.subr.mxu0 %v1060
        %2146 = vmatpush1.msra.mxu0 %v1059
        %2147 = vmatprep.subr.mxu0 %v1062
        %2148 = vmatpush1.msra.mxu0 %v1061
        %2149 = vmatprep.subr.mxu0 %v1064
        %2150 = vmatpush1.msra.mxu0 %v1063
        %2151 = vmatprep.subr.mxu0 %v1066
        %2152 = vmatpush1.msra.mxu0 %v1065
        %2153 = vmatprep.subr.mxu0 %v1068
        %2154 = vmatpush1.msra.mxu0 %v1067
        %2155 = vmatprep.subr.mxu0 %v1070
        %2156 = vmatpush1.msra.mxu0 %v1069
        %2157 = vmatprep.subr.mxu0 %v1072
        %2158 = vmatpush1.msra.mxu0 %v1071
        %2159 = vmatprep.subr.mxu0 %v1074
        %2160 = vmatpush1.msra.mxu0 %v1073
        %2161 = vmatprep.subr.mxu0 %v1076
        %2162 = vmatpush1.msra.mxu0 %v1075
        %2163 = vmatprep.subr.mxu0 %v1078
        %2164 = vmatpush1.msra.mxu0 %v1077
        %2165 = vmatprep.subr.mxu0 %v1080
        %2166 = vmatpush1.msra.mxu0 %v1079
        %2167 = vmatprep.subr.mxu0 %v1082
        %2168 = vmatpush1.msra.mxu0 %v1081
        %2169 = vmatprep.subr.mxu0 %v1084
        %2170 = vmatpush1.msra.mxu0 %v1083
        %2171 = vmatprep.subr.mxu0 %v1086
        %2172 = vmatpush1.msra.mxu0 %v1085
        %2173 = vmatprep.subr.mxu0 %v1088
        %2174 = vmatpush1.msra.mxu0 %v1087
        %2175 = vmatprep.subr.mxu0 %v1090
        %2176 = vmatpush1.msra.mxu0 %v1089
        %2177 = vmatprep.subr.mxu0 %v1092
        %2178 = vmatpush1.msra.mxu0 %v1091
        %2179 = vmatprep.subr.mxu0 %v1094
        %2180 = vmatpush1.msra.mxu0 %v1093
        %2181 = vmatprep.mubr.f32.mxu0 %v566
        %2182 = vmatmul.mubr.f32.gmra.mrb[0].mxu0 %v565
        %v2183 = vpop.f32.mrb[0].mxu0
        %v2184 = vadd.f32 %v2113, %v2183
        %v2185 = vpop.f32.mrb[0].mxu0
        %v2186 = vadd.f32 %v2115, %v2185
        %2187 = vdwg.mxu0
        %2188 = vmatprep.subr.mxu0 %v1096
        %2189 = vmatpush1.msra.mxu0 %v1095
        %2190 = vmatprep.subr.mxu0 %v1098
        %2191 = vmatpush1.msra.mxu0 %v1097
        %2192 = vmatprep.subr.mxu0 %v1100
        %2193 = vmatpush1.msra.mxu0 %v1099
        %2194 = vmatprep.subr.mxu0 %v1102
        %2195 = vmatpush1.msra.mxu0 %v1101
        %2196 = vmatprep.subr.mxu0 %v1104
        %2197 = vmatpush1.msra.mxu0 %v1103
        %2198 = vmatprep.subr.mxu0 %v1106
        %2199 = vmatpush1.msra.mxu0 %v1105
        %2200 = vmatprep.subr.mxu0 %v1108
        %2201 = vmatpush1.msra.mxu0 %v1107
        %2202 = vmatprep.subr.mxu0 %v1110
        %2203 = vmatpush1.msra.mxu0 %v1109
        %2204 = vmatprep.subr.mxu0 %v1112
        %2205 = vmatpush1.msra.mxu0 %v1111
        %2206 = vmatprep.subr.mxu0 %v1114
        %2207 = vmatpush1.msra.mxu0 %v1113
        %2208 = vmatprep.subr.mxu0 %v1116
        %2209 = vmatpush1.msra.mxu0 %v1115
        %2210 = vmatprep.subr.mxu0 %v1118
        %2211 = vmatpush1.msra.mxu0 %v1117
        %2212 = vmatprep.subr.mxu0 %v1120
        %2213 = vmatpush1.msra.mxu0 %v1119
        %2214 = vmatprep.subr.mxu0 %v1122
        %2215 = vmatpush1.msra.mxu0 %v1121
        %2216 = vmatprep.subr.mxu0 %v1124
        %2217 = vmatpush1.msra.mxu0 %v1123
        %2218 = vmatprep.subr.mxu0 %v1126
        %2219 = vmatpush1.msra.mxu0 %v1125
        %2220 = vmatprep.subr.mxu0 %v1128
        %2221 = vmatpush1.msra.mxu0 %v1127
        %2222 = vmatprep.subr.mxu0 %v1130
        %2223 = vmatpush1.msra.mxu0 %v1129
        %2224 = vmatprep.subr.mxu0 %v1132
        %2225 = vmatpush1.msra.mxu0 %v1131
        %2226 = vmatprep.subr.mxu0 %v1134
        %2227 = vmatpush1.msra.mxu0 %v1133
        %2228 = vmatprep.subr.mxu0 %v1136
        %2229 = vmatpush1.msra.mxu0 %v1135
        %2230 = vmatprep.subr.mxu0 %v1138
        %2231 = vmatpush1.msra.mxu0 %v1137
        %2232 = vmatprep.subr.mxu0 %v1140
        %2233 = vmatpush1.msra.mxu0 %v1139
        %2234 = vmatprep.subr.mxu0 %v1142
        %2235 = vmatpush1.msra.mxu0 %v1141
        %2236 = vmatprep.subr.mxu0 %v1144
        %2237 = vmatpush1.msra.mxu0 %v1143
        %2238 = vmatprep.subr.mxu0 %v1146
        %2239 = vmatpush1.msra.mxu0 %v1145
        %2240 = vmatprep.subr.mxu0 %v1148
        %2241 = vmatpush1.msra.mxu0 %v1147
        %2242 = vmatprep.subr.mxu0 %v1150
        %2243 = vmatpush1.msra.mxu0 %v1149
        %2244 = vmatprep.subr.mxu0 %v1152
        %2245 = vmatpush1.msra.mxu0 %v1151
        %2246 = vmatprep.subr.mxu0 %v1154
        %2247 = vmatpush1.msra.mxu0 %v1153
        %2248 = vmatprep.subr.mxu0 %v1156
        %2249 = vmatpush1.msra.mxu0 %v1155
        %2250 = vmatprep.subr.mxu0 %v1158
        %2251 = vmatpush1.msra.mxu0 %v1157
        %2252 = vmatprep.mubr.f32.mxu0 %v568
        %2253 = vmatmul.mubr.f32.gmra.mrb[0].mxu0 %v567
        %v2254 = vpop.f32.mrb[0].mxu0
        %v2255 = vadd.f32 %v2184, %v2254
        %v2256 = vpop.f32.mrb[0].mxu0
        %v2257 = vadd.f32 %v2186, %v2256
        %2258 = vdwg.mxu0
        %2259 = vmatprep.subr.mxu0 %v1160
        %2260 = vmatpush1.msra.mxu0 %v1159
        %2261 = vmatprep.subr.mxu0 %v1162
        %2262 = vmatpush1.msra.mxu0 %v1161
        %2263 = vmatprep.subr.mxu0 %v1164
        %2264 = vmatpush1.msra.mxu0 %v1163
        %2265 = vmatprep.subr.mxu0 %v1166
        %2266 = vmatpush1.msra.mxu0 %v1165
        %2267 = vmatprep.subr.mxu0 %v1168
        %2268 = vmatpush1.msra.mxu0 %v1167
        %2269 = vmatprep.subr.mxu0 %v1170
        %2270 = vmatpush1.msra.mxu0 %v1169
        %2271 = vmatprep.subr.mxu0 %v1172
        %2272 = vmatpush1.msra.mxu0 %v1171
        %2273 = vmatprep.subr.mxu0 %v1174
        %2274 = vmatpush1.msra.mxu0 %v1173
        %2275 = vmatprep.subr.mxu0 %v1176
        %2276 = vmatpush1.msra.mxu0 %v1175
        %2277 = vmatprep.subr.mxu0 %v1178
        %2278 = vmatpush1.msra.mxu0 %v1177
        %2279 = vmatprep.subr.mxu0 %v1180
        %2280 = vmatpush1.msra.mxu0 %v1179
        %2281 = vmatprep.subr.mxu0 %v1182
        %2282 = vmatpush1.msra.mxu0 %v1181
        %2283 = vmatprep.subr.mxu0 %v1184
        %2284 = vmatpush1.msra.mxu0 %v1183
        %2285 = vmatprep.subr.mxu0 %v1186
        %2286 = vmatpush1.msra.mxu0 %v1185
        %2287 = vmatprep.subr.mxu0 %v1188
        %2288 = vmatpush1.msra.mxu0 %v1187
        %2289 = vmatprep.subr.mxu0 %v1190
        %2290 = vmatpush1.msra.mxu0 %v1189
        %2291 = vmatprep.subr.mxu0 %v1192
        %2292 = vmatpush1.msra.mxu0 %v1191
        %2293 = vmatprep.subr.mxu0 %v1194
        %2294 = vmatpush1.msra.mxu0 %v1193
        %2295 = vmatprep.subr.mxu0 %v1196
        %2296 = vmatpush1.msra.mxu0 %v1195
        %2297 = vmatprep.subr.mxu0 %v1198
        %2298 = vmatpush1.msra.mxu0 %v1197
        %2299 = vmatprep.subr.mxu0 %v1200
        %2300 = vmatpush1.msra.mxu0 %v1199
        %2301 = vmatprep.subr.mxu0 %v1202
        %2302 = vmatpush1.msra.mxu0 %v1201
        %2303 = vmatprep.subr.mxu0 %v1204
        %2304 = vmatpush1.msra.mxu0 %v1203
        %2305 = vmatprep.subr.mxu0 %v1206
        %2306 = vmatpush1.msra.mxu0 %v1205
        %2307 = vmatprep.subr.mxu0 %v1208
        %2308 = vmatpush1.msra.mxu0 %v1207
        %2309 = vmatprep.subr.mxu0 %v1210
        %2310 = vmatpush1.msra.mxu0 %v1209
        %2311 = vmatprep.subr.mxu0 %v1212
        %2312 = vmatpush1.msra.mxu0 %v1211
        %2313 = vmatprep.subr.mxu0 %v1214
        %2314 = vmatpush1.msra.mxu0 %v1213
        %2315 = vmatprep.subr.mxu0 %v1216
        %2316 = vmatpush1.msra.mxu0 %v1215
        %2317 = vmatprep.subr.mxu0 %v1218
        %2318 = vmatpush1.msra.mxu0 %v1217
        %2319 = vmatprep.subr.mxu0 %v1220
        %2320 = vmatpush1.msra.mxu0 %v1219
        %2321 = vmatprep.subr.mxu0 %v1222
        %2322 = vmatpush1.msra.mxu0 %v1221
        %2323 = vmatprep.mubr.f32.mxu0 %v570
        %2324 = vmatmul.mubr.f32.gmra.mrb[0].mxu0 %v569
        %v2325 = vpop.f32.mrb[0].mxu0
        %v2326 = vadd.f32 %v2255, %v2325
        %v2327 = vpop.f32.mrb[0].mxu0
        %v2328 = vadd.f32 %v2257, %v2327
        %2329 = vdwg.mxu0
        %2330 = vmatprep.subr.mxu0 %v1224
        %2331 = vmatpush1.msra.mxu0 %v1223
        %2332 = vmatprep.subr.mxu0 %v1226
        %2333 = vmatpush1.msra.mxu0 %v1225
        %2334 = vmatprep.subr.mxu0 %v1228
        %2335 = vmatpush1.msra.mxu0 %v1227
        %2336 = vmatprep.subr.mxu0 %v1230
        %2337 = vmatpush1.msra.mxu0 %v1229
        %2338 = vmatprep.subr.mxu0 %v1232
        %2339 = vmatpush1.msra.mxu0 %v1231
        %2340 = vmatprep.subr.mxu0 %v1234
        %2341 = vmatpush1.msra.mxu0 %v1233
        %2342 = vmatprep.subr.mxu0 %v1236
        %2343 = vmatpush1.msra.mxu0 %v1235
        %2344 = vmatprep.subr.mxu0 %v1238
        %2345 = vmatpush1.msra.mxu0 %v1237
        %2346 = vmatprep.subr.mxu0 %v1240
        %2347 = vmatpush1.msra.mxu0 %v1239
        %2348 = vmatprep.subr.mxu0 %v1242
        %2349 = vmatpush1.msra.mxu0 %v1241
        %2350 = vmatprep.subr.mxu0 %v1244
        %2351 = vmatpush1.msra.mxu0 %v1243
        %2352 = vmatprep.subr.mxu0 %v1246
        %2353 = vmatpush1.msra.mxu0 %v1245
        %2354 = vmatprep.subr.mxu0 %v1248
        %2355 = vmatpush1.msra.mxu0 %v1247
        %2356 = vmatprep.subr.mxu0 %v1250
        %2357 = vmatpush1.msra.mxu0 %v1249
        %2358 = vmatprep.subr.mxu0 %v1252
        %2359 = vmatpush1.msra.mxu0 %v1251
        %2360 = vmatprep.subr.mxu0 %v1254
        %2361 = vmatpush1.msra.mxu0 %v1253
        %2362 = vmatprep.subr.mxu0 %v1256
        %2363 = vmatpush1.msra.mxu0 %v1255
        %2364 = vmatprep.subr.mxu0 %v1258
        %2365 = vmatpush1.msra.mxu0 %v1257
        %2366 = vmatprep.subr.mxu0 %v1260
        %2367 = vmatpush1.msra.mxu0 %v1259
        %2368 = vmatprep.subr.mxu0 %v1262
        %2369 = vmatpush1.msra.mxu0 %v1261
        %2370 = vmatprep.subr.mxu0 %v1264
        %2371 = vmatpush1.msra.mxu0 %v1263
        %2372 = vmatprep.subr.mxu0 %v1266
        %2373 = vmatpush1.msra.mxu0 %v1265
        %2374 = vmatprep.subr.mxu0 %v1268
        %2375 = vmatpush1.msra.mxu0 %v1267
        %2376 = vmatprep.subr.mxu0 %v1270
        %2377 = vmatpush1.msra.mxu0 %v1269
        %2378 = vmatprep.subr.mxu0 %v1272
        %2379 = vmatpush1.msra.mxu0 %v1271
        %2380 = vmatprep.subr.mxu0 %v1274
        %2381 = vmatpush1.msra.mxu0 %v1273
        %2382 = vmatprep.subr.mxu0 %v1276
        %2383 = vmatpush1.msra.mxu0 %v1275
        %2384 = vmatprep.subr.mxu0 %v1278
        %2385 = vmatpush1.msra.mxu0 %v1277
        %2386 = vmatprep.subr.mxu0 %v1280
        %2387 = vmatpush1.msra.mxu0 %v1279
        %2388 = vmatprep.subr.mxu0 %v1282
        %2389 = vmatpush1.msra.mxu0 %v1281
        %2390 = vmatprep.subr.mxu0 %v1284
        %2391 = vmatpush1.msra.mxu0 %v1283
        %2392 = vmatprep.subr.mxu0 %v1286
        %2393 = vmatpush1.msra.mxu0 %v1285
        %2394 = vmatprep.mubr.f32.mxu0 %v572
        %2395 = vmatmul.mubr.f32.gmra.mrb[0].mxu0 %v571
        %v2396 = vpop.f32.mrb[0].mxu0
        %v2397 = vadd.f32 %v2326, %v2396
        %v2398 = vpop.f32.mrb[0].mxu0
        %v2399 = vadd.f32 %v2328, %v2398
        %2400 = vdwg.mxu0
        %2401 = vmatprep.subr.mxu0 %v1288
        %2402 = vmatpush1.msra.mxu0 %v1287
        %2403 = vmatprep.subr.mxu0 %v1290
        %2404 = vmatpush1.msra.mxu0 %v1289
        %2405 = vmatprep.subr.mxu0 %v1292
        %2406 = vmatpush1.msra.mxu0 %v1291
        %2407 = vmatprep.subr.mxu0 %v1294
        %2408 = vmatpush1.msra.mxu0 %v1293
        %2409 = vmatprep.subr.mxu0 %v1296
        %2410 = vmatpush1.msra.mxu0 %v1295
        %2411 = vmatprep.subr.mxu0 %v1298
        %2412 = vmatpush1.msra.mxu0 %v1297
        %2413 = vmatprep.subr.mxu0 %v1300
        %2414 = vmatpush1.msra.mxu0 %v1299
        %2415 = vmatprep.subr.mxu0 %v1302
        %2416 = vmatpush1.msra.mxu0 %v1301
        %2417 = vmatprep.subr.mxu0 %v1304
        %2418 = vmatpush1.msra.mxu0 %v1303
        %2419 = vmatprep.subr.mxu0 %v1306
        %2420 = vmatpush1.msra.mxu0 %v1305
        %2421 = vmatprep.subr.mxu0 %v1308
        %2422 = vmatpush1.msra.mxu0 %v1307
        %2423 = vmatprep.subr.mxu0 %v1310
        %2424 = vmatpush1.msra.mxu0 %v1309
        %2425 = vmatprep.subr.mxu0 %v1312
        %2426 = vmatpush1.msra.mxu0 %v1311
        %2427 = vmatprep.subr.mxu0 %v1314
        %2428 = vmatpush1.msra.mxu0 %v1313
        %2429 = vmatprep.subr.mxu0 %v1316
        %2430 = vmatpush1.msra.mxu0 %v1315
        %2431 = vmatprep.subr.mxu0 %v1318
        %2432 = vmatpush1.msra.mxu0 %v1317
        %2433 = vmatprep.subr.mxu0 %v1320
        %2434 = vmatpush1.msra.mxu0 %v1319
        %2435 = vmatprep.subr.mxu0 %v1322
        %2436 = vmatpush1.msra.mxu0 %v1321
        %2437 = vmatprep.subr.mxu0 %v1324
        %2438 = vmatpush1.msra.mxu0 %v1323
        %2439 = vmatprep.subr.mxu0 %v1326
        %2440 = vmatpush1.msra.mxu0 %v1325
        %2441 = vmatprep.subr.mxu0 %v1328
        %2442 = vmatpush1.msra.mxu0 %v1327
        %2443 = vmatprep.subr.mxu0 %v1330
        %2444 = vmatpush1.msra.mxu0 %v1329
        %2445 = vmatprep.subr.mxu0 %v1332
        %2446 = vmatpush1.msra.mxu0 %v1331
        %2447 = vmatprep.subr.mxu0 %v1334
        %2448 = vmatpush1.msra.mxu0 %v1333
        %2449 = vmatprep.subr.mxu0 %v1336
        %2450 = vmatpush1.msra.mxu0 %v1335
        %2451 = vmatprep.subr.mxu0 %v1338
        %2452 = vmatpush1.msra.mxu0 %v1337
        %2453 = vmatprep.subr.mxu0 %v1340
        %2454 = vmatpush1.msra.mxu0 %v1339
        %2455 = vmatprep.subr.mxu0 %v1342
        %2456 = vmatpush1.msra.mxu0 %v1341
        %2457 = vmatprep.subr.mxu0 %v1344
        %2458 = vmatpush1.msra.mxu0 %v1343
        %2459 = vmatprep.subr.mxu0 %v1346
        %2460 = vmatpush1.msra.mxu0 %v1345
        %2461 = vmatprep.subr.mxu0 %v1348
        %2462 = vmatpush1.msra.mxu0 %v1347
        %2463 = vmatprep.subr.mxu0 %v1350
        %2464 = vmatpush1.msra.mxu0 %v1349
        %2465 = vmatprep.mubr.f32.mxu0 %v574
        %2466 = vmatmul.mubr.f32.gmra.mrb[0].mxu0 %v573
        %v2467 = vpop.f32.mrb[0].mxu0
        %v2468 = vadd.f32 %v2397, %v2467
        %v2469 = vpop.f32.mrb[0].mxu0
        %v2470 = vadd.f32 %v2399, %v2469
        %2471 = vdwg.mxu0
        %2472 = vmatprep.subr.mxu0 %v1352
        %2473 = vmatpush1.msra.mxu0 %v1351
        %2474 = vmatprep.subr.mxu0 %v1354
        %2475 = vmatpush1.msra.mxu0 %v1353
        %2476 = vmatprep.subr.mxu0 %v1356
        %2477 = vmatpush1.msra.mxu0 %v1355
        %2478 = vmatprep.subr.mxu0 %v1358
        %2479 = vmatpush1.msra.mxu0 %v1357
        %2480 = vmatprep.subr.mxu0 %v1360
        %2481 = vmatpush1.msra.mxu0 %v1359
        %2482 = vmatprep.subr.mxu0 %v1362
        %2483 = vmatpush1.msra.mxu0 %v1361
        %2484 = vmatprep.subr.mxu0 %v1364
        %2485 = vmatpush1.msra.mxu0 %v1363
        %2486 = vmatprep.subr.mxu0 %v1366
        %2487 = vmatpush1.msra.mxu0 %v1365
        %2488 = vmatprep.subr.mxu0 %v1368
        %2489 = vmatpush1.msra.mxu0 %v1367
        %2490 = vmatprep.subr.mxu0 %v1370
        %2491 = vmatpush1.msra.mxu0 %v1369
        %2492 = vmatprep.subr.mxu0 %v1372
        %2493 = vmatpush1.msra.mxu0 %v1371
        %2494 = vmatprep.subr.mxu0 %v1374
        %2495 = vmatpush1.msra.mxu0 %v1373
        %2496 = vmatprep.subr.mxu0 %v1376
        %2497 = vmatpush1.msra.mxu0 %v1375
        %2498 = vmatprep.subr.mxu0 %v1378
        %2499 = vmatpush1.msra.mxu0 %v1377
        %2500 = vmatprep.subr.mxu0 %v1380
        %2501 = vmatpush1.msra.mxu0 %v1379
        %2502 = vmatprep.subr.mxu0 %v1382
        %2503 = vmatpush1.msra.mxu0 %v1381
        %2504 = vmatprep.subr.mxu0 %v1384
        %2505 = vmatpush1.msra.mxu0 %v1383
        %2506 = vmatprep.subr.mxu0 %v1386
        %2507 = vmatpush1.msra.mxu0 %v1385
        %2508 = vmatprep.subr.mxu0 %v1388
        %2509 = vmatpush1.msra.mxu0 %v1387
        %2510 = vmatprep.subr.mxu0 %v1390
        %2511 = vmatpush1.msra.mxu0 %v1389
        %2512 = vmatprep.subr.mxu0 %v1392
        %2513 = vmatpush1.msra.mxu0 %v1391
        %2514 = vmatprep.subr.mxu0 %v1394
        %2515 = vmatpush1.msra.mxu0 %v1393
        %2516 = vmatprep.subr.mxu0 %v1396
        %2517 = vmatpush1.msra.mxu0 %v1395
        %2518 = vmatprep.subr.mxu0 %v1398
        %2519 = vmatpush1.msra.mxu0 %v1397
        %2520 = vmatprep.subr.mxu0 %v1400
        %2521 = vmatpush1.msra.mxu0 %v1399
        %2522 = vmatprep.subr.mxu0 %v1402
        %2523 = vmatpush1.msra.mxu0 %v1401
        %2524 = vmatprep.subr.mxu0 %v1404
        %2525 = vmatpush1.msra.mxu0 %v1403
        %2526 = vmatprep.subr.mxu0 %v1406
        %2527 = vmatpush1.msra.mxu0 %v1405
        %2528 = vmatprep.subr.mxu0 %v1408
        %2529 = vmatpush1.msra.mxu0 %v1407
        %2530 = vmatprep.subr.mxu0 %v1410
        %2531 = vmatpush1.msra.mxu0 %v1409
        %2532 = vmatprep.subr.mxu0 %v1412
        %2533 = vmatpush1.msra.mxu0 %v1411
        %2534 = vmatprep.subr.mxu0 %v1414
        %2535 = vmatpush1.msra.mxu0 %v1413
        %2536 = vmatprep.mubr.f32.mxu0 %v576
        %2537 = vmatmul.mubr.f32.gmra.mrb[0].mxu0 %v575
        %v2538 = vpop.f32.mrb[0].mxu0
        %v2539 = vadd.f32 %v2468, %v2538
        %v2540 = vpop.f32.mrb[0].mxu0
        %v2541 = vadd.f32 %v2470, %v2540
        %2542 = vdwg.mxu0
        %2543 = vmatprep.subr.mxu0 %v1416
        %2544 = vmatpush1.msra.mxu0 %v1415
        %2545 = vmatprep.subr.mxu0 %v1418
        %2546 = vmatpush1.msra.mxu0 %v1417
        %2547 = vmatprep.subr.mxu0 %v1420
        %2548 = vmatpush1.msra.mxu0 %v1419
        %2549 = vmatprep.subr.mxu0 %v1422
        %2550 = vmatpush1.msra.mxu0 %v1421
        %2551 = vmatprep.subr.mxu0 %v1424
        %2552 = vmatpush1.msra.mxu0 %v1423
        %2553 = vmatprep.subr.mxu0 %v1426
        %2554 = vmatpush1.msra.mxu0 %v1425
        %2555 = vmatprep.subr.mxu0 %v1428
        %2556 = vmatpush1.msra.mxu0 %v1427
        %2557 = vmatprep.subr.mxu0 %v1430
        %2558 = vmatpush1.msra.mxu0 %v1429
        %2559 = vmatprep.subr.mxu0 %v1432
        %2560 = vmatpush1.msra.mxu0 %v1431
        %2561 = vmatprep.subr.mxu0 %v1434
        %2562 = vmatpush1.msra.mxu0 %v1433
        %2563 = vmatprep.subr.mxu0 %v1436
        %2564 = vmatpush1.msra.mxu0 %v1435
        %2565 = vmatprep.subr.mxu0 %v1438
        %2566 = vmatpush1.msra.mxu0 %v1437
        %2567 = vmatprep.subr.mxu0 %v1440
        %2568 = vmatpush1.msra.mxu0 %v1439
        %2569 = vmatprep.subr.mxu0 %v1442
        %2570 = vmatpush1.msra.mxu0 %v1441
        %2571 = vmatprep.subr.mxu0 %v1444
        %2572 = vmatpush1.msra.mxu0 %v1443
        %2573 = vmatprep.subr.mxu0 %v1446
        %2574 = vmatpush1.msra.mxu0 %v1445
        %2575 = vmatprep.subr.mxu0 %v1448
        %2576 = vmatpush1.msra.mxu0 %v1447
        %2577 = vmatprep.subr.mxu0 %v1450
        %2578 = vmatpush1.msra.mxu0 %v1449
        %2579 = vmatprep.subr.mxu0 %v1452
        %2580 = vmatpush1.msra.mxu0 %v1451
        %2581 = vmatprep.subr.mxu0 %v1454
        %2582 = vmatpush1.msra.mxu0 %v1453
        %2583 = vmatprep.subr.mxu0 %v1456
        %2584 = vmatpush1.msra.mxu0 %v1455
        %2585 = vmatprep.subr.mxu0 %v1458
        %2586 = vmatpush1.msra.mxu0 %v1457
        %2587 = vmatprep.subr.mxu0 %v1460
        %2588 = vmatpush1.msra.mxu0 %v1459
        %2589 = vmatprep.subr.mxu0 %v1462
        %2590 = vmatpush1.msra.mxu0 %v1461
        %2591 = vmatprep.subr.mxu0 %v1464
        %2592 = vmatpush1.msra.mxu0 %v1463
        %2593 = vmatprep.subr.mxu0 %v1466
        %2594 = vmatpush1.msra.mxu0 %v1465
        %2595 = vmatprep.subr.mxu0 %v1468
        %2596 = vmatpush1.msra.mxu0 %v1467
        %2597 = vmatprep.subr.mxu0 %v1470
        %2598 = vmatpush1.msra.mxu0 %v1469
        %2599 = vmatprep.subr.mxu0 %v1472
        %2600 = vmatpush1.msra.mxu0 %v1471
        %2601 = vmatprep.subr.mxu0 %v1474
        %2602 = vmatpush1.msra.mxu0 %v1473
        %2603 = vmatprep.subr.mxu0 %v1476
        %2604 = vmatpush1.msra.mxu0 %v1475
        %2605 = vmatprep.subr.mxu0 %v1478
        %2606 = vmatpush1.msra.mxu0 %v1477
        %2607 = vmatprep.mubr.f32.mxu0 %v578
        %2608 = vmatmul.mubr.f32.gmra.mrb[0].mxu0 %v577
        %v2609 = vpop.f32.mrb[0].mxu0
        %v2610 = vadd.f32 %v2539, %v2609
        %v2611 = vpop.f32.mrb[0].mxu0
        %v2612 = vadd.f32 %v2541, %v2611
        %2613 = vdwg.mxu0
        %2614 = vmatprep.subr.mxu0 %v1480
        %2615 = vmatpush1.msra.mxu0 %v1479
        %2616 = vmatprep.subr.mxu0 %v1482
        %2617 = vmatpush1.msra.mxu0 %v1481
        %2618 = vmatprep.subr.mxu0 %v1484
        %2619 = vmatpush1.msra.mxu0 %v1483
        %2620 = vmatprep.subr.mxu0 %v1486
        %2621 = vmatpush1.msra.mxu0 %v1485
        %2622 = vmatprep.subr.mxu0 %v1488
        %2623 = vmatpush1.msra.mxu0 %v1487
        %2624 = vmatprep.subr.mxu0 %v1490
        %2625 = vmatpush1.msra.mxu0 %v1489
        %2626 = vmatprep.subr.mxu0 %v1492
        %2627 = vmatpush1.msra.mxu0 %v1491
        %2628 = vmatprep.subr.mxu0 %v1494
        %2629 = vmatpush1.msra.mxu0 %v1493
        %2630 = vmatprep.subr.mxu0 %v1496
        %2631 = vmatpush1.msra.mxu0 %v1495
        %2632 = vmatprep.subr.mxu0 %v1498
        %2633 = vmatpush1.msra.mxu0 %v1497
        %2634 = vmatprep.subr.mxu0 %v1500
        %2635 = vmatpush1.msra.mxu0 %v1499
        %2636 = vmatprep.subr.mxu0 %v1502
        %2637 = vmatpush1.msra.mxu0 %v1501
        %2638 = vmatprep.subr.mxu0 %v1504
        %2639 = vmatpush1.msra.mxu0 %v1503
        %2640 = vmatprep.subr.mxu0 %v1506
        %2641 = vmatpush1.msra.mxu0 %v1505
        %2642 = vmatprep.subr.mxu0 %v1508
        %2643 = vmatpush1.msra.mxu0 %v1507
        %2644 = vmatprep.subr.mxu0 %v1510
        %2645 = vmatpush1.msra.mxu0 %v1509
        %2646 = vmatprep.subr.mxu0 %v1512
        %2647 = vmatpush1.msra.mxu0 %v1511
        %2648 = vmatprep.subr.mxu0 %v1514
        %2649 = vmatpush1.msra.mxu0 %v1513
        %2650 = vmatprep.subr.mxu0 %v1516
        %2651 = vmatpush1.msra.mxu0 %v1515
        %2652 = vmatprep.subr.mxu0 %v1518
        %2653 = vmatpush1.msra.mxu0 %v1517
        %2654 = vmatprep.subr.mxu0 %v1520
        %2655 = vmatpush1.msra.mxu0 %v1519
        %2656 = vmatprep.subr.mxu0 %v1522
        %2657 = vmatpush1.msra.mxu0 %v1521
        %2658 = vmatprep.subr.mxu0 %v1524
        %2659 = vmatpush1.msra.mxu0 %v1523
        %2660 = vmatprep.subr.mxu0 %v1526
        %2661 = vmatpush1.msra.mxu0 %v1525
        %2662 = vmatprep.subr.mxu0 %v1528
        %2663 = vmatpush1.msra.mxu0 %v1527
        %2664 = vmatprep.subr.mxu0 %v1530
        %2665 = vmatpush1.msra.mxu0 %v1529
        %2666 = vmatprep.subr.mxu0 %v1532
        %2667 = vmatpush1.msra.mxu0 %v1531
        %2668 = vmatprep.subr.mxu0 %v1534
        %2669 = vmatpush1.msra.mxu0 %v1533
        %2670 = vmatprep.subr.mxu0 %v1536
        %2671 = vmatpush1.msra.mxu0 %v1535
        %2672 = vmatprep.subr.mxu0 %v1538
        %2673 = vmatpush1.msra.mxu0 %v1537
        %2674 = vmatprep.subr.mxu0 %v1540
        %2675 = vmatpush1.msra.mxu0 %v1539
        %2676 = vmatprep.subr.mxu0 %v1542
        %2677 = vmatpush1.msra.mxu0 %v1541
        %2678 = vmatprep.mubr.f32.mxu0 %v580
        %2679 = vmatmul.mubr.f32.gmra.mrb[0].mxu0 %v579
        %v2680 = vpop.f32.mrb[0].mxu0
        %v2681 = vadd.f32 %v2610, %v2680
        %v2682 = vpop.f32.mrb[0].mxu0
        %v2683 = vadd.f32 %v2612, %v2682
        %2684 = vdwg.mxu0
        %2685 = vmatprep.subr.mxu0 %v1544
        %2686 = vmatpush1.msra.mxu0 %v1543
        %2687 = vmatprep.subr.mxu0 %v1546
        %2688 = vmatpush1.msra.mxu0 %v1545
        %2689 = vmatprep.subr.mxu0 %v1548
        %2690 = vmatpush1.msra.mxu0 %v1547
        %2691 = vmatprep.subr.mxu0 %v1550
        %2692 = vmatpush1.msra.mxu0 %v1549
        %2693 = vmatprep.subr.mxu0 %v1552
        %2694 = vmatpush1.msra.mxu0 %v1551
        %2695 = vmatprep.subr.mxu0 %v1554
        %2696 = vmatpush1.msra.mxu0 %v1553
        %2697 = vmatprep.subr.mxu0 %v1556
        %2698 = vmatpush1.msra.mxu0 %v1555
        %2699 = vmatprep.subr.mxu0 %v1558
        %2700 = vmatpush1.msra.mxu0 %v1557
        %2701 = vmatprep.subr.mxu0 %v1560
        %2702 = vmatpush1.msra.mxu0 %v1559
        %2703 = vmatprep.subr.mxu0 %v1562
        %2704 = vmatpush1.msra.mxu0 %v1561
        %2705 = vmatprep.subr.mxu0 %v1564
        %2706 = vmatpush1.msra.mxu0 %v1563
        %2707 = vmatprep.subr.mxu0 %v1566
        %2708 = vmatpush1.msra.mxu0 %v1565
        %2709 = vmatprep.subr.mxu0 %v1568
        %2710 = vmatpush1.msra.mxu0 %v1567
        %2711 = vmatprep.subr.mxu0 %v1570
        %2712 = vmatpush1.msra.mxu0 %v1569
        %2713 = vmatprep.subr.mxu0 %v1572
        %2714 = vmatpush1.msra.mxu0 %v1571
        %2715 = vmatprep.subr.mxu0 %v1574
        %2716 = vmatpush1.msra.mxu0 %v1573
        %2717 = vmatprep.subr.mxu0 %v1576
        %2718 = vmatpush1.msra.mxu0 %v1575
        %2719 = vmatprep.subr.mxu0 %v1578
        %2720 = vmatpush1.msra.mxu0 %v1577
        %2721 = vmatprep.subr.mxu0 %v1580
        %2722 = vmatpush1.msra.mxu0 %v1579
        %2723 = vmatprep.subr.mxu0 %v1582
        %2724 = vmatpush1.msra.mxu0 %v1581
        %2725 = vmatprep.subr.mxu0 %v1584
        %2726 = vmatpush1.msra.mxu0 %v1583
        %2727 = vmatprep.subr.mxu0 %v1586
        %2728 = vmatpush1.msra.mxu0 %v1585
        %2729 = vmatprep.subr.mxu0 %v1588
        %2730 = vmatpush1.msra.mxu0 %v1587
        %2731 = vmatprep.subr.mxu0 %v1590
        %2732 = vmatpush1.msra.mxu0 %v1589
        %2733 = vmatprep.subr.mxu0 %v1592
        %2734 = vmatpush1.msra.mxu0 %v1591
        %2735 = vmatprep.subr.mxu0 %v1594
        %2736 = vmatpush1.msra.mxu0 %v1593
        %2737 = vmatprep.subr.mxu0 %v1596
        %2738 = vmatpush1.msra.mxu0 %v1595
        %2739 = vmatprep.subr.mxu0 %v1598
        %2740 = vmatpush1.msra.mxu0 %v1597
        %2741 = vmatprep.subr.mxu0 %v1600
        %2742 = vmatpush1.msra.mxu0 %v1599
        %2743 = vmatprep.subr.mxu0 %v1602
        %2744 = vmatpush1.msra.mxu0 %v1601
        %2745 = vmatprep.subr.mxu0 %v1604
        %2746 = vmatpush1.msra.mxu0 %v1603
        %2747 = vmatprep.subr.mxu0 %v1606
        %2748 = vmatpush1.msra.mxu0 %v1605
        %2749 = vmatprep.mubr.f32.mxu0 %v582
        %2750 = vmatmul.mubr.f32.gmra.mrb[0].mxu0 %v581
        %v2751 = vpop.f32.mrb[0].mxu0
        %v2752 = vadd.f32 %v2681, %v2751
        %v2753 = vpop.f32.mrb[0].mxu0
        %v2754 = vadd.f32 %v2683, %v2753
        %2755 = vdwg.mxu0
        %v2756 = vmax.f32 %v2752, 0.0
        %v2757 = vmax.f32 %v2754, 0.0
        %s2758 = sshra.s32 %s1607, 7
        %s2759 = sand.u32 %s1607, 127
        %s2760 = smul.addr %s2758, 8
        %s2761 = scalar_lea.vmem [#allocation2], %s2760
        %2762 = vst [vmem:[%s2761] sm:$0xff] %v2756
        %2763 = vst [vmem:[%s2761 + $0x8] sm:$0xff] %v2757
        %p2764 = scmp.eq.s32.totalorder %s31, 3
        // Predicated region
        $region109: #{tpu_custom_call.1} parent=63 // pred_check
          %p2765 = pneg %p2764
        $region110: #{tpu_custom_call.1} parent=63 // pred_check_branch
          %2767 = sbr.rel (%p2765) target = $region112
        $region111: #{tpu_custom_call.1} parent=63 // pred_region
          %v2768 = vld [vmem:[#allocation2] sm:$0xff]
          %v2769 = vld [vmem:[#allocation2 + $0x8] sm:$0xff]
          %v2770 = vld [vmem:[#allocation2 + $0x10] sm:$0xff]
          %v2771 = vld [vmem:[#allocation2 + $0x18] sm:$0xff]
          %v2772 = vld [vmem:[#allocation2 + $0x20] sm:$0xff]
          %v2773 = vld [vmem:[#allocation2 + $0x28] sm:$0xff]
          %v2774 = vld [vmem:[#allocation2 + $0x30] sm:$0xff]
          %v2775 = vld [vmem:[#allocation2 + $0x38] sm:$0xff]
          %v2776 = vld [vmem:[#allocation9] sm:$0xff]
          %v2777 = vld [vmem:[#allocation9 + $0x8] sm:$0xff]
          %v2778 = vld [vmem:[#allocation9 + $0x10] sm:$0xff]
          %v2779 = vld [vmem:[#allocation9 + $0x18] sm:$0xff]
          %v2780 = vld [vmem:[#allocation9 + $0x20] sm:$0xff]
          %v2781 = vld [vmem:[#allocation9 + $0x28] sm:$0xff]
          %v2782 = vld [vmem:[#allocation9 + $0x30] sm:$0xff]
          %v2783 = vld [vmem:[#allocation9 + $0x38] sm:$0xff]
          %v2784 = vld [vmem:[#allocation9 + $0x40] sm:$0xff]
          %v2785 = vld [vmem:[#allocation9 + $0x48] sm:$0xff]
          %v2786 = vld [vmem:[#allocation9 + $0x50] sm:$0xff]
          %v2787 = vld [vmem:[#allocation9 + $0x58] sm:$0xff]
          %v2788 = vld [vmem:[#allocation9 + $0x60] sm:$0xff]
          %v2789 = vld [vmem:[#allocation9 + $0x68] sm:$0xff]
          %v2790 = vld [vmem:[#allocation9 + $0x70] sm:$0xff]
          %v2791 = vld [vmem:[#allocation9 + $0x78] sm:$0xff]
          %v2792 = vld [vmem:[#allocation9 + $0x80] sm:$0xff]
          %v2793 = vld [vmem:[#allocation9 + $0x88] sm:$0xff]
          %v2794 = vld [vmem:[#allocation9 + $0x90] sm:$0xff]
          %v2795 = vld [vmem:[#allocation9 + $0x98] sm:$0xff]
          %v2796 = vld [vmem:[#allocation9 + $0xa0] sm:$0xff]
          %v2797 = vld [vmem:[#allocation9 + $0xa8] sm:$0xff]
          %v2798 = vld [vmem:[#allocation9 + $0xb0] sm:$0xff]
          %v2799 = vld [vmem:[#allocation9 + $0xb8] sm:$0xff]
          %v2800 = vld [vmem:[#allocation9 + $0xc0] sm:$0xff]
          %v2801 = vld [vmem:[#allocation9 + $0xc8] sm:$0xff]
          %v2802 = vld [vmem:[#allocation9 + $0xd0] sm:$0xff]
          %v2803 = vld [vmem:[#allocation9 + $0xd8] sm:$0xff]
          %v2804 = vld [vmem:[#allocation9 + $0xe0] sm:$0xff]
          %v2805 = vld [vmem:[#allocation9 + $0xe8] sm:$0xff]
          %v2806 = vld [vmem:[#allocation9 + $0xf0] sm:$0xff]
          %v2807 = vld [vmem:[#allocation9 + $0xf8] sm:$0xff]
          %v2808 = vld [vmem:[#allocation9 + $0x100] sm:$0xff]
          %v2809 = vld [vmem:[#allocation9 + $0x108] sm:$0xff]
          %v2810 = vld [vmem:[#allocation9 + $0x110] sm:$0xff]
          %v2811 = vld [vmem:[#allocation9 + $0x118] sm:$0xff]
          %v2812 = vld [vmem:[#allocation9 + $0x120] sm:$0xff]
          %v2813 = vld [vmem:[#allocation9 + $0x128] sm:$0xff]
          %v2814 = vld [vmem:[#allocation9 + $0x130] sm:$0xff]
          %v2815 = vld [vmem:[#allocation9 + $0x138] sm:$0xff]
          %v2816 = vld [vmem:[#allocation9 + $0x140] sm:$0xff]
          %v2817 = vld [vmem:[#allocation9 + $0x148] sm:$0xff]
          %v2818 = vld [vmem:[#allocation9 + $0x150] sm:$0xff]
          %v2819 = vld [vmem:[#allocation9 + $0x158] sm:$0xff]
          %v2820 = vld [vmem:[#allocation9 + $0x160] sm:$0xff]
          %v2821 = vld [vmem:[#allocation9 + $0x168] sm:$0xff]
          %v2822 = vld [vmem:[#allocation9 + $0x170] sm:$0xff]
          %v2823 = vld [vmem:[#allocation9 + $0x178] sm:$0xff]
          %v2824 = vld [vmem:[#allocation9 + $0x180] sm:$0xff]
          %v2825 = vld [vmem:[#allocation9 + $0x188] sm:$0xff]
          %v2826 = vld [vmem:[#allocation9 + $0x190] sm:$0xff]
          %v2827 = vld [vmem:[#allocation9 + $0x198] sm:$0xff]
          %v2828 = vld [vmem:[#allocation9 + $0x1a0] sm:$0xff]
          %v2829 = vld [vmem:[#allocation9 + $0x1a8] sm:$0xff]
          %v2830 = vld [vmem:[#allocation9 + $0x1b0] sm:$0xff]
          %v2831 = vld [vmem:[#allocation9 + $0x1b8] sm:$0xff]
          %v2832 = vld [vmem:[#allocation9 + $0x1c0] sm:$0xff]
          %v2833 = vld [vmem:[#allocation9 + $0x1c8] sm:$0xff]
          %v2834 = vld [vmem:[#allocation9 + $0x1d0] sm:$0xff]
          %v2835 = vld [vmem:[#allocation9 + $0x1d8] sm:$0xff]
          %v2836 = vld [vmem:[#allocation9 + $0x1e0] sm:$0xff]
          %v2837 = vld [vmem:[#allocation9 + $0x1e8] sm:$0xff]
          %v2838 = vld [vmem:[#allocation9 + $0x1f0] sm:$0xff]
          %v2839 = vld [vmem:[#allocation9 + $0x1f8] sm:$0xff]
          %v2840 = vld [vmem:[#allocation9 + $0x200] sm:$0xff]
          %v2841 = vld [vmem:[#allocation9 + $0x208] sm:$0xff]
          %v2842 = vld [vmem:[#allocation9 + $0x210] sm:$0xff]
          %v2843 = vld [vmem:[#allocation9 + $0x218] sm:$0xff]
          %v2844 = vld [vmem:[#allocation9 + $0x220] sm:$0xff]
          %v2845 = vld [vmem:[#allocation9 + $0x228] sm:$0xff]
          %v2846 = vld [vmem:[#allocation9 + $0x230] sm:$0xff]
          %v2847 = vld [vmem:[#allocation9 + $0x238] sm:$0xff]
          %v2848 = vld [vmem:[#allocation9 + $0x240] sm:$0xff]
          %v2849 = vld [vmem:[#allocation9 + $0x248] sm:$0xff]
          %v2850 = vld [vmem:[#allocation9 + $0x250] sm:$0xff]
          %v2851 = vld [vmem:[#allocation9 + $0x258] sm:$0xff]
          %v2852 = vld [vmem:[#allocation9 + $0x260] sm:$0xff]
          %v2853 = vld [vmem:[#allocation9 + $0x268] sm:$0xff]
          %v2854 = vld [vmem:[#allocation9 + $0x270] sm:$0xff]
          %v2855 = vld [vmem:[#allocation9 + $0x278] sm:$0xff]
          %v2856 = vld [vmem:[#allocation9 + $0x280] sm:$0xff]
          %v2857 = vld [vmem:[#allocation9 + $0x288] sm:$0xff]
          %v2858 = vld [vmem:[#allocation9 + $0x290] sm:$0xff]
          %v2859 = vld [vmem:[#allocation9 + $0x298] sm:$0xff]
          %v2860 = vld [vmem:[#allocation9 + $0x2a0] sm:$0xff]
          %v2861 = vld [vmem:[#allocation9 + $0x2a8] sm:$0xff]
          %v2862 = vld [vmem:[#allocation9 + $0x2b0] sm:$0xff]
          %v2863 = vld [vmem:[#allocation9 + $0x2b8] sm:$0xff]
          %v2864 = vld [vmem:[#allocation9 + $0x2c0] sm:$0xff]
          %v2865 = vld [vmem:[#allocation9 + $0x2c8] sm:$0xff]
          %v2866 = vld [vmem:[#allocation9 + $0x2d0] sm:$0xff]
          %v2867 = vld [vmem:[#allocation9 + $0x2d8] sm:$0xff]
          %v2868 = vld [vmem:[#allocation9 + $0x2e0] sm:$0xff]
          %v2869 = vld [vmem:[#allocation9 + $0x2e8] sm:$0xff]
          %v2870 = vld [vmem:[#allocation9 + $0x2f0] sm:$0xff]
          %v2871 = vld [vmem:[#allocation9 + $0x2f8] sm:$0xff]
          %v2872 = vld [vmem:[#allocation9 + $0x300] sm:$0xff]
          %v2873 = vld [vmem:[#allocation9 + $0x308] sm:$0xff]
          %v2874 = vld [vmem:[#allocation9 + $0x310] sm:$0xff]
          %v2875 = vld [vmem:[#allocation9 + $0x318] sm:$0xff]
          %v2876 = vld [vmem:[#allocation9 + $0x320] sm:$0xff]
          %v2877 = vld [vmem:[#allocation9 + $0x328] sm:$0xff]
          %v2878 = vld [vmem:[#allocation9 + $0x330] sm:$0xff]
          %v2879 = vld [vmem:[#allocation9 + $0x338] sm:$0xff]
          %v2880 = vld [vmem:[#allocation9 + $0x340] sm:$0xff]
          %v2881 = vld [vmem:[#allocation9 + $0x348] sm:$0xff]
          %v2882 = vld [vmem:[#allocation9 + $0x350] sm:$0xff]
          %v2883 = vld [vmem:[#allocation9 + $0x358] sm:$0xff]
          %v2884 = vld [vmem:[#allocation9 + $0x360] sm:$0xff]
          %v2885 = vld [vmem:[#allocation9 + $0x368] sm:$0xff]
          %v2886 = vld [vmem:[#allocation9 + $0x370] sm:$0xff]
          %v2887 = vld [vmem:[#allocation9 + $0x378] sm:$0xff]
          %v2888 = vld [vmem:[#allocation9 + $0x380] sm:$0xff]
          %v2889 = vld [vmem:[#allocation9 + $0x388] sm:$0xff]
          %v2890 = vld [vmem:[#allocation9 + $0x390] sm:$0xff]
          %v2891 = vld [vmem:[#allocation9 + $0x398] sm:$0xff]
          %v2892 = vld [vmem:[#allocation9 + $0x3a0] sm:$0xff]
          %v2893 = vld [vmem:[#allocation9 + $0x3a8] sm:$0xff]
          %v2894 = vld [vmem:[#allocation9 + $0x3b0] sm:$0xff]
          %v2895 = vld [vmem:[#allocation9 + $0x3b8] sm:$0xff]
          %v2896 = vld [vmem:[#allocation9 + $0x3c0] sm:$0xff]
          %v2897 = vld [vmem:[#allocation9 + $0x3c8] sm:$0xff]
          %v2898 = vld [vmem:[#allocation9 + $0x3d0] sm:$0xff]
          %v2899 = vld [vmem:[#allocation9 + $0x3d8] sm:$0xff]
          %v2900 = vld [vmem:[#allocation9 + $0x3e0] sm:$0xff]
          %v2901 = vld [vmem:[#allocation9 + $0x3e8] sm:$0xff]
          %v2902 = vld [vmem:[#allocation9 + $0x3f0] sm:$0xff]
          %v2903 = vld [vmem:[#allocation9 + $0x3f8] sm:$0xff]
          %v2904 = vld [vmem:[#allocation9 + $0x400] sm:$0xff]
          %v2905 = vld [vmem:[#allocation9 + $0x408] sm:$0xff]
          %v2906 = vld [vmem:[#allocation9 + $0x410] sm:$0xff]
          %v2907 = vld [vmem:[#allocation9 + $0x418] sm:$0xff]
          %v2908 = vld [vmem:[#allocation9 + $0x420] sm:$0xff]
          %v2909 = vld [vmem:[#allocation9 + $0x428] sm:$0xff]
          %v2910 = vld [vmem:[#allocation9 + $0x430] sm:$0xff]
          %v2911 = vld [vmem:[#allocation9 + $0x438] sm:$0xff]
          %v2912 = vld [vmem:[#allocation9 + $0x440] sm:$0xff]
          %v2913 = vld [vmem:[#allocation9 + $0x448] sm:$0xff]
          %v2914 = vld [vmem:[#allocation9 + $0x450] sm:$0xff]
          %v2915 = vld [vmem:[#allocation9 + $0x458] sm:$0xff]
          %v2916 = vld [vmem:[#allocation9 + $0x460] sm:$0xff]
          %v2917 = vld [vmem:[#allocation9 + $0x468] sm:$0xff]
          %v2918 = vld [vmem:[#allocation9 + $0x470] sm:$0xff]
          %v2919 = vld [vmem:[#allocation9 + $0x478] sm:$0xff]
          %v2920 = vld [vmem:[#allocation9 + $0x480] sm:$0xff]
          %v2921 = vld [vmem:[#allocation9 + $0x488] sm:$0xff]
          %v2922 = vld [vmem:[#allocation9 + $0x490] sm:$0xff]
          %v2923 = vld [vmem:[#allocation9 + $0x498] sm:$0xff]
          %v2924 = vld [vmem:[#allocation9 + $0x4a0] sm:$0xff]
          %v2925 = vld [vmem:[#allocation9 + $0x4a8] sm:$0xff]
          %v2926 = vld [vmem:[#allocation9 + $0x4b0] sm:$0xff]
          %v2927 = vld [vmem:[#allocation9 + $0x4b8] sm:$0xff]
          %v2928 = vld [vmem:[#allocation9 + $0x4c0] sm:$0xff]
          %v2929 = vld [vmem:[#allocation9 + $0x4c8] sm:$0xff]
          %v2930 = vld [vmem:[#allocation9 + $0x4d0] sm:$0xff]
          %v2931 = vld [vmem:[#allocation9 + $0x4d8] sm:$0xff]
          %v2932 = vld [vmem:[#allocation9 + $0x4e0] sm:$0xff]
          %v2933 = vld [vmem:[#allocation9 + $0x4e8] sm:$0xff]
          %v2934 = vld [vmem:[#allocation9 + $0x4f0] sm:$0xff]
          %v2935 = vld [vmem:[#allocation9 + $0x4f8] sm:$0xff]
          %v2936 = vld [vmem:[#allocation9 + $0x500] sm:$0xff]
          %v2937 = vld [vmem:[#allocation9 + $0x508] sm:$0xff]
          %v2938 = vld [vmem:[#allocation9 + $0x510] sm:$0xff]
          %v2939 = vld [vmem:[#allocation9 + $0x518] sm:$0xff]
          %v2940 = vld [vmem:[#allocation9 + $0x520] sm:$0xff]
          %v2941 = vld [vmem:[#allocation9 + $0x528] sm:$0xff]
          %v2942 = vld [vmem:[#allocation9 + $0x530] sm:$0xff]
          %v2943 = vld [vmem:[#allocation9 + $0x538] sm:$0xff]
          %v2944 = vld [vmem:[#allocation9 + $0x540] sm:$0xff]
          %v2945 = vld [vmem:[#allocation9 + $0x548] sm:$0xff]
          %v2946 = vld [vmem:[#allocation9 + $0x550] sm:$0xff]
          %v2947 = vld [vmem:[#allocation9 + $0x558] sm:$0xff]
          %v2948 = vld [vmem:[#allocation9 + $0x560] sm:$0xff]
          %v2949 = vld [vmem:[#allocation9 + $0x568] sm:$0xff]
          %v2950 = vld [vmem:[#allocation9 + $0x570] sm:$0xff]
          %v2951 = vld [vmem:[#allocation9 + $0x578] sm:$0xff]
          %v2952 = vld [vmem:[#allocation9 + $0x580] sm:$0xff]
          %v2953 = vld [vmem:[#allocation9 + $0x588] sm:$0xff]
          %v2954 = vld [vmem:[#allocation9 + $0x590] sm:$0xff]
          %v2955 = vld [vmem:[#allocation9 + $0x598] sm:$0xff]
          %v2956 = vld [vmem:[#allocation9 + $0x5a0] sm:$0xff]
          %v2957 = vld [vmem:[#allocation9 + $0x5a8] sm:$0xff]
          %v2958 = vld [vmem:[#allocation9 + $0x5b0] sm:$0xff]
          %v2959 = vld [vmem:[#allocation9 + $0x5b8] sm:$0xff]
          %v2960 = vld [vmem:[#allocation9 + $0x5c0] sm:$0xff]
          %v2961 = vld [vmem:[#allocation9 + $0x5c8] sm:$0xff]
          %v2962 = vld [vmem:[#allocation9 + $0x5d0] sm:$0xff]
          %v2963 = vld [vmem:[#allocation9 + $0x5d8] sm:$0xff]
          %v2964 = vld [vmem:[#allocation9 + $0x5e0] sm:$0xff]
          %v2965 = vld [vmem:[#allocation9 + $0x5e8] sm:$0xff]
          %v2966 = vld [vmem:[#allocation9 + $0x5f0] sm:$0xff]
          %v2967 = vld [vmem:[#allocation9 + $0x5f8] sm:$0xff]
          %v2968 = vld [vmem:[#allocation9 + $0x600] sm:$0xff]
          %v2969 = vld [vmem:[#allocation9 + $0x608] sm:$0xff]
          %v2970 = vld [vmem:[#allocation9 + $0x610] sm:$0xff]
          %v2971 = vld [vmem:[#allocation9 + $0x618] sm:$0xff]
          %v2972 = vld [vmem:[#allocation9 + $0x620] sm:$0xff]
          %v2973 = vld [vmem:[#allocation9 + $0x628] sm:$0xff]
          %v2974 = vld [vmem:[#allocation9 + $0x630] sm:$0xff]
          %v2975 = vld [vmem:[#allocation9 + $0x638] sm:$0xff]
          %v2976 = vld [vmem:[#allocation9 + $0x640] sm:$0xff]
          %v2977 = vld [vmem:[#allocation9 + $0x648] sm:$0xff]
          %v2978 = vld [vmem:[#allocation9 + $0x650] sm:$0xff]
          %v2979 = vld [vmem:[#allocation9 + $0x658] sm:$0xff]
          %v2980 = vld [vmem:[#allocation9 + $0x660] sm:$0xff]
          %v2981 = vld [vmem:[#allocation9 + $0x668] sm:$0xff]
          %v2982 = vld [vmem:[#allocation9 + $0x670] sm:$0xff]
          %v2983 = vld [vmem:[#allocation9 + $0x678] sm:$0xff]
          %v2984 = vld [vmem:[#allocation9 + $0x680] sm:$0xff]
          %v2985 = vld [vmem:[#allocation9 + $0x688] sm:$0xff]
          %v2986 = vld [vmem:[#allocation9 + $0x690] sm:$0xff]
          %v2987 = vld [vmem:[#allocation9 + $0x698] sm:$0xff]
          %v2988 = vld [vmem:[#allocation9 + $0x6a0] sm:$0xff]
          %v2989 = vld [vmem:[#allocation9 + $0x6a8] sm:$0xff]
          %v2990 = vld [vmem:[#allocation9 + $0x6b0] sm:$0xff]
          %v2991 = vld [vmem:[#allocation9 + $0x6b8] sm:$0xff]
          %v2992 = vld [vmem:[#allocation9 + $0x6c0] sm:$0xff]
          %v2993 = vld [vmem:[#allocation9 + $0x6c8] sm:$0xff]
          %v2994 = vld [vmem:[#allocation9 + $0x6d0] sm:$0xff]
          %v2995 = vld [vmem:[#allocation9 + $0x6d8] sm:$0xff]
          %v2996 = vld [vmem:[#allocation9 + $0x6e0] sm:$0xff]
          %v2997 = vld [vmem:[#allocation9 + $0x6e8] sm:$0xff]
          %v2998 = vld [vmem:[#allocation9 + $0x6f0] sm:$0xff]
          %v2999 = vld [vmem:[#allocation9 + $0x6f8] sm:$0xff]
          %v3000 = vld [vmem:[#allocation9 + $0x700] sm:$0xff]
          %v3001 = vld [vmem:[#allocation9 + $0x708] sm:$0xff]
          %v3002 = vld [vmem:[#allocation9 + $0x710] sm:$0xff]
          %v3003 = vld [vmem:[#allocation9 + $0x718] sm:$0xff]
          %v3004 = vld [vmem:[#allocation9 + $0x720] sm:$0xff]
          %v3005 = vld [vmem:[#allocation9 + $0x728] sm:$0xff]
          %v3006 = vld [vmem:[#allocation9 + $0x730] sm:$0xff]
          %v3007 = vld [vmem:[#allocation9 + $0x738] sm:$0xff]
          %v3008 = vld [vmem:[#allocation9 + $0x740] sm:$0xff]
          %v3009 = vld [vmem:[#allocation9 + $0x748] sm:$0xff]
          %v3010 = vld [vmem:[#allocation9 + $0x750] sm:$0xff]
          %v3011 = vld [vmem:[#allocation9 + $0x758] sm:$0xff]
          %v3012 = vld [vmem:[#allocation9 + $0x760] sm:$0xff]
          %v3013 = vld [vmem:[#allocation9 + $0x768] sm:$0xff]
          %v3014 = vld [vmem:[#allocation9 + $0x770] sm:$0xff]
          %v3015 = vld [vmem:[#allocation9 + $0x778] sm:$0xff]
          %v3016 = vld [vmem:[#allocation9 + $0x780] sm:$0xff]
          %v3017 = vld [vmem:[#allocation9 + $0x788] sm:$0xff]
          %v3018 = vld [vmem:[#allocation9 + $0x790] sm:$0xff]
          %v3019 = vld [vmem:[#allocation9 + $0x798] sm:$0xff]
          %v3020 = vld [vmem:[#allocation9 + $0x7a0] sm:$0xff]
          %v3021 = vld [vmem:[#allocation9 + $0x7a8] sm:$0xff]
          %v3022 = vld [vmem:[#allocation9 + $0x7b0] sm:$0xff]
          %v3023 = vld [vmem:[#allocation9 + $0x7b8] sm:$0xff]
          %v3024 = vld [vmem:[#allocation9 + $0x7c0] sm:$0xff]
          %v3025 = vld [vmem:[#allocation9 + $0x7c8] sm:$0xff]
          %v3026 = vld [vmem:[#allocation9 + $0x7d0] sm:$0xff]
          %v3027 = vld [vmem:[#allocation9 + $0x7d8] sm:$0xff]
          %v3028 = vld [vmem:[#allocation9 + $0x7e0] sm:$0xff]
          %v3029 = vld [vmem:[#allocation9 + $0x7e8] sm:$0xff]
          %v3030 = vld [vmem:[#allocation9 + $0x7f0] sm:$0xff]
          %v3031 = vld [vmem:[#allocation9 + $0x7f8] sm:$0xff]
          %v3032 = vld [vmem:[#allocation9 + $0x800] sm:$0xff]
          %v3033 = vld [vmem:[#allocation9 + $0x808] sm:$0xff]
          %v3034 = vld [vmem:[#allocation9 + $0x810] sm:$0xff]
          %v3035 = vld [vmem:[#allocation9 + $0x818] sm:$0xff]
          %v3036 = vld [vmem:[#allocation9 + $0x820] sm:$0xff]
          %v3037 = vld [vmem:[#allocation9 + $0x828] sm:$0xff]
          %v3038 = vld [vmem:[#allocation9 + $0x830] sm:$0xff]
          %v3039 = vld [vmem:[#allocation9 + $0x838] sm:$0xff]
          %v3040 = vld [vmem:[#allocation9 + $0x840] sm:$0xff]
          %v3041 = vld [vmem:[#allocation9 + $0x848] sm:$0xff]
          %v3042 = vld [vmem:[#allocation9 + $0x850] sm:$0xff]
          %v3043 = vld [vmem:[#allocation9 + $0x858] sm:$0xff]
          %v3044 = vld [vmem:[#allocation9 + $0x860] sm:$0xff]
          %v3045 = vld [vmem:[#allocation9 + $0x868] sm:$0xff]
          %v3046 = vld [vmem:[#allocation9 + $0x870] sm:$0xff]
          %v3047 = vld [vmem:[#allocation9 + $0x878] sm:$0xff]
          %v3048 = vld [vmem:[#allocation9 + $0x880] sm:$0xff]
          %v3049 = vld [vmem:[#allocation9 + $0x888] sm:$0xff]
          %v3050 = vld [vmem:[#allocation9 + $0x890] sm:$0xff]
          %v3051 = vld [vmem:[#allocation9 + $0x898] sm:$0xff]
          %v3052 = vld [vmem:[#allocation9 + $0x8a0] sm:$0xff]
          %v3053 = vld [vmem:[#allocation9 + $0x8a8] sm:$0xff]
          %v3054 = vld [vmem:[#allocation9 + $0x8b0] sm:$0xff]
          %v3055 = vld [vmem:[#allocation9 + $0x8b8] sm:$0xff]
          %v3056 = vld [vmem:[#allocation9 + $0x8c0] sm:$0xff]
          %v3057 = vld [vmem:[#allocation9 + $0x8c8] sm:$0xff]
          %v3058 = vld [vmem:[#allocation9 + $0x8d0] sm:$0xff]
          %v3059 = vld [vmem:[#allocation9 + $0x8d8] sm:$0xff]
          %v3060 = vld [vmem:[#allocation9 + $0x8e0] sm:$0xff]
          %v3061 = vld [vmem:[#allocation9 + $0x8e8] sm:$0xff]
          %v3062 = vld [vmem:[#allocation9 + $0x8f0] sm:$0xff]
          %v3063 = vld [vmem:[#allocation9 + $0x8f8] sm:$0xff]
          %v3064 = vld [vmem:[#allocation9 + $0x900] sm:$0xff]
          %v3065 = vld [vmem:[#allocation9 + $0x908] sm:$0xff]
          %v3066 = vld [vmem:[#allocation9 + $0x910] sm:$0xff]
          %v3067 = vld [vmem:[#allocation9 + $0x918] sm:$0xff]
          %v3068 = vld [vmem:[#allocation9 + $0x920] sm:$0xff]
          %v3069 = vld [vmem:[#allocation9 + $0x928] sm:$0xff]
          %v3070 = vld [vmem:[#allocation9 + $0x930] sm:$0xff]
          %v3071 = vld [vmem:[#allocation9 + $0x938] sm:$0xff]
          %v3072 = vld [vmem:[#allocation9 + $0x940] sm:$0xff]
          %v3073 = vld [vmem:[#allocation9 + $0x948] sm:$0xff]
          %v3074 = vld [vmem:[#allocation9 + $0x950] sm:$0xff]
          %v3075 = vld [vmem:[#allocation9 + $0x958] sm:$0xff]
          %v3076 = vld [vmem:[#allocation9 + $0x960] sm:$0xff]
          %v3077 = vld [vmem:[#allocation9 + $0x968] sm:$0xff]
          %v3078 = vld [vmem:[#allocation9 + $0x970] sm:$0xff]
          %v3079 = vld [vmem:[#allocation9 + $0x978] sm:$0xff]
          %v3080 = vld [vmem:[#allocation9 + $0x980] sm:$0xff]
          %v3081 = vld [vmem:[#allocation9 + $0x988] sm:$0xff]
          %v3082 = vld [vmem:[#allocation9 + $0x990] sm:$0xff]
          %v3083 = vld [vmem:[#allocation9 + $0x998] sm:$0xff]
          %v3084 = vld [vmem:[#allocation9 + $0x9a0] sm:$0xff]
          %v3085 = vld [vmem:[#allocation9 + $0x9a8] sm:$0xff]
          %v3086 = vld [vmem:[#allocation9 + $0x9b0] sm:$0xff]
          %v3087 = vld [vmem:[#allocation9 + $0x9b8] sm:$0xff]
          %v3088 = vld [vmem:[#allocation9 + $0x9c0] sm:$0xff]
          %v3089 = vld [vmem:[#allocation9 + $0x9c8] sm:$0xff]
          %v3090 = vld [vmem:[#allocation9 + $0x9d0] sm:$0xff]
          %v3091 = vld [vmem:[#allocation9 + $0x9d8] sm:$0xff]
          %v3092 = vld [vmem:[#allocation9 + $0x9e0] sm:$0xff]
          %v3093 = vld [vmem:[#allocation9 + $0x9e8] sm:$0xff]
          %v3094 = vld [vmem:[#allocation9 + $0x9f0] sm:$0xff]
          %v3095 = vld [vmem:[#allocation9 + $0x9f8] sm:$0xff]
          %v3096 = vld [vmem:[#allocation9 + $0xa00] sm:$0xff]
          %v3097 = vld [vmem:[#allocation9 + $0xa08] sm:$0xff]
          %v3098 = vld [vmem:[#allocation9 + $0xa10] sm:$0xff]
          %v3099 = vld [vmem:[#allocation9 + $0xa18] sm:$0xff]
          %v3100 = vld [vmem:[#allocation9 + $0xa20] sm:$0xff]
          %v3101 = vld [vmem:[#allocation9 + $0xa28] sm:$0xff]
          %v3102 = vld [vmem:[#allocation9 + $0xa30] sm:$0xff]
          %v3103 = vld [vmem:[#allocation9 + $0xa38] sm:$0xff]
          %v3104 = vld [vmem:[#allocation9 + $0xa40] sm:$0xff]
          %v3105 = vld [vmem:[#allocation9 + $0xa48] sm:$0xff]
          %v3106 = vld [vmem:[#allocation9 + $0xa50] sm:$0xff]
          %v3107 = vld [vmem:[#allocation9 + $0xa58] sm:$0xff]
          %v3108 = vld [vmem:[#allocation9 + $0xa60] sm:$0xff]
          %v3109 = vld [vmem:[#allocation9 + $0xa68] sm:$0xff]
          %v3110 = vld [vmem:[#allocation9 + $0xa70] sm:$0xff]
          %v3111 = vld [vmem:[#allocation9 + $0xa78] sm:$0xff]
          %v3112 = vld [vmem:[#allocation9 + $0xa80] sm:$0xff]
          %v3113 = vld [vmem:[#allocation9 + $0xa88] sm:$0xff]
          %v3114 = vld [vmem:[#allocation9 + $0xa90] sm:$0xff]
          %v3115 = vld [vmem:[#allocation9 + $0xa98] sm:$0xff]
          %v3116 = vld [vmem:[#allocation9 + $0xaa0] sm:$0xff]
          %v3117 = vld [vmem:[#allocation9 + $0xaa8] sm:$0xff]
          %v3118 = vld [vmem:[#allocation9 + $0xab0] sm:$0xff]
          %v3119 = vld [vmem:[#allocation9 + $0xab8] sm:$0xff]
          %v3120 = vld [vmem:[#allocation9 + $0xac0] sm:$0xff]
          %v3121 = vld [vmem:[#allocation9 + $0xac8] sm:$0xff]
          %v3122 = vld [vmem:[#allocation9 + $0xad0] sm:$0xff]
          %v3123 = vld [vmem:[#allocation9 + $0xad8] sm:$0xff]
          %v3124 = vld [vmem:[#allocation9 + $0xae0] sm:$0xff]
          %v3125 = vld [vmem:[#allocation9 + $0xae8] sm:$0xff]
          %v3126 = vld [vmem:[#allocation9 + $0xaf0] sm:$0xff]
          %v3127 = vld [vmem:[#allocation9 + $0xaf8] sm:$0xff]
          %v3128 = vld [vmem:[#allocation9 + $0xb00] sm:$0xff]
          %v3129 = vld [vmem:[#allocation9 + $0xb08] sm:$0xff]
          %v3130 = vld [vmem:[#allocation9 + $0xb10] sm:$0xff]
          %v3131 = vld [vmem:[#allocation9 + $0xb18] sm:$0xff]
          %v3132 = vld [vmem:[#allocation9 + $0xb20] sm:$0xff]
          %v3133 = vld [vmem:[#allocation9 + $0xb28] sm:$0xff]
          %v3134 = vld [vmem:[#allocation9 + $0xb30] sm:$0xff]
          %v3135 = vld [vmem:[#allocation9 + $0xb38] sm:$0xff]
          %v3136 = vld [vmem:[#allocation9 + $0xb40] sm:$0xff]
          %v3137 = vld [vmem:[#allocation9 + $0xb48] sm:$0xff]
          %v3138 = vld [vmem:[#allocation9 + $0xb50] sm:$0xff]
          %v3139 = vld [vmem:[#allocation9 + $0xb58] sm:$0xff]
          %v3140 = vld [vmem:[#allocation9 + $0xb60] sm:$0xff]
          %v3141 = vld [vmem:[#allocation9 + $0xb68] sm:$0xff]
          %v3142 = vld [vmem:[#allocation9 + $0xb70] sm:$0xff]
          %v3143 = vld [vmem:[#allocation9 + $0xb78] sm:$0xff]
          %v3144 = vld [vmem:[#allocation9 + $0xb80] sm:$0xff]
          %v3145 = vld [vmem:[#allocation9 + $0xb88] sm:$0xff]
          %v3146 = vld [vmem:[#allocation9 + $0xb90] sm:$0xff]
          %v3147 = vld [vmem:[#allocation9 + $0xb98] sm:$0xff]
          %v3148 = vld [vmem:[#allocation9 + $0xba0] sm:$0xff]
          %v3149 = vld [vmem:[#allocation9 + $0xba8] sm:$0xff]
          %v3150 = vld [vmem:[#allocation9 + $0xbb0] sm:$0xff]
          %v3151 = vld [vmem:[#allocation9 + $0xbb8] sm:$0xff]
          %v3152 = vld [vmem:[#allocation9 + $0xbc0] sm:$0xff]
          %v3153 = vld [vmem:[#allocation9 + $0xbc8] sm:$0xff]
          %v3154 = vld [vmem:[#allocation9 + $0xbd0] sm:$0xff]
          %v3155 = vld [vmem:[#allocation9 + $0xbd8] sm:$0xff]
          %v3156 = vld [vmem:[#allocation9 + $0xbe0] sm:$0xff]
          %v3157 = vld [vmem:[#allocation9 + $0xbe8] sm:$0xff]
          %v3158 = vld [vmem:[#allocation9 + $0xbf0] sm:$0xff]
          %v3159 = vld [vmem:[#allocation9 + $0xbf8] sm:$0xff]
          %v3160 = vld [vmem:[#allocation9 + $0xc00] sm:$0xff]
          %v3161 = vld [vmem:[#allocation9 + $0xc08] sm:$0xff]
          %v3162 = vld [vmem:[#allocation9 + $0xc10] sm:$0xff]
          %v3163 = vld [vmem:[#allocation9 + $0xc18] sm:$0xff]
          %v3164 = vld [vmem:[#allocation9 + $0xc20] sm:$0xff]
          %v3165 = vld [vmem:[#allocation9 + $0xc28] sm:$0xff]
          %v3166 = vld [vmem:[#allocation9 + $0xc30] sm:$0xff]
          %v3167 = vld [vmem:[#allocation9 + $0xc38] sm:$0xff]
          %v3168 = vld [vmem:[#allocation9 + $0xc40] sm:$0xff]
          %v3169 = vld [vmem:[#allocation9 + $0xc48] sm:$0xff]
          %v3170 = vld [vmem:[#allocation9 + $0xc50] sm:$0xff]
          %v3171 = vld [vmem:[#allocation9 + $0xc58] sm:$0xff]
          %v3172 = vld [vmem:[#allocation9 + $0xc60] sm:$0xff]
          %v3173 = vld [vmem:[#allocation9 + $0xc68] sm:$0xff]
          %v3174 = vld [vmem:[#allocation9 + $0xc70] sm:$0xff]
          %v3175 = vld [vmem:[#allocation9 + $0xc78] sm:$0xff]
          %v3176 = vld [vmem:[#allocation9 + $0xc80] sm:$0xff]
          %v3177 = vld [vmem:[#allocation9 + $0xc88] sm:$0xff]
          %v3178 = vld [vmem:[#allocation9 + $0xc90] sm:$0xff]
          %v3179 = vld [vmem:[#allocation9 + $0xc98] sm:$0xff]
          %v3180 = vld [vmem:[#allocation9 + $0xca0] sm:$0xff]
          %v3181 = vld [vmem:[#allocation9 + $0xca8] sm:$0xff]
          %v3182 = vld [vmem:[#allocation9 + $0xcb0] sm:$0xff]
          %v3183 = vld [vmem:[#allocation9 + $0xcb8] sm:$0xff]
          %v3184 = vld [vmem:[#allocation9 + $0xcc0] sm:$0xff]
          %v3185 = vld [vmem:[#allocation9 + $0xcc8] sm:$0xff]
          %v3186 = vld [vmem:[#allocation9 + $0xcd0] sm:$0xff]
          %v3187 = vld [vmem:[#allocation9 + $0xcd8] sm:$0xff]
          %v3188 = vld [vmem:[#allocation9 + $0xce0] sm:$0xff]
          %v3189 = vld [vmem:[#allocation9 + $0xce8] sm:$0xff]
          %v3190 = vld [vmem:[#allocation9 + $0xcf0] sm:$0xff]
          %v3191 = vld [vmem:[#allocation9 + $0xcf8] sm:$0xff]
          %v3192 = vld [vmem:[#allocation9 + $0xd00] sm:$0xff]
          %v3193 = vld [vmem:[#allocation9 + $0xd08] sm:$0xff]
          %v3194 = vld [vmem:[#allocation9 + $0xd10] sm:$0xff]
          %v3195 = vld [vmem:[#allocation9 + $0xd18] sm:$0xff]
          %v3196 = vld [vmem:[#allocation9 + $0xd20] sm:$0xff]
          %v3197 = vld [vmem:[#allocation9 + $0xd28] sm:$0xff]
          %v3198 = vld [vmem:[#allocation9 + $0xd30] sm:$0xff]
          %v3199 = vld [vmem:[#allocation9 + $0xd38] sm:$0xff]
          %v3200 = vld [vmem:[#allocation9 + $0xd40] sm:$0xff]
          %v3201 = vld [vmem:[#allocation9 + $0xd48] sm:$0xff]
          %v3202 = vld [vmem:[#allocation9 + $0xd50] sm:$0xff]
          %v3203 = vld [vmem:[#allocation9 + $0xd58] sm:$0xff]
          %v3204 = vld [vmem:[#allocation9 + $0xd60] sm:$0xff]
          %v3205 = vld [vmem:[#allocation9 + $0xd68] sm:$0xff]
          %v3206 = vld [vmem:[#allocation9 + $0xd70] sm:$0xff]
          %v3207 = vld [vmem:[#allocation9 + $0xd78] sm:$0xff]
          %v3208 = vld [vmem:[#allocation9 + $0xd80] sm:$0xff]
          %v3209 = vld [vmem:[#allocation9 + $0xd88] sm:$0xff]
          %v3210 = vld [vmem:[#allocation9 + $0xd90] sm:$0xff]
          %v3211 = vld [vmem:[#allocation9 + $0xd98] sm:$0xff]
          %v3212 = vld [vmem:[#allocation9 + $0xda0] sm:$0xff]
          %v3213 = vld [vmem:[#allocation9 + $0xda8] sm:$0xff]
          %v3214 = vld [vmem:[#allocation9 + $0xdb0] sm:$0xff]
          %v3215 = vld [vmem:[#allocation9 + $0xdb8] sm:$0xff]
          %v3216 = vld [vmem:[#allocation9 + $0xdc0] sm:$0xff]
          %v3217 = vld [vmem:[#allocation9 + $0xdc8] sm:$0xff]
          %v3218 = vld [vmem:[#allocation9 + $0xdd0] sm:$0xff]
          %v3219 = vld [vmem:[#allocation9 + $0xdd8] sm:$0xff]
          %v3220 = vld [vmem:[#allocation9 + $0xde0] sm:$0xff]
          %v3221 = vld [vmem:[#allocation9 + $0xde8] sm:$0xff]
          %v3222 = vld [vmem:[#allocation9 + $0xdf0] sm:$0xff]
          %v3223 = vld [vmem:[#allocation9 + $0xdf8] sm:$0xff]
          %v3224 = vld [vmem:[#allocation9 + $0xe00] sm:$0xff]
          %v3225 = vld [vmem:[#allocation9 + $0xe08] sm:$0xff]
          %v3226 = vld [vmem:[#allocation9 + $0xe10] sm:$0xff]
          %v3227 = vld [vmem:[#allocation9 + $0xe18] sm:$0xff]
          %v3228 = vld [vmem:[#allocation9 + $0xe20] sm:$0xff]
          %v3229 = vld [vmem:[#allocation9 + $0xe28] sm:$0xff]
          %v3230 = vld [vmem:[#allocation9 + $0xe30] sm:$0xff]
          %v3231 = vld [vmem:[#allocation9 + $0xe38] sm:$0xff]
          %v3232 = vld [vmem:[#allocation9 + $0xe40] sm:$0xff]
          %v3233 = vld [vmem:[#allocation9 + $0xe48] sm:$0xff]
          %v3234 = vld [vmem:[#allocation9 + $0xe50] sm:$0xff]
          %v3235 = vld [vmem:[#allocation9 + $0xe58] sm:$0xff]
          %v3236 = vld [vmem:[#allocation9 + $0xe60] sm:$0xff]
          %v3237 = vld [vmem:[#allocation9 + $0xe68] sm:$0xff]
          %v3238 = vld [vmem:[#allocation9 + $0xe70] sm:$0xff]
          %v3239 = vld [vmem:[#allocation9 + $0xe78] sm:$0xff]
          %v3240 = vld [vmem:[#allocation9 + $0xe80] sm:$0xff]
          %v3241 = vld [vmem:[#allocation9 + $0xe88] sm:$0xff]
          %v3242 = vld [vmem:[#allocation9 + $0xe90] sm:$0xff]
          %v3243 = vld [vmem:[#allocation9 + $0xe98] sm:$0xff]
          %v3244 = vld [vmem:[#allocation9 + $0xea0] sm:$0xff]
          %v3245 = vld [vmem:[#allocation9 + $0xea8] sm:$0xff]
          %v3246 = vld [vmem:[#allocation9 + $0xeb0] sm:$0xff]
          %v3247 = vld [vmem:[#allocation9 + $0xeb8] sm:$0xff]
          %v3248 = vld [vmem:[#allocation9 + $0xec0] sm:$0xff]
          %v3249 = vld [vmem:[#allocation9 + $0xec8] sm:$0xff]
          %v3250 = vld [vmem:[#allocation9 + $0xed0] sm:$0xff]
          %v3251 = vld [vmem:[#allocation9 + $0xed8] sm:$0xff]
          %v3252 = vld [vmem:[#allocation9 + $0xee0] sm:$0xff]
          %v3253 = vld [vmem:[#allocation9 + $0xee8] sm:$0xff]
          %v3254 = vld [vmem:[#allocation9 + $0xef0] sm:$0xff]
          %v3255 = vld [vmem:[#allocation9 + $0xef8] sm:$0xff]
          %v3256 = vld [vmem:[#allocation9 + $0xf00] sm:$0xff]
          %v3257 = vld [vmem:[#allocation9 + $0xf08] sm:$0xff]
          %v3258 = vld [vmem:[#allocation9 + $0xf10] sm:$0xff]
          %v3259 = vld [vmem:[#allocation9 + $0xf18] sm:$0xff]
          %v3260 = vld [vmem:[#allocation9 + $0xf20] sm:$0xff]
          %v3261 = vld [vmem:[#allocation9 + $0xf28] sm:$0xff]
          %v3262 = vld [vmem:[#allocation9 + $0xf30] sm:$0xff]
          %v3263 = vld [vmem:[#allocation9 + $0xf38] sm:$0xff]
          %v3264 = vld [vmem:[#allocation9 + $0xf40] sm:$0xff]
          %v3265 = vld [vmem:[#allocation9 + $0xf48] sm:$0xff]
          %v3266 = vld [vmem:[#allocation9 + $0xf50] sm:$0xff]
          %v3267 = vld [vmem:[#allocation9 + $0xf58] sm:$0xff]
          %v3268 = vld [vmem:[#allocation9 + $0xf60] sm:$0xff]
          %v3269 = vld [vmem:[#allocation9 + $0xf68] sm:$0xff]
          %v3270 = vld [vmem:[#allocation9 + $0xf70] sm:$0xff]
          %v3271 = vld [vmem:[#allocation9 + $0xf78] sm:$0xff]
          %v3272 = vld [vmem:[#allocation9 + $0xf80] sm:$0xff]
          %v3273 = vld [vmem:[#allocation9 + $0xf88] sm:$0xff]
          %v3274 = vld [vmem:[#allocation9 + $0xf90] sm:$0xff]
          %v3275 = vld [vmem:[#allocation9 + $0xf98] sm:$0xff]
          %v3276 = vld [vmem:[#allocation9 + $0xfa0] sm:$0xff]
          %v3277 = vld [vmem:[#allocation9 + $0xfa8] sm:$0xff]
          %v3278 = vld [vmem:[#allocation9 + $0xfb0] sm:$0xff]
          %v3279 = vld [vmem:[#allocation9 + $0xfb8] sm:$0xff]
          %v3280 = vld [vmem:[#allocation9 + $0xfc0] sm:$0xff]
          %v3281 = vld [vmem:[#allocation9 + $0xfc8] sm:$0xff]
          %v3282 = vld [vmem:[#allocation9 + $0xfd0] sm:$0xff]
          %v3283 = vld [vmem:[#allocation9 + $0xfd8] sm:$0xff]
          %v3284 = vld [vmem:[#allocation9 + $0xfe0] sm:$0xff]
          %v3285 = vld [vmem:[#allocation9 + $0xfe8] sm:$0xff]
          %v3286 = vld [vmem:[#allocation9 + $0xff0] sm:$0xff]
          %v3287 = vld [vmem:[#allocation9 + $0xff8] sm:$0xff]
          %v3288 = vld [vmem:[#allocation11] sm:$0xf]
          %v3290 = vlaneseq
          %v3291 = vshrl.u32 %v3290, 7
          %v3292 = vsub.s32 0, %v3291
          %v3293 = vrot.slane %v3288, %v3292
          %v3294 = vlaneseq
          %v3295 = vshrl.u32 %v3294, 7
          %v3296 = vsub.s32 1, %v3295
          %v3297 = vrot.slane %v3288, %v3296
          %v3298 = vlaneseq
          %v3299 = vshrl.u32 %v3298, 7
          %v3300 = vsub.s32 2, %v3299
          %v3301 = vrot.slane %v3288, %v3300
          %v3302 = vlaneseq
          %v3303 = vshrl.u32 %v3302, 7
          %v3304 = vsub.s32 3, %v3303
          %v3305 = vrot.slane %v3288, %v3304
          %3310 = vmatprep.subr.mxu0 %v2777
          %3311 = vmatpush1.msra.mxu0 %v2776
          %3312 = vmatprep.subr.mxu0 %v2781
          %3313 = vmatpush1.msra.mxu0 %v2780
          %3314 = vmatprep.subr.mxu0 %v2785
          %3315 = vmatpush1.msra.mxu0 %v2784
          %3316 = vmatprep.subr.mxu0 %v2789
          %3317 = vmatpush1.msra.mxu0 %v2788
          %3318 = vmatprep.subr.mxu0 %v2793
          %3319 = vmatpush1.msra.mxu0 %v2792
          %3320 = vmatprep.subr.mxu0 %v2797
          %3321 = vmatpush1.msra.mxu0 %v2796
          %3322 = vmatprep.subr.mxu0 %v2801
          %3323 = vmatpush1.msra.mxu0 %v2800
          %3324 = vmatprep.subr.mxu0 %v2805
          %3325 = vmatpush1.msra.mxu0 %v2804
          %3326 = vmatprep.subr.mxu0 %v2809
          %3327 = vmatpush1.msra.mxu0 %v2808
          %3328 = vmatprep.subr.mxu0 %v2813
          %3329 = vmatpush1.msra.mxu0 %v2812
          %3330 = vmatprep.subr.mxu0 %v2817
          %3331 = vmatpush1.msra.mxu0 %v2816
          %3332 = vmatprep.subr.mxu0 %v2821
          %3333 = vmatpush1.msra.mxu0 %v2820
          %3334 = vmatprep.subr.mxu0 %v2825
          %3335 = vmatpush1.msra.mxu0 %v2824
          %3336 = vmatprep.subr.mxu0 %v2829
          %3337 = vmatpush1.msra.mxu0 %v2828
          %3338 = vmatprep.subr.mxu0 %v2833
          %3339 = vmatpush1.msra.mxu0 %v2832
          %3340 = vmatprep.subr.mxu0 %v2837
          %3341 = vmatpush1.msra.mxu0 %v2836
          %3342 = vmatprep.subr.mxu0 %v2841
          %3343 = vmatpush1.msra.mxu0 %v2840
          %3344 = vmatprep.subr.mxu0 %v2845
          %3345 = vmatpush1.msra.mxu0 %v2844
          %3346 = vmatprep.subr.mxu0 %v2849
          %3347 = vmatpush1.msra.mxu0 %v2848
          %3348 = vmatprep.subr.mxu0 %v2853
          %3349 = vmatpush1.msra.mxu0 %v2852
          %3350 = vmatprep.subr.mxu0 %v2857
          %3351 = vmatpush1.msra.mxu0 %v2856
          %3352 = vmatprep.subr.mxu0 %v2861
          %3353 = vmatpush1.msra.mxu0 %v2860
          %3354 = vmatprep.subr.mxu0 %v2865
          %3355 = vmatpush1.msra.mxu0 %v2864
          %3356 = vmatprep.subr.mxu0 %v2869
          %3357 = vmatpush1.msra.mxu0 %v2868
          %3358 = vmatprep.subr.mxu0 %v2873
          %3359 = vmatpush1.msra.mxu0 %v2872
          %3360 = vmatprep.subr.mxu0 %v2877
          %3361 = vmatpush1.msra.mxu0 %v2876
          %3362 = vmatprep.subr.mxu0 %v2881
          %3363 = vmatpush1.msra.mxu0 %v2880
          %3364 = vmatprep.subr.mxu0 %v2885
          %3365 = vmatpush1.msra.mxu0 %v2884
          %3366 = vmatprep.subr.mxu0 %v2889
          %3367 = vmatpush1.msra.mxu0 %v2888
          %3368 = vmatprep.subr.mxu0 %v2893
          %3369 = vmatpush1.msra.mxu0 %v2892
          %3370 = vmatprep.subr.mxu0 %v2897
          %3371 = vmatpush1.msra.mxu0 %v2896
          %3372 = vmatprep.subr.mxu0 %v2901
          %3373 = vmatpush1.msra.mxu0 %v2900
          %3374 = vmatprep.mubr.f32.mxu0 %v2769
          %3375 = vmatmul.mubr.f32.gmra.mrb[0].mxu0 %v2768
          %v3376 = vpop.f32.mrb[0].mxu0
          %v3377 = vadd.f32 %v3293, %v3376
          %v3378 = vpop.f32.mrb[0].mxu0
          %v3379 = vadd.f32 %v3297, %v3378
          %3380 = vdwg.mxu0
          %3381 = vmatprep.subr.mxu0 %v2905
          %3382 = vmatpush1.msra.mxu0 %v2904
          %3383 = vmatprep.subr.mxu0 %v2909
          %3384 = vmatpush1.msra.mxu0 %v2908
          %3385 = vmatprep.subr.mxu0 %v2913
          %3386 = vmatpush1.msra.mxu0 %v2912
          %3387 = vmatprep.subr.mxu0 %v2917
          %3388 = vmatpush1.msra.mxu0 %v2916
          %3389 = vmatprep.subr.mxu0 %v2921
          %3390 = vmatpush1.msra.mxu0 %v2920
          %3391 = vmatprep.subr.mxu0 %v2925
          %3392 = vmatpush1.msra.mxu0 %v2924
          %3393 = vmatprep.subr.mxu0 %v2929
          %3394 = vmatpush1.msra.mxu0 %v2928
          %3395 = vmatprep.subr.mxu0 %v2933
          %3396 = vmatpush1.msra.mxu0 %v2932
          %3397 = vmatprep.subr.mxu0 %v2937
          %3398 = vmatpush1.msra.mxu0 %v2936
          %3399 = vmatprep.subr.mxu0 %v2941
          %3400 = vmatpush1.msra.mxu0 %v2940
          %3401 = vmatprep.subr.mxu0 %v2945
          %3402 = vmatpush1.msra.mxu0 %v2944
          %3403 = vmatprep.subr.mxu0 %v2949
          %3404 = vmatpush1.msra.mxu0 %v2948
          %3405 = vmatprep.subr.mxu0 %v2953
          %3406 = vmatpush1.msra.mxu0 %v2952
          %3407 = vmatprep.subr.mxu0 %v2957
          %3408 = vmatpush1.msra.mxu0 %v2956
          %3409 = vmatprep.subr.mxu0 %v2961
          %3410 = vmatpush1.msra.mxu0 %v2960
          %3411 = vmatprep.subr.mxu0 %v2965
          %3412 = vmatpush1.msra.mxu0 %v2964
          %3413 = vmatprep.subr.mxu0 %v2969
          %3414 = vmatpush1.msra.mxu0 %v2968
          %3415 = vmatprep.subr.mxu0 %v2973
          %3416 = vmatpush1.msra.mxu0 %v2972
          %3417 = vmatprep.subr.mxu0 %v2977
          %3418 = vmatpush1.msra.mxu0 %v2976
          %3419 = vmatprep.subr.mxu0 %v2981
          %3420 = vmatpush1.msra.mxu0 %v2980
          %3421 = vmatprep.subr.mxu0 %v2985
          %3422 = vmatpush1.msra.mxu0 %v2984
          %3423 = vmatprep.subr.mxu0 %v2989
          %3424 = vmatpush1.msra.mxu0 %v2988
          %3425 = vmatprep.subr.mxu0 %v2993
          %3426 = vmatpush1.msra.mxu0 %v2992
          %3427 = vmatprep.subr.mxu0 %v2997
          %3428 = vmatpush1.msra.mxu0 %v2996
          %3429 = vmatprep.subr.mxu0 %v3001
          %3430 = vmatpush1.msra.mxu0 %v3000
          %3431 = vmatprep.subr.mxu0 %v3005
          %3432 = vmatpush1.msra.mxu0 %v3004
          %3433 = vmatprep.subr.mxu0 %v3009
          %3434 = vmatpush1.msra.mxu0 %v3008
          %3435 = vmatprep.subr.mxu0 %v3013
          %3436 = vmatpush1.msra.mxu0 %v3012
          %3437 = vmatprep.subr.mxu0 %v3017
          %3438 = vmatpush1.msra.mxu0 %v3016
          %3439 = vmatprep.subr.mxu0 %v3021
          %3440 = vmatpush1.msra.mxu0 %v3020
          %3441 = vmatprep.subr.mxu0 %v3025
          %3442 = vmatpush1.msra.mxu0 %v3024
          %3443 = vmatprep.subr.mxu0 %v3029
          %3444 = vmatpush1.msra.mxu0 %v3028
          %3445 = vmatprep.mubr.f32.mxu0 %v2771
          %3446 = vmatmul.mubr.f32.gmra.mrb[0].mxu0 %v2770
          %v3447 = vpop.f32.mrb[0].mxu0
          %v3448 = vadd.f32 %v3377, %v3447
          %v3449 = vpop.f32.mrb[0].mxu0
          %v3450 = vadd.f32 %v3379, %v3449
          %3451 = vdwg.mxu0
          %3452 = vmatprep.subr.mxu0 %v3033
          %3453 = vmatpush1.msra.mxu0 %v3032
          %3454 = vmatprep.subr.mxu0 %v3037
          %3455 = vmatpush1.msra.mxu0 %v3036
          %3456 = vmatprep.subr.mxu0 %v3041
          %3457 = vmatpush1.msra.mxu0 %v3040
          %3458 = vmatprep.subr.mxu0 %v3045
          %3459 = vmatpush1.msra.mxu0 %v3044
          %3460 = vmatprep.subr.mxu0 %v3049
          %3461 = vmatpush1.msra.mxu0 %v3048
          %3462 = vmatprep.subr.mxu0 %v3053
          %3463 = vmatpush1.msra.mxu0 %v3052
          %3464 = vmatprep.subr.mxu0 %v3057
          %3465 = vmatpush1.msra.mxu0 %v3056
          %3466 = vmatprep.subr.mxu0 %v3061
          %3467 = vmatpush1.msra.mxu0 %v3060
          %3468 = vmatprep.subr.mxu0 %v3065
          %3469 = vmatpush1.msra.mxu0 %v3064
          %3470 = vmatprep.subr.mxu0 %v3069
          %3471 = vmatpush1.msra.mxu0 %v3068
          %3472 = vmatprep.subr.mxu0 %v3073
          %3473 = vmatpush1.msra.mxu0 %v3072
          %3474 = vmatprep.subr.mxu0 %v3077
          %3475 = vmatpush1.msra.mxu0 %v3076
          %3476 = vmatprep.subr.mxu0 %v3081
          %3477 = vmatpush1.msra.mxu0 %v3080
          %3478 = vmatprep.subr.mxu0 %v3085
          %3479 = vmatpush1.msra.mxu0 %v3084
          %3480 = vmatprep.subr.mxu0 %v3089
          %3481 = vmatpush1.msra.mxu0 %v3088
          %3482 = vmatprep.subr.mxu0 %v3093
          %3483 = vmatpush1.msra.mxu0 %v3092
          %3484 = vmatprep.subr.mxu0 %v3097
          %3485 = vmatpush1.msra.mxu0 %v3096
          %3486 = vmatprep.subr.mxu0 %v3101
          %3487 = vmatpush1.msra.mxu0 %v3100
          %3488 = vmatprep.subr.mxu0 %v3105
          %3489 = vmatpush1.msra.mxu0 %v3104
          %3490 = vmatprep.subr.mxu0 %v3109
          %3491 = vmatpush1.msra.mxu0 %v3108
          %3492 = vmatprep.subr.mxu0 %v3113
          %3493 = vmatpush1.msra.mxu0 %v3112
          %3494 = vmatprep.subr.mxu0 %v3117
          %3495 = vmatpush1.msra.mxu0 %v3116
          %3496 = vmatprep.subr.mxu0 %v3121
          %3497 = vmatpush1.msra.mxu0 %v3120
          %3498 = vmatprep.subr.mxu0 %v3125
          %3499 = vmatpush1.msra.mxu0 %v3124
          %3500 = vmatprep.subr.mxu0 %v3129
          %3501 = vmatpush1.msra.mxu0 %v3128
          %3502 = vmatprep.subr.mxu0 %v3133
          %3503 = vmatpush1.msra.mxu0 %v3132
          %3504 = vmatprep.subr.mxu0 %v3137
          %3505 = vmatpush1.msra.mxu0 %v3136
          %3506 = vmatprep.subr.mxu0 %v3141
          %3507 = vmatpush1.msra.mxu0 %v3140
          %3508 = vmatprep.subr.mxu0 %v3145
          %3509 = vmatpush1.msra.mxu0 %v3144
          %3510 = vmatprep.subr.mxu0 %v3149
          %3511 = vmatpush1.msra.mxu0 %v3148
          %3512 = vmatprep.subr.mxu0 %v3153
          %3513 = vmatpush1.msra.mxu0 %v3152
          %3514 = vmatprep.subr.mxu0 %v3157
          %3515 = vmatpush1.msra.mxu0 %v3156
          %3516 = vmatprep.mubr.f32.mxu0 %v2773
          %3517 = vmatmul.mubr.f32.gmra.mrb[0].mxu0 %v2772
          %v3518 = vpop.f32.mrb[0].mxu0
          %v3519 = vadd.f32 %v3448, %v3518
          %v3520 = vpop.f32.mrb[0].mxu0
          %v3521 = vadd.f32 %v3450, %v3520
          %3522 = vdwg.mxu0
          %3523 = vmatprep.subr.mxu0 %v3161
          %3524 = vmatpush1.msra.mxu0 %v3160
          %3525 = vmatprep.subr.mxu0 %v3165
          %3526 = vmatpush1.msra.mxu0 %v3164
          %3527 = vmatprep.subr.mxu0 %v3169
          %3528 = vmatpush1.msra.mxu0 %v3168
          %3529 = vmatprep.subr.mxu0 %v3173
          %3530 = vmatpush1.msra.mxu0 %v3172
          %3531 = vmatprep.subr.mxu0 %v3177
          %3532 = vmatpush1.msra.mxu0 %v3176
          %3533 = vmatprep.subr.mxu0 %v3181
          %3534 = vmatpush1.msra.mxu0 %v3180
          %3535 = vmatprep.subr.mxu0 %v3185
          %3536 = vmatpush1.msra.mxu0 %v3184
          %3537 = vmatprep.subr.mxu0 %v3189
          %3538 = vmatpush1.msra.mxu0 %v3188
          %3539 = vmatprep.subr.mxu0 %v3193
          %3540 = vmatpush1.msra.mxu0 %v3192
          %3541 = vmatprep.subr.mxu0 %v3197
          %3542 = vmatpush1.msra.mxu0 %v3196
          %3543 = vmatprep.subr.mxu0 %v3201
          %3544 = vmatpush1.msra.mxu0 %v3200
          %3545 = vmatprep.subr.mxu0 %v3205
          %3546 = vmatpush1.msra.mxu0 %v3204
          %3547 = vmatprep.subr.mxu0 %v3209
          %3548 = vmatpush1.msra.mxu0 %v3208
          %3549 = vmatprep.subr.mxu0 %v3213
          %3550 = vmatpush1.msra.mxu0 %v3212
          %3551 = vmatprep.subr.mxu0 %v3217
          %3552 = vmatpush1.msra.mxu0 %v3216
          %3553 = vmatprep.subr.mxu0 %v3221
          %3554 = vmatpush1.msra.mxu0 %v3220
          %3555 = vmatprep.subr.mxu0 %v3225
          %3556 = vmatpush1.msra.mxu0 %v3224
          %3557 = vmatprep.subr.mxu0 %v3229
          %3558 = vmatpush1.msra.mxu0 %v3228
          %3559 = vmatprep.subr.mxu0 %v3233
          %3560 = vmatpush1.msra.mxu0 %v3232
          %3561 = vmatprep.subr.mxu0 %v3237
          %3562 = vmatpush1.msra.mxu0 %v3236
          %3563 = vmatprep.subr.mxu0 %v3241
          %3564 = vmatpush1.msra.mxu0 %v3240
          %3565 = vmatprep.subr.mxu0 %v3245
          %3566 = vmatpush1.msra.mxu0 %v3244
          %3567 = vmatprep.subr.mxu0 %v3249
          %3568 = vmatpush1.msra.mxu0 %v3248
          %3569 = vmatprep.subr.mxu0 %v3253
          %3570 = vmatpush1.msra.mxu0 %v3252
          %3571 = vmatprep.subr.mxu0 %v3257
          %3572 = vmatpush1.msra.mxu0 %v3256
          %3573 = vmatprep.subr.mxu0 %v3261
          %3574 = vmatpush1.msra.mxu0 %v3260
          %3575 = vmatprep.subr.mxu0 %v3265
          %3576 = vmatpush1.msra.mxu0 %v3264
          %3577 = vmatprep.subr.mxu0 %v3269
          %3578 = vmatpush1.msra.mxu0 %v3268
          %3579 = vmatprep.subr.mxu0 %v3273
          %3580 = vmatpush1.msra.mxu0 %v3272
          %3581 = vmatprep.subr.mxu0 %v3277
          %3582 = vmatpush1.msra.mxu0 %v3276
          %3583 = vmatprep.subr.mxu0 %v3281
          %3584 = vmatpush1.msra.mxu0 %v3280
          %3585 = vmatprep.subr.mxu0 %v3285
          %3586 = vmatpush1.msra.mxu0 %v3284
          %3587 = vmatprep.mubr.f32.mxu0 %v2775
          %3588 = vmatmul.mubr.f32.gmra.mrb[0].mxu0 %v2774
          %v3589 = vpop.f32.mrb[0].mxu0
          %v3590 = vadd.f32 %v3519, %v3589
          %v3591 = vpop.f32.mrb[0].mxu0
          %v3592 = vadd.f32 %v3521, %v3591
          %3593 = vdwg.mxu0
          %3594 = vmatprep.subr.mxu0 %v2779
          %3595 = vmatpush1.msra.mxu0 %v2778
          %3596 = vmatprep.subr.mxu0 %v2783
          %3597 = vmatpush1.msra.mxu0 %v2782
          %3598 = vmatprep.subr.mxu0 %v2787
          %3599 = vmatpush1.msra.mxu0 %v2786
          %3600 = vmatprep.subr.mxu0 %v2791
          %3601 = vmatpush1.msra.mxu0 %v2790
          %3602 = vmatprep.subr.mxu0 %v2795
          %3603 = vmatpush1.msra.mxu0 %v2794
          %3604 = vmatprep.subr.mxu0 %v2799
          %3605 = vmatpush1.msra.mxu0 %v2798
          %3606 = vmatprep.subr.mxu0 %v2803
          %3607 = vmatpush1.msra.mxu0 %v2802
          %3608 = vmatprep.subr.mxu0 %v2807
          %3609 = vmatpush1.msra.mxu0 %v2806
          %3610 = vmatprep.subr.mxu0 %v2811
          %3611 = vmatpush1.msra.mxu0 %v2810
          %3612 = vmatprep.subr.mxu0 %v2815
          %3613 = vmatpush1.msra.mxu0 %v2814
          %3614 = vmatprep.subr.mxu0 %v2819
          %3615 = vmatpush1.msra.mxu0 %v2818
          %3616 = vmatprep.subr.mxu0 %v2823
          %3617 = vmatpush1.msra.mxu0 %v2822
          %3618 = vmatprep.subr.mxu0 %v2827
          %3619 = vmatpush1.msra.mxu0 %v2826
          %3620 = vmatprep.subr.mxu0 %v2831
          %3621 = vmatpush1.msra.mxu0 %v2830
          %3622 = vmatprep.subr.mxu0 %v2835
          %3623 = vmatpush1.msra.mxu0 %v2834
          %3624 = vmatprep.subr.mxu0 %v2839
          %3625 = vmatpush1.msra.mxu0 %v2838
          %3626 = vmatprep.subr.mxu0 %v2843
          %3627 = vmatpush1.msra.mxu0 %v2842
          %3628 = vmatprep.subr.mxu0 %v2847
          %3629 = vmatpush1.msra.mxu0 %v2846
          %3630 = vmatprep.subr.mxu0 %v2851
          %3631 = vmatpush1.msra.mxu0 %v2850
          %3632 = vmatprep.subr.mxu0 %v2855
          %3633 = vmatpush1.msra.mxu0 %v2854
          %3634 = vmatprep.subr.mxu0 %v2859
          %3635 = vmatpush1.msra.mxu0 %v2858
          %3636 = vmatprep.subr.mxu0 %v2863
          %3637 = vmatpush1.msra.mxu0 %v2862
          %3638 = vmatprep.subr.mxu0 %v2867
          %3639 = vmatpush1.msra.mxu0 %v2866
          %3640 = vmatprep.subr.mxu0 %v2871
          %3641 = vmatpush1.msra.mxu0 %v2870
          %3642 = vmatprep.subr.mxu0 %v2875
          %3643 = vmatpush1.msra.mxu0 %v2874
          %3644 = vmatprep.subr.mxu0 %v2879
          %3645 = vmatpush1.msra.mxu0 %v2878
          %3646 = vmatprep.subr.mxu0 %v2883
          %3647 = vmatpush1.msra.mxu0 %v2882
          %3648 = vmatprep.subr.mxu0 %v2887
          %3649 = vmatpush1.msra.mxu0 %v2886
          %3650 = vmatprep.subr.mxu0 %v2891
          %3651 = vmatpush1.msra.mxu0 %v2890
          %3652 = vmatprep.subr.mxu0 %v2895
          %3653 = vmatpush1.msra.mxu0 %v2894
          %3654 = vmatprep.subr.mxu0 %v2899
          %3655 = vmatpush1.msra.mxu0 %v2898
          %3656 = vmatprep.subr.mxu0 %v2903
          %3657 = vmatpush1.msra.mxu0 %v2902
          %3658 = vmatprep.mubr.f32.mxu0 %v2769
          %3659 = vmatmul.mubr.f32.gmra.mrb[0].mxu0 %v2768
          %v3660 = vpop.f32.mrb[0].mxu0
          %v3661 = vadd.f32 %v3301, %v3660
          %v3662 = vpop.f32.mrb[0].mxu0
          %v3663 = vadd.f32 %v3305, %v3662
          %3664 = vdwg.mxu0
          %3665 = vmatprep.subr.mxu0 %v2907
          %3666 = vmatpush1.msra.mxu0 %v2906
          %3667 = vmatprep.subr.mxu0 %v2911
          %3668 = vmatpush1.msra.mxu0 %v2910
          %3669 = vmatprep.subr.mxu0 %v2915
          %3670 = vmatpush1.msra.mxu0 %v2914
          %3671 = vmatprep.subr.mxu0 %v2919
          %3672 = vmatpush1.msra.mxu0 %v2918
          %3673 = vmatprep.subr.mxu0 %v2923
          %3674 = vmatpush1.msra.mxu0 %v2922
          %3675 = vmatprep.subr.mxu0 %v2927
          %3676 = vmatpush1.msra.mxu0 %v2926
          %3677 = vmatprep.subr.mxu0 %v2931
          %3678 = vmatpush1.msra.mxu0 %v2930
          %3679 = vmatprep.subr.mxu0 %v2935
          %3680 = vmatpush1.msra.mxu0 %v2934
          %3681 = vmatprep.subr.mxu0 %v2939
          %3682 = vmatpush1.msra.mxu0 %v2938
          %3683 = vmatprep.subr.mxu0 %v2943
          %3684 = vmatpush1.msra.mxu0 %v2942
          %3685 = vmatprep.subr.mxu0 %v2947
          %3686 = vmatpush1.msra.mxu0 %v2946
          %3687 = vmatprep.subr.mxu0 %v2951
          %3688 = vmatpush1.msra.mxu0 %v2950
          %3689 = vmatprep.subr.mxu0 %v2955
          %3690 = vmatpush1.msra.mxu0 %v2954
          %3691 = vmatprep.subr.mxu0 %v2959
          %3692 = vmatpush1.msra.mxu0 %v2958
          %3693 = vmatprep.subr.mxu0 %v2963
          %3694 = vmatpush1.msra.mxu0 %v2962
          %3695 = vmatprep.subr.mxu0 %v2967
          %3696 = vmatpush1.msra.mxu0 %v2966
          %3697 = vmatprep.subr.mxu0 %v2971
          %3698 = vmatpush1.msra.mxu0 %v2970
          %3699 = vmatprep.subr.mxu0 %v2975
          %3700 = vmatpush1.msra.mxu0 %v2974
          %3701 = vmatprep.subr.mxu0 %v2979
          %3702 = vmatpush1.msra.mxu0 %v2978
          %3703 = vmatprep.subr.mxu0 %v2983
          %3704 = vmatpush1.msra.mxu0 %v2982
          %3705 = vmatprep.subr.mxu0 %v2987
          %3706 = vmatpush1.msra.mxu0 %v2986
          %3707 = vmatprep.subr.mxu0 %v2991
          %3708 = vmatpush1.msra.mxu0 %v2990
          %3709 = vmatprep.subr.mxu0 %v2995
          %3710 = vmatpush1.msra.mxu0 %v2994
          %3711 = vmatprep.subr.mxu0 %v2999
          %3712 = vmatpush1.msra.mxu0 %v2998
          %3713 = vmatprep.subr.mxu0 %v3003
          %3714 = vmatpush1.msra.mxu0 %v3002
          %3715 = vmatprep.subr.mxu0 %v3007
          %3716 = vmatpush1.msra.mxu0 %v3006
          %3717 = vmatprep.subr.mxu0 %v3011
          %3718 = vmatpush1.msra.mxu0 %v3010
          %3719 = vmatprep.subr.mxu0 %v3015
          %3720 = vmatpush1.msra.mxu0 %v3014
          %3721 = vmatprep.subr.mxu0 %v3019
          %3722 = vmatpush1.msra.mxu0 %v3018
          %3723 = vmatprep.subr.mxu0 %v3023
          %3724 = vmatpush1.msra.mxu0 %v3022
          %3725 = vmatprep.subr.mxu0 %v3027
          %3726 = vmatpush1.msra.mxu0 %v3026
          %3727 = vmatprep.subr.mxu0 %v3031
          %3728 = vmatpush1.msra.mxu0 %v3030
          %3729 = vmatprep.mubr.f32.mxu0 %v2771
          %3730 = vmatmul.mubr.f32.gmra.mrb[0].mxu0 %v2770
          %v3731 = vpop.f32.mrb[0].mxu0
          %v3732 = vadd.f32 %v3661, %v3731
          %v3733 = vpop.f32.mrb[0].mxu0
          %v3734 = vadd.f32 %v3663, %v3733
          %3735 = vdwg.mxu0
          %3736 = vmatprep.subr.mxu0 %v3035
          %3737 = vmatpush1.msra.mxu0 %v3034
          %3738 = vmatprep.subr.mxu0 %v3039
          %3739 = vmatpush1.msra.mxu0 %v3038
          %3740 = vmatprep.subr.mxu0 %v3043
          %3741 = vmatpush1.msra.mxu0 %v3042
          %3742 = vmatprep.subr.mxu0 %v3047
          %3743 = vmatpush1.msra.mxu0 %v3046
          %3744 = vmatprep.subr.mxu0 %v3051
          %3745 = vmatpush1.msra.mxu0 %v3050
          %3746 = vmatprep.subr.mxu0 %v3055
          %3747 = vmatpush1.msra.mxu0 %v3054
          %3748 = vmatprep.subr.mxu0 %v3059
          %3749 = vmatpush1.msra.mxu0 %v3058
          %3750 = vmatprep.subr.mxu0 %v3063
          %3751 = vmatpush1.msra.mxu0 %v3062
          %3752 = vmatprep.subr.mxu0 %v3067
          %3753 = vmatpush1.msra.mxu0 %v3066
          %3754 = vmatprep.subr.mxu0 %v3071
          %3755 = vmatpush1.msra.mxu0 %v3070
          %3756 = vmatprep.subr.mxu0 %v3075
          %3757 = vmatpush1.msra.mxu0 %v3074
          %3758 = vmatprep.subr.mxu0 %v3079
          %3759 = vmatpush1.msra.mxu0 %v3078
          %3760 = vmatprep.subr.mxu0 %v3083
          %3761 = vmatpush1.msra.mxu0 %v3082
          %3762 = vmatprep.subr.mxu0 %v3087
          %3763 = vmatpush1.msra.mxu0 %v3086
          %3764 = vmatprep.subr.mxu0 %v3091
          %3765 = vmatpush1.msra.mxu0 %v3090
          %3766 = vmatprep.subr.mxu0 %v3095
          %3767 = vmatpush1.msra.mxu0 %v3094
          %3768 = vmatprep.subr.mxu0 %v3099
          %3769 = vmatpush1.msra.mxu0 %v3098
          %3770 = vmatprep.subr.mxu0 %v3103
          %3771 = vmatpush1.msra.mxu0 %v3102
          %3772 = vmatprep.subr.mxu0 %v3107
          %3773 = vmatpush1.msra.mxu0 %v3106
          %3774 = vmatprep.subr.mxu0 %v3111
          %3775 = vmatpush1.msra.mxu0 %v3110
          %3776 = vmatprep.subr.mxu0 %v3115
          %3777 = vmatpush1.msra.mxu0 %v3114
          %3778 = vmatprep.subr.mxu0 %v3119
          %3779 = vmatpush1.msra.mxu0 %v3118
          %3780 = vmatprep.subr.mxu0 %v3123
          %3781 = vmatpush1.msra.mxu0 %v3122
          %3782 = vmatprep.subr.mxu0 %v3127
          %3783 = vmatpush1.msra.mxu0 %v3126
          %3784 = vmatprep.subr.mxu0 %v3131
          %3785 = vmatpush1.msra.mxu0 %v3130
          %3786 = vmatprep.subr.mxu0 %v3135
          %3787 = vmatpush1.msra.mxu0 %v3134
          %3788 = vmatprep.subr.mxu0 %v3139
          %3789 = vmatpush1.msra.mxu0 %v3138
          %3790 = vmatprep.subr.mxu0 %v3143
          %3791 = vmatpush1.msra.mxu0 %v3142
          %3792 = vmatprep.subr.mxu0 %v3147
          %3793 = vmatpush1.msra.mxu0 %v3146
          %3794 = vmatprep.subr.mxu0 %v3151
          %3795 = vmatpush1.msra.mxu0 %v3150
          %3796 = vmatprep.subr.mxu0 %v3155
          %3797 = vmatpush1.msra.mxu0 %v3154
          %3798 = vmatprep.subr.mxu0 %v3159
          %3799 = vmatpush1.msra.mxu0 %v3158
          %3800 = vmatprep.mubr.f32.mxu0 %v2773
          %3801 = vmatmul.mubr.f32.gmra.mrb[0].mxu0 %v2772
          %v3802 = vpop.f32.mrb[0].mxu0
          %v3803 = vadd.f32 %v3732, %v3802
          %v3804 = vpop.f32.mrb[0].mxu0
          %v3805 = vadd.f32 %v3734, %v3804
          %3806 = vdwg.mxu0
          %3807 = vmatprep.subr.mxu0 %v3163
          %3808 = vmatpush1.msra.mxu0 %v3162
          %3809 = vmatprep.subr.mxu0 %v3167
          %3810 = vmatpush1.msra.mxu0 %v3166
          %3811 = vmatprep.subr.mxu0 %v3171
          %3812 = vmatpush1.msra.mxu0 %v3170
          %3813 = vmatprep.subr.mxu0 %v3175
          %3814 = vmatpush1.msra.mxu0 %v3174
          %3815 = vmatprep.subr.mxu0 %v3179
          %3816 = vmatpush1.msra.mxu0 %v3178
          %3817 = vmatprep.subr.mxu0 %v3183
          %3818 = vmatpush1.msra.mxu0 %v3182
          %3819 = vmatprep.subr.mxu0 %v3187
          %3820 = vmatpush1.msra.mxu0 %v3186
          %3821 = vmatprep.subr.mxu0 %v3191
          %3822 = vmatpush1.msra.mxu0 %v3190
          %3823 = vmatprep.subr.mxu0 %v3195
          %3824 = vmatpush1.msra.mxu0 %v3194
          %3825 = vmatprep.subr.mxu0 %v3199
          %3826 = vmatpush1.msra.mxu0 %v3198
          %3827 = vmatprep.subr.mxu0 %v3203
          %3828 = vmatpush1.msra.mxu0 %v3202
          %3829 = vmatprep.subr.mxu0 %v3207
          %3830 = vmatpush1.msra.mxu0 %v3206
          %3831 = vmatprep.subr.mxu0 %v3211
          %3832 = vmatpush1.msra.mxu0 %v3210
          %3833 = vmatprep.subr.mxu0 %v3215
          %3834 = vmatpush1.msra.mxu0 %v3214
          %3835 = vmatprep.subr.mxu0 %v3219
          %3836 = vmatpush1.msra.mxu0 %v3218
          %3837 = vmatprep.subr.mxu0 %v3223
          %3838 = vmatpush1.msra.mxu0 %v3222
          %3839 = vmatprep.subr.mxu0 %v3227
          %3840 = vmatpush1.msra.mxu0 %v3226
          %3841 = vmatprep.subr.mxu0 %v3231
          %3842 = vmatpush1.msra.mxu0 %v3230
          %3843 = vmatprep.subr.mxu0 %v3235
          %3844 = vmatpush1.msra.mxu0 %v3234
          %3845 = vmatprep.subr.mxu0 %v3239
          %3846 = vmatpush1.msra.mxu0 %v3238
          %3847 = vmatprep.subr.mxu0 %v3243
          %3848 = vmatpush1.msra.mxu0 %v3242
          %3849 = vmatprep.subr.mxu0 %v3247
          %3850 = vmatpush1.msra.mxu0 %v3246
          %3851 = vmatprep.subr.mxu0 %v3251
          %3852 = vmatpush1.msra.mxu0 %v3250
          %3853 = vmatprep.subr.mxu0 %v3255
          %3854 = vmatpush1.msra.mxu0 %v3254
          %3855 = vmatprep.subr.mxu0 %v3259
          %3856 = vmatpush1.msra.mxu0 %v3258
          %3857 = vmatprep.subr.mxu0 %v3263
          %3858 = vmatpush1.msra.mxu0 %v3262
          %3859 = vmatprep.subr.mxu0 %v3267
          %3860 = vmatpush1.msra.mxu0 %v3266
          %3861 = vmatprep.subr.mxu0 %v3271
          %3862 = vmatpush1.msra.mxu0 %v3270
          %3863 = vmatprep.subr.mxu0 %v3275
          %3864 = vmatpush1.msra.mxu0 %v3274
          %3865 = vmatprep.subr.mxu0 %v3279
          %3866 = vmatpush1.msra.mxu0 %v3278
          %3867 = vmatprep.subr.mxu0 %v3283
          %3868 = vmatpush1.msra.mxu0 %v3282
          %3869 = vmatprep.subr.mxu0 %v3287
          %3870 = vmatpush1.msra.mxu0 %v3286
          %3871 = vmatprep.mubr.f32.mxu0 %v2775
          %3872 = vmatmul.mubr.f32.gmra.mrb[0].mxu0 %v2774
          %v3873 = vpop.f32.mrb[0].mxu0
          %v3874 = vadd.f32 %v3803, %v3873
          %v3875 = vpop.f32.mrb[0].mxu0
          %v3876 = vadd.f32 %v3805, %v3875
          %3877 = vdwg.mxu0
          %v3878 = vmax.f32 %v3590, 0.0
          %v3879 = vmax.f32 %v3592, 0.0
          %v3880 = vmax.f32 %v3874, 0.0
          %v3881 = vmax.f32 %v3876, 0.0
          %v3882 = vld [vmem:[#allocation12] sm:$0xff]
          %v3883 = vld [vmem:[#allocation12 + $0x8] sm:$0xff]
          %v3884 = vld [vmem:[#allocation12 + $0x10] sm:$0xff]
          %v3885 = vld [vmem:[#allocation12 + $0x18] sm:$0xff]
          %v3886 = vld [vmem:[#allocation12 + $0x20] sm:$0xff]
          %v3887 = vld [vmem:[#allocation12 + $0x28] sm:$0xff]
          %v3888 = vld [vmem:[#allocation12 + $0x30] sm:$0xff]
          %v3889 = vld [vmem:[#allocation12 + $0x38] sm:$0xff]
          %v3890 = vld [vmem:[#allocation12 + $0x40] sm:$0xff]
          %v3891 = vld [vmem:[#allocation12 + $0x48] sm:$0xff]
          %v3892 = vld [vmem:[#allocation12 + $0x50] sm:$0xff]
          %v3893 = vld [vmem:[#allocation12 + $0x58] sm:$0xff]
          %v3894 = vld [vmem:[#allocation12 + $0x60] sm:$0xff]
          %v3895 = vld [vmem:[#allocation12 + $0x68] sm:$0xff]
          %v3896 = vld [vmem:[#allocation12 + $0x70] sm:$0xff]
          %v3897 = vld [vmem:[#allocation12 + $0x78] sm:$0xff]
          %v3898 = vld [vmem:[#allocation12 + $0x80] sm:$0xff]
          %v3899 = vld [vmem:[#allocation12 + $0x88] sm:$0xff]
          %v3900 = vld [vmem:[#allocation12 + $0x90] sm:$0xff]
          %v3901 = vld [vmem:[#allocation12 + $0x98] sm:$0xff]
          %v3902 = vld [vmem:[#allocation12 + $0xa0] sm:$0xff]
          %v3903 = vld [vmem:[#allocation12 + $0xa8] sm:$0xff]
          %v3904 = vld [vmem:[#allocation12 + $0xb0] sm:$0xff]
          %v3905 = vld [vmem:[#allocation12 + $0xb8] sm:$0xff]
          %v3906 = vld [vmem:[#allocation12 + $0xc0] sm:$0xff]
          %v3907 = vld [vmem:[#allocation12 + $0xc8] sm:$0xff]
          %v3908 = vld [vmem:[#allocation12 + $0xd0] sm:$0xff]
          %v3909 = vld [vmem:[#allocation12 + $0xd8] sm:$0xff]
          %v3910 = vld [vmem:[#allocation12 + $0xe0] sm:$0xff]
          %v3911 = vld [vmem:[#allocation12 + $0xe8] sm:$0xff]
          %v3912 = vld [vmem:[#allocation12 + $0xf0] sm:$0xff]
          %v3913 = vld [vmem:[#allocation12 + $0xf8] sm:$0xff]
          %v3914 = vld [vmem:[#allocation12 + $0x100] sm:$0xff]
          %v3915 = vld [vmem:[#allocation12 + $0x108] sm:$0xff]
          %v3916 = vld [vmem:[#allocation12 + $0x110] sm:$0xff]
          %v3917 = vld [vmem:[#allocation12 + $0x118] sm:$0xff]
          %v3918 = vld [vmem:[#allocation12 + $0x120] sm:$0xff]
          %v3919 = vld [vmem:[#allocation12 + $0x128] sm:$0xff]
          %v3920 = vld [vmem:[#allocation12 + $0x130] sm:$0xff]
          %v3921 = vld [vmem:[#allocation12 + $0x138] sm:$0xff]
          %v3922 = vld [vmem:[#allocation12 + $0x140] sm:$0xff]
          %v3923 = vld [vmem:[#allocation12 + $0x148] sm:$0xff]
          %v3924 = vld [vmem:[#allocation12 + $0x150] sm:$0xff]
          %v3925 = vld [vmem:[#allocation12 + $0x158] sm:$0xff]
          %v3926 = vld [vmem:[#allocation12 + $0x160] sm:$0xff]
          %v3927 = vld [vmem:[#allocation12 + $0x168] sm:$0xff]
          %v3928 = vld [vmem:[#allocation12 + $0x170] sm:$0xff]
          %v3929 = vld [vmem:[#allocation12 + $0x178] sm:$0xff]
          %v3930 = vld [vmem:[#allocation12 + $0x180] sm:$0xff]
          %v3931 = vld [vmem:[#allocation12 + $0x188] sm:$0xff]
          %v3932 = vld [vmem:[#allocation12 + $0x190] sm:$0xff]
          %v3933 = vld [vmem:[#allocation12 + $0x198] sm:$0xff]
          %v3934 = vld [vmem:[#allocation12 + $0x1a0] sm:$0xff]
          %v3935 = vld [vmem:[#allocation12 + $0x1a8] sm:$0xff]
          %v3936 = vld [vmem:[#allocation12 + $0x1b0] sm:$0xff]
          %v3937 = vld [vmem:[#allocation12 + $0x1b8] sm:$0xff]
          %v3938 = vld [vmem:[#allocation12 + $0x1c0] sm:$0xff]
          %v3939 = vld [vmem:[#allocation12 + $0x1c8] sm:$0xff]
          %v3940 = vld [vmem:[#allocation12 + $0x1d0] sm:$0xff]
          %v3941 = vld [vmem:[#allocation12 + $0x1d8] sm:$0xff]
          %v3942 = vld [vmem:[#allocation12 + $0x1e0] sm:$0xff]
          %v3943 = vld [vmem:[#allocation12 + $0x1e8] sm:$0xff]
          %v3944 = vld [vmem:[#allocation12 + $0x1f0] sm:$0xff]
          %v3945 = vld [vmem:[#allocation12 + $0x1f8] sm:$0xff]
          %v3946 = vld [vmem:[#allocation12 + $0x200] sm:$0xff]
          %v3947 = vld [vmem:[#allocation12 + $0x208] sm:$0xff]
          %v3948 = vld [vmem:[#allocation12 + $0x210] sm:$0xff]
          %v3949 = vld [vmem:[#allocation12 + $0x218] sm:$0xff]
          %v3950 = vld [vmem:[#allocation12 + $0x220] sm:$0xff]
          %v3951 = vld [vmem:[#allocation12 + $0x228] sm:$0xff]
          %v3952 = vld [vmem:[#allocation12 + $0x230] sm:$0xff]
          %v3953 = vld [vmem:[#allocation12 + $0x238] sm:$0xff]
          %v3954 = vld [vmem:[#allocation12 + $0x240] sm:$0xff]
          %v3955 = vld [vmem:[#allocation12 + $0x248] sm:$0xff]
          %v3956 = vld [vmem:[#allocation12 + $0x250] sm:$0xff]
          %v3957 = vld [vmem:[#allocation12 + $0x258] sm:$0xff]
          %v3958 = vld [vmem:[#allocation12 + $0x260] sm:$0xff]
          %v3959 = vld [vmem:[#allocation12 + $0x268] sm:$0xff]
          %v3960 = vld [vmem:[#allocation12 + $0x270] sm:$0xff]
          %v3961 = vld [vmem:[#allocation12 + $0x278] sm:$0xff]
          %v3962 = vld [vmem:[#allocation12 + $0x280] sm:$0xff]
          %v3963 = vld [vmem:[#allocation12 + $0x288] sm:$0xff]
          %v3964 = vld [vmem:[#allocation12 + $0x290] sm:$0xff]
          %v3965 = vld [vmem:[#allocation12 + $0x298] sm:$0xff]
          %v3966 = vld [vmem:[#allocation12 + $0x2a0] sm:$0xff]
          %v3967 = vld [vmem:[#allocation12 + $0x2a8] sm:$0xff]
          %v3968 = vld [vmem:[#allocation12 + $0x2b0] sm:$0xff]
          %v3969 = vld [vmem:[#allocation12 + $0x2b8] sm:$0xff]
          %v3970 = vld [vmem:[#allocation12 + $0x2c0] sm:$0xff]
          %v3971 = vld [vmem:[#allocation12 + $0x2c8] sm:$0xff]
          %v3972 = vld [vmem:[#allocation12 + $0x2d0] sm:$0xff]
          %v3973 = vld [vmem:[#allocation12 + $0x2d8] sm:$0xff]
          %v3974 = vld [vmem:[#allocation12 + $0x2e0] sm:$0xff]
          %v3975 = vld [vmem:[#allocation12 + $0x2e8] sm:$0xff]
          %v3976 = vld [vmem:[#allocation12 + $0x2f0] sm:$0xff]
          %v3977 = vld [vmem:[#allocation12 + $0x2f8] sm:$0xff]
          %v3978 = vld [vmem:[#allocation12 + $0x300] sm:$0xff]
          %v3979 = vld [vmem:[#allocation12 + $0x308] sm:$0xff]
          %v3980 = vld [vmem:[#allocation12 + $0x310] sm:$0xff]
          %v3981 = vld [vmem:[#allocation12 + $0x318] sm:$0xff]
          %v3982 = vld [vmem:[#allocation12 + $0x320] sm:$0xff]
          %v3983 = vld [vmem:[#allocation12 + $0x328] sm:$0xff]
          %v3984 = vld [vmem:[#allocation12 + $0x330] sm:$0xff]
          %v3985 = vld [vmem:[#allocation12 + $0x338] sm:$0xff]
          %v3986 = vld [vmem:[#allocation12 + $0x340] sm:$0xff]
          %v3987 = vld [vmem:[#allocation12 + $0x348] sm:$0xff]
          %v3988 = vld [vmem:[#allocation12 + $0x350] sm:$0xff]
          %v3989 = vld [vmem:[#allocation12 + $0x358] sm:$0xff]
          %v3990 = vld [vmem:[#allocation12 + $0x360] sm:$0xff]
          %v3991 = vld [vmem:[#allocation12 + $0x368] sm:$0xff]
          %v3992 = vld [vmem:[#allocation12 + $0x370] sm:$0xff]
          %v3993 = vld [vmem:[#allocation12 + $0x378] sm:$0xff]
          %v3994 = vld [vmem:[#allocation12 + $0x380] sm:$0xff]
          %v3995 = vld [vmem:[#allocation12 + $0x388] sm:$0xff]
          %v3996 = vld [vmem:[#allocation12 + $0x390] sm:$0xff]
          %v3997 = vld [vmem:[#allocation12 + $0x398] sm:$0xff]
          %v3998 = vld [vmem:[#allocation12 + $0x3a0] sm:$0xff]
          %v3999 = vld [vmem:[#allocation12 + $0x3a8] sm:$0xff]
          %v4000 = vld [vmem:[#allocation12 + $0x3b0] sm:$0xff]
          %v4001 = vld [vmem:[#allocation12 + $0x3b8] sm:$0xff]
          %v4002 = vld [vmem:[#allocation12 + $0x3c0] sm:$0xff]
          %v4003 = vld [vmem:[#allocation12 + $0x3c8] sm:$0xff]
          %v4004 = vld [vmem:[#allocation12 + $0x3d0] sm:$0xff]
          %v4005 = vld [vmem:[#allocation12 + $0x3d8] sm:$0xff]
          %v4006 = vld [vmem:[#allocation12 + $0x3e0] sm:$0xff]
          %v4007 = vld [vmem:[#allocation12 + $0x3e8] sm:$0xff]
          %v4008 = vld [vmem:[#allocation12 + $0x3f0] sm:$0xff]
          %v4009 = vld [vmem:[#allocation12 + $0x3f8] sm:$0xff]
          %v4010 = vld [vmem:[#allocation14] sm:$0x3]
          %v4012 = vlaneseq
          %v4013 = vshrl.u32 %v4012, 7
          %v4014 = vsub.s32 0, %v4013
          %v4015 = vrot.slane %v4010, %v4014
          %v4016 = vlaneseq
          %v4017 = vshrl.u32 %v4016, 7
          %v4018 = vsub.s32 1, %v4017
          %v4019 = vrot.slane %v4010, %v4018
          %4022 = vmatprep.subr.mxu0 %v3883
          %4023 = vmatpush1.msra.mxu0 %v3882
          %4024 = vmatprep.subr.mxu0 %v3885
          %4025 = vmatpush1.msra.mxu0 %v3884
          %4026 = vmatprep.subr.mxu0 %v3887
          %4027 = vmatpush1.msra.mxu0 %v3886
          %4028 = vmatprep.subr.mxu0 %v3889
          %4029 = vmatpush1.msra.mxu0 %v3888
          %4030 = vmatprep.subr.mxu0 %v3891
          %4031 = vmatpush1.msra.mxu0 %v3890
          %4032 = vmatprep.subr.mxu0 %v3893
          %4033 = vmatpush1.msra.mxu0 %v3892
          %4034 = vmatprep.subr.mxu0 %v3895
          %4035 = vmatpush1.msra.mxu0 %v3894
          %4036 = vmatprep.subr.mxu0 %v3897
          %4037 = vmatpush1.msra.mxu0 %v3896
          %4038 = vmatprep.subr.mxu0 %v3899
          %4039 = vmatpush1.msra.mxu0 %v3898
          %4040 = vmatprep.subr.mxu0 %v3901
          %4041 = vmatpush1.msra.mxu0 %v3900
          %4042 = vmatprep.subr.mxu0 %v3903
          %4043 = vmatpush1.msra.mxu0 %v3902
          %4044 = vmatprep.subr.mxu0 %v3905
          %4045 = vmatpush1.msra.mxu0 %v3904
          %4046 = vmatprep.subr.mxu0 %v3907
          %4047 = vmatpush1.msra.mxu0 %v3906
          %4048 = vmatprep.subr.mxu0 %v3909
          %4049 = vmatpush1.msra.mxu0 %v3908
          %4050 = vmatprep.subr.mxu0 %v3911
          %4051 = vmatpush1.msra.mxu0 %v3910
          %4052 = vmatprep.subr.mxu0 %v3913
          %4053 = vmatpush1.msra.mxu0 %v3912
          %4054 = vmatprep.subr.mxu0 %v3915
          %4055 = vmatpush1.msra.mxu0 %v3914
          %4056 = vmatprep.subr.mxu0 %v3917
          %4057 = vmatpush1.msra.mxu0 %v3916
          %4058 = vmatprep.subr.mxu0 %v3919
          %4059 = vmatpush1.msra.mxu0 %v3918
          %4060 = vmatprep.subr.mxu0 %v3921
          %4061 = vmatpush1.msra.mxu0 %v3920
          %4062 = vmatprep.subr.mxu0 %v3923
          %4063 = vmatpush1.msra.mxu0 %v3922
          %4064 = vmatprep.subr.mxu0 %v3925
          %4065 = vmatpush1.msra.mxu0 %v3924
          %4066 = vmatprep.subr.mxu0 %v3927
          %4067 = vmatpush1.msra.mxu0 %v3926
          %4068 = vmatprep.subr.mxu0 %v3929
          %4069 = vmatpush1.msra.mxu0 %v3928
          %4070 = vmatprep.subr.mxu0 %v3931
          %4071 = vmatpush1.msra.mxu0 %v3930
          %4072 = vmatprep.subr.mxu0 %v3933
          %4073 = vmatpush1.msra.mxu0 %v3932
          %4074 = vmatprep.subr.mxu0 %v3935
          %4075 = vmatpush1.msra.mxu0 %v3934
          %4076 = vmatprep.subr.mxu0 %v3937
          %4077 = vmatpush1.msra.mxu0 %v3936
          %4078 = vmatprep.subr.mxu0 %v3939
          %4079 = vmatpush1.msra.mxu0 %v3938
          %4080 = vmatprep.subr.mxu0 %v3941
          %4081 = vmatpush1.msra.mxu0 %v3940
          %4082 = vmatprep.subr.mxu0 %v3943
          %4083 = vmatpush1.msra.mxu0 %v3942
          %4084 = vmatprep.subr.mxu0 %v3945
          %4085 = vmatpush1.msra.mxu0 %v3944
          %4086 = vmatprep.mubr.f32.mxu0 %v3879
          %4087 = vmatmul.mubr.f32.gmra.mrb[0].mxu0 %v3878
          %v4088 = vpop.f32.mrb[0].mxu0
          %v4089 = vadd.f32 %v4015, %v4088
          %v4090 = vpop.f32.mrb[0].mxu0
          %v4091 = vadd.f32 %v4019, %v4090
          %4092 = vdwg.mxu0
          %4093 = vmatprep.subr.mxu0 %v3947
          %4094 = vmatpush1.msra.mxu0 %v3946
          %4095 = vmatprep.subr.mxu0 %v3949
          %4096 = vmatpush1.msra.mxu0 %v3948
          %4097 = vmatprep.subr.mxu0 %v3951
          %4098 = vmatpush1.msra.mxu0 %v3950
          %4099 = vmatprep.subr.mxu0 %v3953
          %4100 = vmatpush1.msra.mxu0 %v3952
          %4101 = vmatprep.subr.mxu0 %v3955
          %4102 = vmatpush1.msra.mxu0 %v3954
          %4103 = vmatprep.subr.mxu0 %v3957
          %4104 = vmatpush1.msra.mxu0 %v3956
          %4105 = vmatprep.subr.mxu0 %v3959
          %4106 = vmatpush1.msra.mxu0 %v3958
          %4107 = vmatprep.subr.mxu0 %v3961
          %4108 = vmatpush1.msra.mxu0 %v3960
          %4109 = vmatprep.subr.mxu0 %v3963
          %4110 = vmatpush1.msra.mxu0 %v3962
          %4111 = vmatprep.subr.mxu0 %v3965
          %4112 = vmatpush1.msra.mxu0 %v3964
          %4113 = vmatprep.subr.mxu0 %v3967
          %4114 = vmatpush1.msra.mxu0 %v3966
          %4115 = vmatprep.subr.mxu0 %v3969
          %4116 = vmatpush1.msra.mxu0 %v3968
          %4117 = vmatprep.subr.mxu0 %v3971
          %4118 = vmatpush1.msra.mxu0 %v3970
          %4119 = vmatprep.subr.mxu0 %v3973
          %4120 = vmatpush1.msra.mxu0 %v3972
          %4121 = vmatprep.subr.mxu0 %v3975
          %4122 = vmatpush1.msra.mxu0 %v3974
          %4123 = vmatprep.subr.mxu0 %v3977
          %4124 = vmatpush1.msra.mxu0 %v3976
          %4125 = vmatprep.subr.mxu0 %v3979
          %4126 = vmatpush1.msra.mxu0 %v3978
          %4127 = vmatprep.subr.mxu0 %v3981
          %4128 = vmatpush1.msra.mxu0 %v3980
          %4129 = vmatprep.subr.mxu0 %v3983
          %4130 = vmatpush1.msra.mxu0 %v3982
          %4131 = vmatprep.subr.mxu0 %v3985
          %4132 = vmatpush1.msra.mxu0 %v3984
          %4133 = vmatprep.subr.mxu0 %v3987
          %4134 = vmatpush1.msra.mxu0 %v3986
          %4135 = vmatprep.subr.mxu0 %v3989
          %4136 = vmatpush1.msra.mxu0 %v3988
          %4137 = vmatprep.subr.mxu0 %v3991
          %4138 = vmatpush1.msra.mxu0 %v3990
          %4139 = vmatprep.subr.mxu0 %v3993
          %4140 = vmatpush1.msra.mxu0 %v3992
          %4141 = vmatprep.subr.mxu0 %v3995
          %4142 = vmatpush1.msra.mxu0 %v3994
          %4143 = vmatprep.subr.mxu0 %v3997
          %4144 = vmatpush1.msra.mxu0 %v3996
          %4145 = vmatprep.subr.mxu0 %v3999
          %4146 = vmatpush1.msra.mxu0 %v3998
          %4147 = vmatprep.subr.mxu0 %v4001
          %4148 = vmatpush1.msra.mxu0 %v4000
          %4149 = vmatprep.subr.mxu0 %v4003
          %4150 = vmatpush1.msra.mxu0 %v4002
          %4151 = vmatprep.subr.mxu0 %v4005
          %4152 = vmatpush1.msra.mxu0 %v4004
          %4153 = vmatprep.subr.mxu0 %v4007
          %4154 = vmatpush1.msra.mxu0 %v4006
          %4155 = vmatprep.subr.mxu0 %v4009
          %4156 = vmatpush1.msra.mxu0 %v4008
          %4157 = vmatprep.mubr.f32.mxu0 %v3881
          %4158 = vmatmul.mubr.f32.gmra.mrb[0].mxu0 %v3880
          %v4159 = vpop.f32.mrb[0].mxu0
          %v4160 = vadd.f32 %v4089, %v4159
          %v4161 = vpop.f32.mrb[0].mxu0
          %v4162 = vadd.f32 %v4091, %v4161
          %4163 = vdwg.mxu0
          %v4164 = vmax.f32 %v4160, 0.0
          %v4165 = vmax.f32 %v4162, 0.0
          %v4166 = vld [vmem:[#allocation15] sm:$0xff]
          %v4167 = vld [vmem:[#allocation15 + $0x8] sm:$0xff]
          %v4168 = vld [vmem:[#allocation15 + $0x10] sm:$0xff]
          %v4169 = vld [vmem:[#allocation15 + $0x18] sm:$0xff]
          %v4170 = vld [vmem:[#allocation15 + $0x20] sm:$0xff]
          %v4171 = vld [vmem:[#allocation15 + $0x28] sm:$0xff]
          %v4172 = vld [vmem:[#allocation15 + $0x30] sm:$0xff]
          %v4173 = vld [vmem:[#allocation15 + $0x38] sm:$0xff]
          %v4174 = vld [vmem:[#allocation15 + $0x40] sm:$0xff]
          %v4175 = vld [vmem:[#allocation15 + $0x48] sm:$0xff]
          %v4176 = vld [vmem:[#allocation15 + $0x50] sm:$0xff]
          %v4177 = vld [vmem:[#allocation15 + $0x58] sm:$0xff]
          %v4178 = vld [vmem:[#allocation15 + $0x60] sm:$0xff]
          %v4179 = vld [vmem:[#allocation15 + $0x68] sm:$0xff]
          %v4180 = vld [vmem:[#allocation15 + $0x70] sm:$0xff]
          %v4181 = vld [vmem:[#allocation15 + $0x78] sm:$0xff]
          %v4182 = vld [vmem:[#allocation15 + $0x80] sm:$0xff]
          %v4183 = vld [vmem:[#allocation15 + $0x88] sm:$0xff]
          %v4184 = vld [vmem:[#allocation15 + $0x90] sm:$0xff]
          %v4185 = vld [vmem:[#allocation15 + $0x98] sm:$0xff]
          %v4186 = vld [vmem:[#allocation15 + $0xa0] sm:$0xff]
          %v4187 = vld [vmem:[#allocation15 + $0xa8] sm:$0xff]
          %v4188 = vld [vmem:[#allocation15 + $0xb0] sm:$0xff]
          %v4189 = vld [vmem:[#allocation15 + $0xb8] sm:$0xff]
          %v4190 = vld [vmem:[#allocation15 + $0xc0] sm:$0xff]
          %v4191 = vld [vmem:[#allocation15 + $0xc8] sm:$0xff]
          %v4192 = vld [vmem:[#allocation15 + $0xd0] sm:$0xff]
          %v4193 = vld [vmem:[#allocation15 + $0xd8] sm:$0xff]
          %v4194 = vld [vmem:[#allocation15 + $0xe0] sm:$0xff]
          %v4195 = vld [vmem:[#allocation15 + $0xe8] sm:$0xff]
          %v4196 = vld [vmem:[#allocation15 + $0xf0] sm:$0xff]
          %v4197 = vld [vmem:[#allocation15 + $0xf8] sm:$0xff]
          %v4198 = vld [vmem:[#allocation17] sm:$0x1]
          %v4200 = vlaneseq
          %v4201 = vshrl.u32 %v4200, 7
          %v4202 = vsub.s32 0, %v4201
          %v4203 = vrot.slane %v4198, %v4202
          %4205 = vmatprep.subr.mxu0 0.0
          %4206 = vmatpush1.msra.mxu0 %v4166
          %4207 = vmatprep.subr.mxu0 0.0
          %4208 = vmatpush1.msra.mxu0 %v4167
          %4209 = vmatprep.subr.mxu0 0.0
          %4210 = vmatpush1.msra.mxu0 %v4168
          %4211 = vmatprep.subr.mxu0 0.0
          %4212 = vmatpush1.msra.mxu0 %v4169
          %4213 = vmatprep.subr.mxu0 0.0
          %4214 = vmatpush1.msra.mxu0 %v4170
          %4215 = vmatprep.subr.mxu0 0.0
          %4216 = vmatpush1.msra.mxu0 %v4171
          %4217 = vmatprep.subr.mxu0 0.0
          %4218 = vmatpush1.msra.mxu0 %v4172
          %4219 = vmatprep.subr.mxu0 0.0
          %4220 = vmatpush1.msra.mxu0 %v4173
          %4221 = vmatprep.subr.mxu0 0.0
          %4222 = vmatpush1.msra.mxu0 %v4174
          %4223 = vmatprep.subr.mxu0 0.0
          %4224 = vmatpush1.msra.mxu0 %v4175
          %4225 = vmatprep.subr.mxu0 0.0
          %4226 = vmatpush1.msra.mxu0 %v4176
          %4227 = vmatprep.subr.mxu0 0.0
          %4228 = vmatpush1.msra.mxu0 %v4177
          %4229 = vmatprep.subr.mxu0 0.0
          %4230 = vmatpush1.msra.mxu0 %v4178
          %4231 = vmatprep.subr.mxu0 0.0
          %4232 = vmatpush1.msra.mxu0 %v4179
          %4233 = vmatprep.subr.mxu0 0.0
          %4234 = vmatpush1.msra.mxu0 %v4180
          %4235 = vmatprep.subr.mxu0 0.0
          %4236 = vmatpush1.msra.mxu0 %v4181
          %4237 = vmatprep.subr.mxu0 0.0
          %4238 = vmatpush1.msra.mxu0 %v4182
          %4239 = vmatprep.subr.mxu0 0.0
          %4240 = vmatpush1.msra.mxu0 %v4183
          %4241 = vmatprep.subr.mxu0 0.0
          %4242 = vmatpush1.msra.mxu0 %v4184
          %4243 = vmatprep.subr.mxu0 0.0
          %4244 = vmatpush1.msra.mxu0 %v4185
          %4245 = vmatprep.subr.mxu0 0.0
          %4246 = vmatpush1.msra.mxu0 %v4186
          %4247 = vmatprep.subr.mxu0 0.0
          %4248 = vmatpush1.msra.mxu0 %v4187
          %4249 = vmatprep.subr.mxu0 0.0
          %4250 = vmatpush1.msra.mxu0 %v4188
          %4251 = vmatprep.subr.mxu0 0.0
          %4252 = vmatpush1.msra.mxu0 %v4189
          %4253 = vmatprep.subr.mxu0 0.0
          %4254 = vmatpush1.msra.mxu0 %v4190
          %4255 = vmatprep.subr.mxu0 0.0
          %4256 = vmatpush1.msra.mxu0 %v4191
          %4257 = vmatprep.subr.mxu0 0.0
          %4258 = vmatpush1.msra.mxu0 %v4192
          %4259 = vmatprep.subr.mxu0 0.0
          %4260 = vmatpush1.msra.mxu0 %v4193
          %4261 = vmatprep.subr.mxu0 0.0
          %4262 = vmatpush1.msra.mxu0 %v4194
          %4263 = vmatprep.subr.mxu0 0.0
          %4264 = vmatpush1.msra.mxu0 %v4195
          %4265 = vmatprep.subr.mxu0 0.0
          %4266 = vmatpush1.msra.mxu0 %v4196
          %4267 = vmatprep.subr.mxu0 0.0
          %4268 = vmatpush1.msra.mxu0 %v4197
          %4269 = vmatprep.mubr.f32.mxu0 %v4165
          %4270 = vmatmul.mubr.f32.gmra.mrb[0].mxu0 %v4164
          %v4271 = vpop.f32.mrb[0].mxu0
          %v4272 = vadd.f32 %v4203, %v4271
          %v4273 = vpop.f32.mrb[0].mxu0
          %4274 = vdwg.mxu0
          %v4275 = vmax.f32 %v4272, 0.0
          %v4276 = vld [vmem:[#allocation18] sm:$0xff]
          %v4277 = vld [vmem:[#allocation18 + $0x8] sm:$0xff]
          %v4278 = vld [vmem:[#allocation18 + $0x10] sm:$0xff]
          %v4279 = vld [vmem:[#allocation18 + $0x18] sm:$0xff]
          %v4280 = vld [vmem:[#allocation18 + $0x20] sm:$0xff]
          %v4281 = vld [vmem:[#allocation18 + $0x28] sm:$0xff]
          %v4282 = vld [vmem:[#allocation18 + $0x30] sm:$0xff]
          %v4283 = vld [vmem:[#allocation18 + $0x38] sm:$0xff]
          %v4284 = vld [vmem:[#allocation18 + $0x40] sm:$0xff]
          %v4285 = vld [vmem:[#allocation18 + $0x48] sm:$0xff]
          %v4286 = vld [vmem:[#allocation18 + $0x50] sm:$0xff]
          %v4287 = vld [vmem:[#allocation18 + $0x58] sm:$0xff]
          %v4288 = vld [vmem:[#allocation18 + $0x60] sm:$0xff]
          %v4289 = vld [vmem:[#allocation18 + $0x68] sm:$0xff]
          %v4290 = vld [vmem:[#allocation18 + $0x70] sm:$0xff]
          %v4291 = vld [vmem:[#allocation18 + $0x78] sm:$0xff]
          %v4292 = vld [vmem:[#allocation20] sm:$0x1]
          %v4294 = vlaneseq
          %v4295 = vshrl.u32 %v4294, 7
          %v4296 = vsub.s32 0, %v4295
          %v4297 = vrot.slane %v4292, %v4296
          %4299 = vmatprep.subr.mxu0 0.0
          %4300 = vmatpush1.msra.mxu0 %v4276
          %4301 = vmatprep.subr.mxu0 0.0
          %4302 = vmatpush1.msra.mxu0 %v4277
          %4303 = vmatprep.subr.mxu0 0.0
          %4304 = vmatpush1.msra.mxu0 %v4278
          %4305 = vmatprep.subr.mxu0 0.0
          %4306 = vmatpush1.msra.mxu0 %v4279
          %4307 = vmatprep.subr.mxu0 0.0
          %4308 = vmatpush1.msra.mxu0 %v4280
          %4309 = vmatprep.subr.mxu0 0.0
          %4310 = vmatpush1.msra.mxu0 %v4281
          %4311 = vmatprep.subr.mxu0 0.0
          %4312 = vmatpush1.msra.mxu0 %v4282
          %4313 = vmatprep.subr.mxu0 0.0
          %4314 = vmatpush1.msra.mxu0 %v4283
          %4315 = vmatprep.subr.mxu0 0.0
          %4316 = vmatpush1.msra.mxu0 %v4284
          %4317 = vmatprep.subr.mxu0 0.0
          %4318 = vmatpush1.msra.mxu0 %v4285
          %4319 = vmatprep.subr.mxu0 0.0
          %4320 = vmatpush1.msra.mxu0 %v4286
          %4321 = vmatprep.subr.mxu0 0.0
          %4322 = vmatpush1.msra.mxu0 %v4287
          %4323 = vmatprep.subr.mxu0 0.0
          %4324 = vmatpush1.msra.mxu0 %v4288
          %4325 = vmatprep.subr.mxu0 0.0
          %4326 = vmatpush1.msra.mxu0 %v4289
          %4327 = vmatprep.subr.mxu0 0.0
          %4328 = vmatpush1.msra.mxu0 %v4290
          %4329 = vmatprep.subr.mxu0 0.0
          %4330 = vmatpush1.msra.mxu0 %v4291
          %4331 = vmatprep.subr.mxu0 0.0
          %4332 = vmatpush1.msra.mxu0 0.0
          %4333 = vmatprep.subr.mxu0 0.0
          %4334 = vmatpush1.msra.mxu0 0.0
          %4335 = vmatprep.subr.mxu0 0.0
          %4336 = vmatpush1.msra.mxu0 0.0
          %4337 = vmatprep.subr.mxu0 0.0
          %4338 = vmatpush1.msra.mxu0 0.0
          %4339 = vmatprep.subr.mxu0 0.0
          %4340 = vmatpush1.msra.mxu0 0.0
          %4341 = vmatprep.subr.mxu0 0.0
          %4342 = vmatpush1.msra.mxu0 0.0
          %4343 = vmatprep.subr.mxu0 0.0
          %4344 = vmatpush1.msra.mxu0 0.0
          %4345 = vmatprep.subr.mxu0 0.0
          %4346 = vmatpush1.msra.mxu0 0.0
          %4347 = vmatprep.subr.mxu0 0.0
          %4348 = vmatpush1.msra.mxu0 0.0
          %4349 = vmatprep.subr.mxu0 0.0
          %4350 = vmatpush1.msra.mxu0 0.0
          %4351 = vmatprep.subr.mxu0 0.0
          %4352 = vmatpush1.msra.mxu0 0.0
          %4353 = vmatprep.subr.mxu0 0.0
          %4354 = vmatpush1.msra.mxu0 0.0
          %4355 = vmatprep.subr.mxu0 0.0
          %4356 = vmatpush1.msra.mxu0 0.0
          %4357 = vmatprep.subr.mxu0 0.0
          %4358 = vmatpush1.msra.mxu0 0.0
          %4359 = vmatprep.subr.mxu0 0.0
          %4360 = vmatpush1.msra.mxu0 0.0
          %4361 = vmatprep.subr.mxu0 0.0
          %4362 = vmatpush1.msra.mxu0 0.0
          %4363 = vmatprep.mubr.f32.mxu0 0.0
          %4364 = vmatmul.mubr.f32.gmra.mrb[0].mxu0 %v4275
          %v4365 = vpop.f32.mrb[0].mxu0
          %v4366 = vadd.f32 %v4297, %v4365
          %v4367 = vpop.f32.mrb[0].mxu0
          %4368 = vdwg.mxu0
          %4369 = vst [vmem:[#allocation21] sm:$0xff] %v4366
        $region112: #{tpu_custom_call.1} parent=63 // pred_fallthru
          _
        // Predicated region
        $region113: #{tpu_custom_call.1} parent=63 // pred_check
          %p4370 = pneg %p285
        $region114: #{tpu_custom_call.1} parent=63 // pred_check_branch
          %4372 = sbr.rel (%p4370) target = $region116
        $region115: #{tpu_custom_call.1} parent=63 // pred_region
          %s4374 = ssub.s32 128, 128
          %4375 = vsyncadd [#allocation5], %s4374
          %s4377 = sshll.u32 [#allocation21], 4
          %s4378 = int_to_ptr.vmem [resolvable:$true] %s4377
          %4380 = dma.vmem_to_hbm [thread:$0]  %s4378, 128, %s11, [#allocation5]
        $region116: #{tpu_custom_call.1} parent=63 // pred_fallthru
          _
        // Predicated region
        $region117: #{tpu_custom_call.1} parent=63 // pred_check
          %p4381 = pneg %p285
        $region118: #{tpu_custom_call.1} parent=63 // pred_check_branch
          %4383 = sbr.rel (%p4381) target = $region120
        $region119: #{tpu_custom_call.1} parent=63 // pred_region
          %4384 = dma.done [#allocation5], 128
        $region120: #{tpu_custom_call.1} parent=63 // pred_fallthru
          _
      $region64: #{tpu_custom_call.1} parent=5 // pred_fallthru
        _
      %p4385 = scmp.le.s32.totalorder 2, %s26
      // Predicated region
      $region121: #{tpu_custom_call.1} parent=5 // pred_check
        %p4386 = pneg %p4385
      $region122: #{tpu_custom_call.1} parent=5 // pred_check_branch
        %4388 = sbr.rel (%p4386) target = $region124
      $region123: #{tpu_custom_call.1} parent=5 // pred_region
        %s4389 = ssub.s32 %s26, 2
      $region124: #{tpu_custom_call.1} parent=5 // pred_fallthru
        _
    $region6: #{tpu_custom_call.1} parent=1 // loop_footer
      %s30 = sadd.s32 1, %s26
    $region7: #{tpu_custom_call.1} parent=1 // loop_footer_branch
      %25 = sbr.rel target = $region3
    $region8: #{tpu_custom_call.1} parent=1 // loop_exit
      _
    %4390 = vsyncpa [#allocation4], 1
    %s4391 = scalar_lea.sflag [#allocation4], 1
    %4392 = vsyncpa %s4391, 1
    %4393 = vsyncpa [#allocation7], 1
    %s4394 = scalar_lea.sflag [#allocation7], 1
    %4395 = vsyncpa %s4394, 1
    %4396 = vsyncpa [#allocation10], 1
    %4397 = vsyncpa [#allocation13], 1
    %4398 = vsyncpa [#allocation16], 1
    %4399 = vsyncpa [#allocation19], 1
    %4400 = vsyncpa [#allocation5], 1
    %s4401 = scalar_lea.sflag [#allocation5], 1
    %4402 = vsyncpa %s4401, 1

</llo_original>
